<compile_context>
chip_gen: v5e
topology: v5e:2x2
jax: 0.10.0
libtpu: 0.0.40
codegen_flags: <defaults>
</compile_context>

<pallas_src>
import math

import jax
import jax.numpy as jnp
from jax.experimental import pallas as pl
from jax.experimental.pallas import tpu as pltpu

# ----------------------------------------------------------------------------
# Config: vit_b_32 architecture, shrunk for a quick synthetic run.
# ----------------------------------------------------------------------------
IMAGE = 64          # (real model: 224)
PATCH = 32          # ViT-B/32 patch size
CHANNELS = 3
HIDDEN = 32         # (real model: 768)
NUM_HEADS = 4       # (real model: 12)
HEAD_DIM = HIDDEN // NUM_HEADS
MLP_DIM = 64        # (real model: 3072)
NUM_LAYERS = 2      # (real model: 12)
NUM_CLASSES = 10    # (real model: 1000)
LN_EPS = 1e-6       # torchvision ViT uses LayerNorm(eps=1e-6)
NUM_PATCHES = (IMAGE // PATCH) ** 2
SEQ = NUM_PATCHES + 1            # +1 class token
PATCH_DIM = CHANNELS * PATCH * PATCH
SCALE = 1.0 / math.sqrt(HEAD_DIM)

BT = 8                           # images per grid step (BT*SEQ = 40 rows, %8 == 0)
ROWS = BT * SEQ
HEAD_PAD = 128                   # lane-dense class-head width (>= NUM_CLASSES)

# --- packed "vector slab" layout: one 128-lane row per small vector ----------
(LR_LN1_W, LR_LN1_B, LR_B_QKV, LR_B_OUT,
 LR_LN2_W, LR_LN2_B, LR_B_MLP1, LR_B_MLP2) = range(8)
VROWS_PER_LAYER = 8
GR_B_PE = NUM_LAYERS * VROWS_PER_LAYER
GR_LNF_W = GR_B_PE + 1
GR_LNF_B = GR_B_PE + 2
GR_B_HEAD = GR_B_PE + 3
GR_EMB = GR_B_PE + 4            # SEQ rows; row 0 = class_token + pos[0]
VEC_ROWS = GR_EMB + SEQ
VEC_WIDTH = 128
assert 3 * HIDDEN <= VEC_WIDTH and MLP_DIM <= VEC_WIDTH and NUM_CLASSES <= HEAD_PAD


# ----------------------------------------------------------------------------
# Elementwise helpers (usable both in-kernel and in the pure-JAX reference)
# ----------------------------------------------------------------------------
def _erf(x):
    # Abramowitz & Stegun 7.1.26 (max abs err ~1.5e-7) -> exact torch GELU parity.
    a1, a2, a3, a4, a5 = (0.254829592, -0.284496736, 1.421413741,
                          -1.453152027, 1.061405429)
    p = 0.3275911
    sgn = jnp.where(x >= 0.0, 1.0, -1.0)
    ax = jnp.abs(x)
    t = 1.0 / (1.0 + p * ax)
    poly = ((((a5 * t + a4) * t + a3) * t + a2) * t + a1) * t
    return sgn * (1.0 - poly * jnp.exp(-ax * ax))


def _gelu(x):
    return 0.5 * x * (1.0 + _erf(x * (1.0 / math.sqrt(2.0))))


def _ln(x, g, b):
    mu = jnp.mean(x, axis=-1, keepdims=True)
    var = jnp.mean(jnp.square(x - mu), axis=-1, keepdims=True)
    return (x - mu) * jax.lax.rsqrt(var + LN_EPS) * g + b


# ----------------------------------------------------------------------------
# The single fused Pallas kernel: whole ViT forward for BT images per grid step
# ----------------------------------------------------------------------------
def _vit_kernel(patches_ref,                                  # (BT*nP, PATCH_DIM)
                w_pe_ref, w_qkv_ref, w_out_ref,               # big matmul weights
                w_mlp1_ref, w_mlp2_ref, w_head_ref,
                vec_ref,                                      # (VEC_ROWS, 128) slab
                bias_ref,                                     # (ROWS, ROWS) attn mask
                out_ref):                                     # (BT, HEAD_PAD)

    def vrow(r, n):                       # (1, n) row of the vector slab
        return vec_ref[r:r + 1, :n]

    # --- conv_proj (stride==kernel conv) == patch matmul; fused bias add ---
    tok = (jnp.dot(patches_ref[...], w_pe_ref[...],
                   preferred_element_type=jnp.float32)
           + vrow(GR_B_PE, HIDDEN))                           # (BT*nP, HIDDEN)

    # --- class token + positional embedding (cls folded into emb row 0) ---
    emb = vec_ref[GR_EMB:GR_EMB + SEQ, :HIDDEN]               # (SEQ, HIDDEN)
    pieces = []
    for b in range(BT):
        pieces.append(emb[0:1, :])
        pieces.append(tok[b * NUM_PATCHES:(b + 1) * NUM_PATCHES, :] + emb[1:, :])
    h = jnp.concatenate(pieces, axis=0)                       # (ROWS, HIDDEN)

    bias = bias_ref[...]                                      # block-diag 0 / -1e30

    # --- encoder blocks (statically unrolled; weights indexed by layer) ---
    for l in range(NUM_LAYERS):
        base = l * VROWS_PER_LAYER
        # LN1 -> fused QKV projection (rows of all BT images at once)
        x1 = _ln(h, vrow(base + LR_LN1_W, HIDDEN), vrow(base + LR_LN1_B, HIDDEN))
        qkv = (jnp.dot(x1, w_qkv_ref[l], preferred_element_type=jnp.float32)
               + vrow(base + LR_B_QKV, 3 * HIDDEN))           # (ROWS, 3D)
        q = qkv[:, 0 * HIDDEN:1 * HIDDEN] * SCALE
        k = qkv[:, 1 * HIDDEN:2 * HIDDEN]
        v = qkv[:, 2 * HIDDEN:3 * HIDDEN]

        # Per-head attention, row-batched over images with a block-diagonal
        # additive mask; q.k^T via dot_general (no XLU transposes).
        heads = []
        for hh in range(NUM_HEADS):
            c0 = hh * HEAD_DIM
            qh = q[:, c0:c0 + HEAD_DIM]
            kh = k[:, c0:c0 + HEAD_DIM]
            vh = v[:, c0:c0 + HEAD_DIM]
            s = jax.lax.dot_general(qh, kh, (((1,), (1,)), ((), ())),
                                    preferred_element_type=jnp.float32) + bias
            s = s - jnp.max(s, axis=-1, keepdims=True)
            p = jnp.exp(s)                                    # masked entries -> 0
            p = p * pl.reciprocal(jnp.sum(p, axis=-1, keepdims=True), approx=True)
            heads.append(jnp.dot(p, vh, preferred_element_type=jnp.float32))
        attn = jnp.concatenate(heads, axis=-1)                # (ROWS, HIDDEN)

        # out projection + residual
        attn = (jnp.dot(attn, w_out_ref[l], preferred_element_type=jnp.float32)
                + vrow(base + LR_B_OUT, HIDDEN))
        h = h + attn

        # LN2 -> MLP with fused exact GELU -> residual
        y = _ln(h, vrow(base + LR_LN2_W, HIDDEN), vrow(base + LR_LN2_B, HIDDEN))
        y = (jnp.dot(y, w_mlp1_ref[l], preferred_element_type=jnp.float32)
             + vrow(base + LR_B_MLP1, MLP_DIM))
        y = _gelu(y)
        y = (jnp.dot(y, w_mlp2_ref[l], preferred_element_type=jnp.float32)
             + vrow(base + LR_B_MLP2, HIDDEN))
        h = h + y

    # --- class-token pooling, final LN, lane-dense (128-wide) class head ---
    cls_rows = jnp.concatenate([h[b * SEQ:b * SEQ + 1, :] for b in range(BT)],
                               axis=0)                        # (BT, HIDDEN)
    cls_rows = _ln(cls_rows, vrow(GR_LNF_W, HIDDEN), vrow(GR_LNF_B, HIDDEN))
    out_ref[...] = (jnp.dot(cls_rows, w_head_ref[...],
                            preferred_element_type=jnp.float32)
                    + vrow(GR_B_HEAD, HEAD_PAD))              # unmasked vst


@jax.jit
def vit_forward(x, pk):
    """x: (B, C, H, W) NCHW image batch.  pk: packed params (see pack_params)."""
    B, C, H, W = x.shape
    nH, nW = H // PATCH, W // PATCH
    nP = nH * nW
    pd = C * PATCH * PATCH
    assert nP == NUM_PATCHES and pd == PATCH_DIM and C == CHANNELS

    # Pad batch to a multiple of BT (pad images are zero; sliced off below).
    n_blocks = pl.cdiv(B, BT)
    B_pad = n_blocks * BT
    if B_pad != B:
        x = jnp.concatenate(
            [x, jnp.zeros((B_pad - B, C, H, W), x.dtype)], axis=0)

    # Patch extraction (layout glue; allowed to fuse into the pallas operand).
    patches = (x.reshape(B_pad, C, nH, PATCH, nW, PATCH)
                 .transpose(0, 2, 4, 1, 3, 5)
                 .reshape(B_pad * nP, pd))

    # Block-diagonal additive attention mask: images do not attend across.
    row_img = jnp.arange(ROWS, dtype=jnp.int32) // SEQ
    attn_bias = jnp.where(row_img[:, None] == row_img[None, :],
                          0.0, -1e30).astype(jnp.float32)

    const2 = lambda g: (0, 0)
    const3 = lambda g: (0, 0, 0)
    in_specs = [
        pl.BlockSpec((BT * nP, pd), lambda g: (g, 0)),        # patches (per step)
        pl.BlockSpec(pk["w_pe"].shape, const2),               # resident weights
        pl.BlockSpec(pk["w_qkv"].shape, const3),
        pl.BlockSpec(pk["w_out"].shape, const3),
        pl.BlockSpec(pk["w_mlp1"].shape, const3),
        pl.BlockSpec(pk["w_mlp2"].shape, const3),
        pl.BlockSpec(pk["w_head"].shape, const2),
        pl.BlockSpec(pk["vecs"].shape, const2),
        pl.BlockSpec((ROWS, ROWS), const2),
    ]

    out = pl.pallas_call(
        _vit_kernel,
        out_shape=jax.ShapeDtypeStruct((B_pad, HEAD_PAD), jnp.float32),
        grid=(n_blocks,),
        in_specs=in_specs,
        out_specs=pl.BlockSpec((BT, HEAD_PAD), lambda g: (g, 0)),
        compiler_params=pltpu.CompilerParams(
            dimension_semantics=("parallel",),                # v7x: 2 TCs split grid
            allow_input_fusion=[True] + [False] * 8),         # fuse patch transpose
    )(patches, pk["w_pe"], pk["w_qkv"], pk["w_out"],
      pk["w_mlp1"], pk["w_mlp2"], pk["w_head"], pk["vecs"], attn_bias)

    return out[:B, :NUM_CLASSES]


# ----------------------------------------------------------------------------
# Parameters (deterministic synthetic init; shapes follow torchvision ViT),
# then packed ONCE into the kernel-ready layout.
# ----------------------------------------------------------------------------
def init_params(key):
    ks = iter(jax.random.split(key, 64))

    def nrm(shape, std=0.02):
        return std * jax.random.normal(next(ks), shape, jnp.float32)

    params = dict(
        conv_w=nrm((HIDDEN, CHANNELS, PATCH, PATCH)),   # conv_proj.weight
        conv_b=nrm((HIDDEN,)),                          # conv_proj.bias
        class_token=nrm((1, 1, HIDDEN)),
        pos_embedding=nrm((1, SEQ, HIDDEN)),
        ln_w=jnp.ones((HIDDEN,), jnp.float32),          # encoder.ln
        ln_b=jnp.zeros((HIDDEN,), jnp.float32),
        head_w=nrm((NUM_CLASSES, HIDDEN)),              # heads.head.weight (out,in)
        head_b=jnp.zeros((NUM_CLASSES,), jnp.float32),
        layers=[],
    )
    for _ in range(NUM_LAYERS):
        params["layers"].append(dict(
            ln1_w=jnp.ones((HIDDEN,), jnp.float32),
            ln1_b=jnp.zeros((HIDDEN,), jnp.float32),
            in_proj_w=nrm((3 * HIDDEN, HIDDEN)),        # MHA in_proj_weight (out,in)
            in_proj_b=nrm((3 * HIDDEN,)),
            out_proj_w=nrm((HIDDEN, HIDDEN)),           # MHA out_proj.weight (out,in)
            out_proj_b=nrm((HIDDEN,)),
            ln2_w=jnp.ones((HIDDEN,), jnp.float32),
            ln2_b=jnp.zeros((HIDDEN,), jnp.float32),
            mlp_w1=nrm((MLP_DIM, HIDDEN)),              # Linear(D, mlp).weight (out,in)
            mlp_b1=nrm((MLP_DIM,)),
            mlp_w2=nrm((HIDDEN, MLP_DIM)),              # Linear(mlp, D).weight (out,in)
            mlp_b2=nrm((HIDDEN,)),
        ))
    return params


def pack_params(p):
    """One-time packing: transpose to (in,out), stack per-layer matmul weights,
    pad the class head to 128 lanes, and pack every small vector into one
    (VEC_ROWS, 128) slab (class token folded into positional-embedding row 0)."""
    ly = p["layers"]
    vecs = jnp.zeros((VEC_ROWS, VEC_WIDTH), jnp.float32)

    def put(v, r, vec):
        return v.at[r, :vec.shape[0]].set(vec.astype(jnp.float32))

    for l, lp in enumerate(ly):
        b = l * VROWS_PER_LAYER
        vecs = put(vecs, b + LR_LN1_W, lp["ln1_w"])
        vecs = put(vecs, b + LR_LN1_B, lp["ln1_b"])
        vecs = put(vecs, b + LR_B_QKV, lp["in_proj_b"])
        vecs = put(vecs, b + LR_B_OUT, lp["out_proj_b"])
        vecs = put(vecs, b + LR_LN2_W, lp["ln2_w"])
        vecs = put(vecs, b + LR_LN2_B, lp["ln2_b"])
        vecs = put(vecs, b + LR_B_MLP1, lp["mlp_b1"])
        vecs = put(vecs, b + LR_B_MLP2, lp["mlp_b2"])
    vecs = put(vecs, GR_B_PE, p["conv_b"])
    vecs = put(vecs, GR_LNF_W, p["ln_w"])
    vecs = put(vecs, GR_LNF_B, p["ln_b"])
    vecs = put(vecs, GR_B_HEAD, p["head_b"])                  # rest of row = 0
    emb = p["pos_embedding"][0].at[0].add(p["class_token"][0, 0])
    vecs = vecs.at[GR_EMB:GR_EMB + SEQ, :HIDDEN].set(emb)

    w_head = (jnp.zeros((HIDDEN, HEAD_PAD), jnp.float32)
              .at[:, :NUM_CLASSES].set(p["head_w"].T))        # padded lanes = 0

    return dict(
        w_pe=p["conv_w"].reshape(HIDDEN, PATCH_DIM).T,        # (PD, D)
        w_qkv=jnp.stack([l_["in_proj_w"].T for l_ in ly], axis=0),   # (L, D, 3D)
        w_out=jnp.stack([l_["out_proj_w"].T for l_ in ly], axis=0),  # (L, D, D)
        w_mlp1=jnp.stack([l_["mlp_w1"].T for l_ in ly], axis=0),     # (L, D, M)
        w_mlp2=jnp.stack([l_["mlp_w2"].T for l_ in ly], axis=0),     # (L, M, D)
        w_head=w_head,                                        # (D, 128)
        vecs=vecs,                                            # (VEC_ROWS, 128)
    )


# ----------------------------------------------------------------------------
# Pure-JAX reference (same math, exact softmax, no Pallas) from raw params.
# ----------------------------------------------------------------------------
def vit_reference(x, p):
    B, C, H, W = x.shape
    nH, nW = H // PATCH, W // PATCH
    patches = (x.reshape(B, C, nH, PATCH, nW, PATCH)
                 .transpose(0, 2, 4, 1, 3, 5)
                 .reshape(B, nH * nW, C * PATCH * PATCH))
    w_pe = p["conv_w"].reshape(HIDDEN, PATCH_DIM).T
    tok = patches @ w_pe + p["conv_b"]
    cls = jnp.broadcast_to(p["class_token"], (B, 1, HIDDEN))
    h = jnp.concatenate([cls, tok], axis=1) + p["pos_embedding"]
    for lp in p["layers"]:
        x1 = _ln(h, lp["ln1_w"], lp["ln1_b"])
        qkv = x1 @ lp["in_proj_w"].T + lp["in_proj_b"]
        q, k, v = jnp.split(qkv, 3, axis=-1)

        def to_heads(t):
            return t.reshape(B, SEQ, NUM_HEADS, HEAD_DIM).transpose(0, 2, 1, 3)

        q, k, v = to_heads(q), to_heads(k), to_heads(v)
        s = (q @ jnp.swapaxes(k, -1, -2)) / math.sqrt(HEAD_DIM)
        a = jax.nn.softmax(s, axis=-1)
        o = (a @ v).transpose(0, 2, 1, 3).reshape(B, SEQ, HIDDEN)
        h = h + (o @ lp["out_proj_w"].T + lp["out_proj_b"])
        y = _ln(h, lp["ln2_w"], lp["ln2_b"])
        y = _gelu(y @ lp["mlp_w1"].T + lp["mlp_b1"])
        h = h + (y @ lp["mlp_w2"].T + lp["mlp_b2"])
    h = _ln(h, p["ln_w"], p["ln_b"])
    return h[:, 0] @ p["head_w"].T + p["head_b"]


if __name__ == "__main__":
    key = jax.random.PRNGKey(0)
    params = init_params(key)
    packed = pack_params(params)
    B = 12  # not a multiple of BT -> exercises padding; grid=(2,) keeps v7x's 2 TCs busy
    x = jax.random.normal(jax.random.fold_in(key, 123),
                          (B, CHANNELS, IMAGE, IMAGE), jnp.float32)
    out = vit_forward(x, packed)
    jax.block_until_ready(out)
    assert out.shape == (B, NUM_CLASSES), out.shape
    assert bool(jnp.all(jnp.isfinite(out)))
    ref = vit_reference(x, params)
    err = float(jnp.max(jnp.abs(out - ref)))
    assert bool(jnp.allclose(out, ref, rtol=1e-2, atol=1e-2)), err
    print("KERNEL_OK")
</pallas_src>

<mosaic_0001>
module attributes {stable_mosaic.version = 11 : i64} {
  func.func @_vit_kernel(%arg0: i32, %arg1: memref<32x3072xf32, #tpu.memory_space<vmem>>, %arg2: memref<3072x32xf32, #tpu.memory_space<vmem>>, %arg3: memref<2x32x96xf32, #tpu.memory_space<vmem>>, %arg4: memref<2x32x32xf32, #tpu.memory_space<vmem>>, %arg5: memref<2x32x64xf32, #tpu.memory_space<vmem>>, %arg6: memref<2x64x32xf32, #tpu.memory_space<vmem>>, %arg7: memref<32x128xf32, #tpu.memory_space<vmem>>, %arg8: memref<25x128xf32, #tpu.memory_space<vmem>>, %arg9: memref<40x40xf32, #tpu.memory_space<vmem>>, %arg10: memref<8x128xf32, #tpu.memory_space<vmem>>) attributes {dimension_semantics = [#tpu.dimension_semantics<parallel>], iteration_bounds = array<i64: 2>, scalar_prefetch = 0 : i64, scratch_operands = 0 : i64, tpu.core_type = #tpu.core_type<tc>, window_params = [{transform_indices = @transform_0, window_bounds = array<i64: 32, 3072>}, {pipeline_mode = #tpu.pipeline_mode<synchronous>, transform_indices = @transform_1, window_bounds = array<i64: 3072, 32>}, {pipeline_mode = #tpu.pipeline_mode<synchronous>, transform_indices = @transform_2, window_bounds = array<i64: 2, 32, 96>}, {pipeline_mode = #tpu.pipeline_mode<synchronous>, transform_indices = @transform_3, window_bounds = array<i64: 2, 32, 32>}, {pipeline_mode = #tpu.pipeline_mode<synchronous>, transform_indices = @transform_4, window_bounds = array<i64: 2, 32, 64>}, {pipeline_mode = #tpu.pipeline_mode<synchronous>, transform_indices = @transform_5, window_bounds = array<i64: 2, 64, 32>}, {pipeline_mode = #tpu.pipeline_mode<synchronous>, transform_indices = @transform_6, window_bounds = array<i64: 32, 128>}, {pipeline_mode = #tpu.pipeline_mode<synchronous>, transform_indices = @transform_7, window_bounds = array<i64: 25, 128>}, {pipeline_mode = #tpu.pipeline_mode<synchronous>, transform_indices = @transform_8, window_bounds = array<i64: 40, 40>}, {transform_indices = @transform_9, window_bounds = array<i64: 8, 128>}]} {
    %c0 = arith.constant 0 : index
    %c0_0 = arith.constant 0 : index
    %0 = vector.load %arg1[%c0, %c0_0] : memref<32x3072xf32, #tpu.memory_space<vmem>>, vector<32x3072xf32>
    %c0_1 = arith.constant 0 : index
    %c0_2 = arith.constant 0 : index
    %1 = vector.load %arg2[%c0_1, %c0_2] : memref<3072x32xf32, #tpu.memory_space<vmem>>, vector<3072x32xf32>
    %cst = arith.constant dense<0.000000e+00> : vector<32x32xf32>
    %2 = tpu.matmul %0, %1, %cst {dimension_numbers = #tpu.dot_dimension_numbers<[1], [0], [0], [1], [0, 0, 1, 1], [], []>} : vector<32x3072xf32>, vector<3072x32xf32>, vector<32x32xf32> -> vector<32x32xf32>
    %c16 = arith.constant 16 : index
    %c0_3 = arith.constant 0 : index
    %3 = vector.load %arg8[%c16, %c0_3] : memref<25x128xf32, #tpu.memory_space<vmem>>, vector<1x32xf32>
    %4 = vector.broadcast %3 : vector<1x32xf32> to vector<32x32xf32>
    %5 = arith.addf %2, %4 : vector<32x32xf32>
    %c20 = arith.constant 20 : index
    %c0_4 = arith.constant 0 : index
    %6 = vector.load %arg8[%c20, %c0_4] : memref<25x128xf32, #tpu.memory_space<vmem>>, vector<5x32xf32>
    %7 = vector.extract_strided_slice %6 {offsets = [0, 0], sizes = [1, 32], strides = [1, 1]} : vector<5x32xf32> to vector<1x32xf32>
    %8 = vector.extract_strided_slice %5 {offsets = [0, 0], sizes = [4, 32], strides = [1, 1]} : vector<32x32xf32> to vector<4x32xf32>
    %9 = vector.extract_strided_slice %6 {offsets = [1, 0], sizes = [4, 32], strides = [1, 1]} : vector<5x32xf32> to vector<4x32xf32>
    %10 = arith.addf %8, %9 : vector<4x32xf32>
    %11 = vector.extract_strided_slice %6 {offsets = [0, 0], sizes = [1, 32], strides = [1, 1]} : vector<5x32xf32> to vector<1x32xf32>
    %12 = vector.extract_strided_slice %5 {offsets = [4, 0], sizes = [4, 32], strides = [1, 1]} : vector<32x32xf32> to vector<4x32xf32>
    %13 = vector.extract_strided_slice %6 {offsets = [1, 0], sizes = [4, 32], strides = [1, 1]} : vector<5x32xf32> to vector<4x32xf32>
    %14 = arith.addf %12, %13 : vector<4x32xf32>
    %15 = vector.extract_strided_slice %6 {offsets = [0, 0], sizes = [1, 32], strides = [1, 1]} : vector<5x32xf32> to vector<1x32xf32>
    %16 = vector.extract_strided_slice %5 {offsets = [8, 0], sizes = [4, 32], strides = [1, 1]} : vector<32x32xf32> to vector<4x32xf32>
    %17 = vector.extract_strided_slice %6 {offsets = [1, 0], sizes = [4, 32], strides = [1, 1]} : vector<5x32xf32> to vector<4x32xf32>
    %18 = arith.addf %16, %17 : vector<4x32xf32>
    %19 = vector.extract_strided_slice %6 {offsets = [0, 0], sizes = [1, 32], strides = [1, 1]} : vector<5x32xf32> to vector<1x32xf32>
    %20 = vector.extract_strided_slice %5 {offsets = [12, 0], sizes = [4, 32], strides = [1, 1]} : vector<32x32xf32> to vector<4x32xf32>
    %21 = vector.extract_strided_slice %6 {offsets = [1, 0], sizes = [4, 32], strides = [1, 1]} : vector<5x32xf32> to vector<4x32xf32>
    %22 = arith.addf %20, %21 : vector<4x32xf32>
    %23 = vector.extract_strided_slice %6 {offsets = [0, 0], sizes = [1, 32], strides = [1, 1]} : vector<5x32xf32> to vector<1x32xf32>
    %24 = vector.extract_strided_slice %5 {offsets = [16, 0], sizes = [4, 32], strides = [1, 1]} : vector<32x32xf32> to vector<4x32xf32>
    %25 = vector.extract_strided_slice %6 {offsets = [1, 0], sizes = [4, 32], strides = [1, 1]} : vector<5x32xf32> to vector<4x32xf32>
    %26 = arith.addf %24, %25 : vector<4x32xf32>
    %27 = vector.extract_strided_slice %6 {offsets = [0, 0], sizes = [1, 32], strides = [1, 1]} : vector<5x32xf32> to vector<1x32xf32>
    %28 = vector.extract_strided_slice %5 {offsets = [20, 0], sizes = [4, 32], strides = [1, 1]} : vector<32x32xf32> to vector<4x32xf32>
    %29 = vector.extract_strided_slice %6 {offsets = [1, 0], sizes = [4, 32], strides = [1, 1]} : vector<5x32xf32> to vector<4x32xf32>
    %30 = arith.addf %28, %29 : vector<4x32xf32>
    %31 = vector.extract_strided_slice %6 {offsets = [0, 0], sizes = [1, 32], strides = [1, 1]} : vector<5x32xf32> to vector<1x32xf32>
    %32 = vector.extract_strided_slice %5 {offsets = [24, 0], sizes = [4, 32], strides = [1, 1]} : vector<32x32xf32> to vector<4x32xf32>
    %33 = vector.extract_strided_slice %6 {offsets = [1, 0], sizes = [4, 32], strides = [1, 1]} : vector<5x32xf32> to vector<4x32xf32>
    %34 = arith.addf %32, %33 : vector<4x32xf32>
    %35 = vector.extract_strided_slice %6 {offsets = [0, 0], sizes = [1, 32], strides = [1, 1]} : vector<5x32xf32> to vector<1x32xf32>
    %36 = vector.extract_strided_slice %5 {offsets = [28, 0], sizes = [4, 32], strides = [1, 1]} : vector<32x32xf32> to vector<4x32xf32>
    %37 = vector.extract_strided_slice %6 {offsets = [1, 0], sizes = [4, 32], strides = [1, 1]} : vector<5x32xf32> to vector<4x32xf32>
    %38 = arith.addf %36, %37 : vector<4x32xf32>
    %39 = tpu.concatenate %7, %10, %11, %14, %15, %18, %19, %22, %23, %26, %27, %30, %31, %34, %35, %38 in 0 : vector<1x32xf32>, vector<4x32xf32>, vector<1x32xf32>, vector<4x32xf32>, vector<1x32xf32>, vector<4x32xf32>, vector<1x32xf32>, vector<4x32xf32>, vector<1x32xf32>, vector<4x32xf32>, vector<1x32xf32>, vector<4x32xf32>, vector<1x32xf32>, vector<4x32xf32>, vector<1x32xf32>, vector<4x32xf32> -> vector<40x32xf32>
    %c0_5 = arith.constant 0 : index
    %c0_6 = arith.constant 0 : index
    %40 = vector.load %arg9[%c0_5, %c0_6] : memref<40x40xf32, #tpu.memory_space<vmem>>, vector<40x40xf32>
    %c0_7 = arith.constant 0 : index
    %c0_8 = arith.constant 0 : index
    %41 = vector.load %arg8[%c0_7, %c0_8] : memref<25x128xf32, #tpu.memory_space<vmem>>, vector<1x32xf32>
    %c1 = arith.constant 1 : index
    %c0_9 = arith.constant 0 : index
    %42 = vector.load %arg8[%c1, %c0_9] : memref<25x128xf32, #tpu.memory_space<vmem>>, vector<1x32xf32>
    %cst_10 = arith.constant dense<0.000000e+00> : vector<40xf32>
    %43 = vector.multi_reduction <add>, %39, %cst_10 [1] : vector<40x32xf32> to vector<40xf32>
    %44 = vector.shape_cast %43 : vector<40xf32> to vector<40x1xf32>
    %cst_11 = arith.constant 3.200000e+01 : f32
    %45 = vector.broadcast %cst_11 : f32 to vector<40x1xf32>
    %46 = arith.divf %44, %45 : vector<40x1xf32>
    %47 = vector.broadcast %46 : vector<40x1xf32> to vector<40x32xf32>
    %48 = arith.subf %39, %47 : vector<40x32xf32>
    %49 = arith.mulf %48, %48 : vector<40x32xf32>
    %cst_12 = arith.constant dense<0.000000e+00> : vector<40xf32>
    %50 = vector.multi_reduction <add>, %49, %cst_12 [1] : vector<40x32xf32> to vector<40xf32>
    %51 = vector.shape_cast %50 : vector<40xf32> to vector<40x1xf32>
    %cst_13 = arith.constant 3.200000e+01 : f32
    %52 = vector.broadcast %cst_13 : f32 to vector<40x1xf32>
    %53 = arith.divf %51, %52 : vector<40x1xf32>
    %54 = vector.broadcast %46 : vector<40x1xf32> to vector<40x32xf32>
    %55 = arith.subf %39, %54 : vector<40x32xf32>
    %cst_14 = arith.constant 9.99999997E-7 : f32
    %56 = vector.broadcast %cst_14 : f32 to vector<40x1xf32>
    %57 = arith.addf %53, %56 : vector<40x1xf32>
    %58 = math.rsqrt %57 : vector<40x1xf32>
    %59 = vector.broadcast %58 : vector<40x1xf32> to vector<40x32xf32>
    %60 = arith.mulf %55, %59 : vector<40x32xf32>
    %61 = vector.broadcast %41 : vector<1x32xf32> to vector<40x32xf32>
    %62 = arith.mulf %60, %61 : vector<40x32xf32>
    %63 = vector.broadcast %42 : vector<1x32xf32> to vector<40x32xf32>
    %64 = arith.addf %62, %63 : vector<40x32xf32>
    %c0_15 = arith.constant 0 : index
    %c0_16 = arith.constant 0 : index
    %c0_17 = arith.constant 0 : index
    %65 = vector.load %arg3[%c0_15, %c0_16, %c0_17] : memref<2x32x96xf32, #tpu.memory_space<vmem>>, vector<1x32x96xf32>
    %66 = vector.shape_cast %65 : vector<1x32x96xf32> to vector<32x96xf32>
    %cst_18 = arith.constant dense<0.000000e+00> : vector<40x96xf32>
    %67 = tpu.matmul %64, %66, %cst_18 {dimension_numbers = #tpu.dot_dimension_numbers<[1], [0], [0], [1], [0, 0, 1, 1], [], []>} : vector<40x32xf32>, vector<32x96xf32>, vector<40x96xf32> -> vector<40x96xf32>
    %c2 = arith.constant 2 : index
    %c0_19 = arith.constant 0 : index
    %68 = vector.load %arg8[%c2, %c0_19] : memref<25x128xf32, #tpu.memory_space<vmem>>, vector<1x96xf32>
    %69 = vector.broadcast %68 : vector<1x96xf32> to vector<40x96xf32>
    %70 = arith.addf %67, %69 : vector<40x96xf32>
    %71 = vector.extract_strided_slice %70 {offsets = [0, 0], sizes = [40, 32], strides = [1, 1]} : vector<40x96xf32> to vector<40x32xf32>
    %cst_20 = arith.constant 0.353553385 : f32
    %72 = vector.broadcast %cst_20 : f32 to vector<40x32xf32>
    %73 = arith.mulf %71, %72 : vector<40x32xf32>
    %74 = vector.extract_strided_slice %70 {offsets = [0, 32], sizes = [40, 32], strides = [1, 1]} : vector<40x96xf32> to vector<40x32xf32>
    %75 = vector.extract_strided_slice %70 {offsets = [0, 64], sizes = [40, 32], strides = [1, 1]} : vector<40x96xf32> to vector<40x32xf32>
    %76 = vector.extract_strided_slice %73 {offsets = [0, 0], sizes = [40, 8], strides = [1, 1]} : vector<40x32xf32> to vector<40x8xf32>
    %77 = vector.extract_strided_slice %74 {offsets = [0, 0], sizes = [40, 8], strides = [1, 1]} : vector<40x32xf32> to vector<40x8xf32>
    %78 = vector.extract_strided_slice %75 {offsets = [0, 0], sizes = [40, 8], strides = [1, 1]} : vector<40x32xf32> to vector<40x8xf32>
    %cst_21 = arith.constant dense<0.000000e+00> : vector<40x40xf32>
    %79 = tpu.matmul %76, %77, %cst_21 {dimension_numbers = #tpu.dot_dimension_numbers<[1], [1], [0], [0], [0, 0, 1, 0], [], []>} : vector<40x8xf32>, vector<40x8xf32>, vector<40x40xf32> -> vector<40x40xf32>
    %80 = arith.addf %79, %40 : vector<40x40xf32>
    %cst_22 = arith.constant dense<0xFF800000> : vector<40xf32>
    %81 = vector.multi_reduction <maximumf>, %80, %cst_22 [1] : vector<40x40xf32> to vector<40xf32>
    %82 = vector.shape_cast %81 : vector<40xf32> to vector<40x1xf32>
    %83 = vector.broadcast %82 : vector<40x1xf32> to vector<40x40xf32>
    %84 = arith.subf %80, %83 : vector<40x40xf32>
    %85 = math.exp %84 : vector<40x40xf32>
    %cst_23 = arith.constant dense<0.000000e+00> : vector<40xf32>
    %86 = vector.multi_reduction <add>, %85, %cst_23 [1] : vector<40x40xf32> to vector<40xf32>
    %87 = vector.shape_cast %86 : vector<40xf32> to vector<40x1xf32>
    %88 = tpu.reciprocal %87 {approx = true} : vector<40x1xf32> -> vector<40x1xf32>
    %89 = vector.broadcast %88 : vector<40x1xf32> to vector<40x40xf32>
    %90 = arith.mulf %85, %89 : vector<40x40xf32>
    %cst_24 = arith.constant dense<0.000000e+00> : vector<40x8xf32>
    %91 = tpu.matmul %90, %78, %cst_24 {dimension_numbers = #tpu.dot_dimension_numbers<[1], [0], [0], [1], [0, 0, 1, 1], [], []>} : vector<40x40xf32>, vector<40x8xf32>, vector<40x8xf32> -> vector<40x8xf32>
    %92 = vector.extract_strided_slice %73 {offsets = [0, 8], sizes = [40, 8], strides = [1, 1]} : vector<40x32xf32> to vector<40x8xf32>
    %93 = vector.extract_strided_slice %74 {offsets = [0, 8], sizes = [40, 8], strides = [1, 1]} : vector<40x32xf32> to vector<40x8xf32>
    %94 = vector.extract_strided_slice %75 {offsets = [0, 8], sizes = [40, 8], strides = [1, 1]} : vector<40x32xf32> to vector<40x8xf32>
    %cst_25 = arith.constant dense<0.000000e+00> : vector<40x40xf32>
    %95 = tpu.matmul %92, %93, %cst_25 {dimension_numbers = #tpu.dot_dimension_numbers<[1], [1], [0], [0], [0, 0, 1, 0], [], []>} : vector<40x8xf32>, vector<40x8xf32>, vector<40x40xf32> -> vector<40x40xf32>
    %96 = arith.addf %95, %40 : vector<40x40xf32>
    %cst_26 = arith.constant dense<0xFF800000> : vector<40xf32>
    %97 = vector.multi_reduction <maximumf>, %96, %cst_26 [1] : vector<40x40xf32> to vector<40xf32>
    %98 = vector.shape_cast %97 : vector<40xf32> to vector<40x1xf32>
    %99 = vector.broadcast %98 : vector<40x1xf32> to vector<40x40xf32>
    %100 = arith.subf %96, %99 : vector<40x40xf32>
    %101 = math.exp %100 : vector<40x40xf32>
    %cst_27 = arith.constant dense<0.000000e+00> : vector<40xf32>
    %102 = vector.multi_reduction <add>, %101, %cst_27 [1] : vector<40x40xf32> to vector<40xf32>
    %103 = vector.shape_cast %102 : vector<40xf32> to vector<40x1xf32>
    %104 = tpu.reciprocal %103 {approx = true} : vector<40x1xf32> -> vector<40x1xf32>
    %105 = vector.broadcast %104 : vector<40x1xf32> to vector<40x40xf32>
    %106 = arith.mulf %101, %105 : vector<40x40xf32>
    %cst_28 = arith.constant dense<0.000000e+00> : vector<40x8xf32>
    %107 = tpu.matmul %106, %94, %cst_28 {dimension_numbers = #tpu.dot_dimension_numbers<[1], [0], [0], [1], [0, 0, 1, 1], [], []>} : vector<40x40xf32>, vector<40x8xf32>, vector<40x8xf32> -> vector<40x8xf32>
    %108 = vector.extract_strided_slice %73 {offsets = [0, 16], sizes = [40, 8], strides = [1, 1]} : vector<40x32xf32> to vector<40x8xf32>
    %109 = vector.extract_strided_slice %74 {offsets = [0, 16], sizes = [40, 8], strides = [1, 1]} : vector<40x32xf32> to vector<40x8xf32>
    %110 = vector.extract_strided_slice %75 {offsets = [0, 16], sizes = [40, 8], strides = [1, 1]} : vector<40x32xf32> to vector<40x8xf32>
    %cst_29 = arith.constant dense<0.000000e+00> : vector<40x40xf32>
    %111 = tpu.matmul %108, %109, %cst_29 {dimension_numbers = #tpu.dot_dimension_numbers<[1], [1], [0], [0], [0, 0, 1, 0], [], []>} : vector<40x8xf32>, vector<40x8xf32>, vector<40x40xf32> -> vector<40x40xf32>
    %112 = arith.addf %111, %40 : vector<40x40xf32>
    %cst_30 = arith.constant dense<0xFF800000> : vector<40xf32>
    %113 = vector.multi_reduction <maximumf>, %112, %cst_30 [1] : vector<40x40xf32> to vector<40xf32>
    %114 = vector.shape_cast %113 : vector<40xf32> to vector<40x1xf32>
    %115 = vector.broadcast %114 : vector<40x1xf32> to vector<40x40xf32>
    %116 = arith.subf %112, %115 : vector<40x40xf32>
    %117 = math.exp %116 : vector<40x40xf32>
    %cst_31 = arith.constant dense<0.000000e+00> : vector<40xf32>
    %118 = vector.multi_reduction <add>, %117, %cst_31 [1] : vector<40x40xf32> to vector<40xf32>
    %119 = vector.shape_cast %118 : vector<40xf32> to vector<40x1xf32>
    %120 = tpu.reciprocal %119 {approx = true} : vector<40x1xf32> -> vector<40x1xf32>
    %121 = vector.broadcast %120 : vector<40x1xf32> to vector<40x40xf32>
    %122 = arith.mulf %117, %121 : vector<40x40xf32>
    %cst_32 = arith.constant dense<0.000000e+00> : vector<40x8xf32>
    %123 = tpu.matmul %122, %110, %cst_32 {dimension_numbers = #tpu.dot_dimension_numbers<[1], [0], [0], [1], [0, 0, 1, 1], [], []>} : vector<40x40xf32>, vector<40x8xf32>, vector<40x8xf32> -> vector<40x8xf32>
    %124 = vector.extract_strided_slice %73 {offsets = [0, 24], sizes = [40, 8], strides = [1, 1]} : vector<40x32xf32> to vector<40x8xf32>
    %125 = vector.extract_strided_slice %74 {offsets = [0, 24], sizes = [40, 8], strides = [1, 1]} : vector<40x32xf32> to vector<40x8xf32>
    %126 = vector.extract_strided_slice %75 {offsets = [0, 24], sizes = [40, 8], strides = [1, 1]} : vector<40x32xf32> to vector<40x8xf32>
    %cst_33 = arith.constant dense<0.000000e+00> : vector<40x40xf32>
    %127 = tpu.matmul %124, %125, %cst_33 {dimension_numbers = #tpu.dot_dimension_numbers<[1], [1], [0], [0], [0, 0, 1, 0], [], []>} : vector<40x8xf32>, vector<40x8xf32>, vector<40x40xf32> -> vector<40x40xf32>
    %128 = arith.addf %127, %40 : vector<40x40xf32>
    %cst_34 = arith.constant dense<0xFF800000> : vector<40xf32>
    %129 = vector.multi_reduction <maximumf>, %128, %cst_34 [1] : vector<40x40xf32> to vector<40xf32>
    %130 = vector.shape_cast %129 : vector<40xf32> to vector<40x1xf32>
    %131 = vector.broadcast %130 : vector<40x1xf32> to vector<40x40xf32>
    %132 = arith.subf %128, %131 : vector<40x40xf32>
    %133 = math.exp %132 : vector<40x40xf32>
    %cst_35 = arith.constant dense<0.000000e+00> : vector<40xf32>
    %134 = vector.multi_reduction <add>, %133, %cst_35 [1] : vector<40x40xf32> to vector<40xf32>
    %135 = vector.shape_cast %134 : vector<40xf32> to vector<40x1xf32>
    %136 = tpu.reciprocal %135 {approx = true} : vector<40x1xf32> -> vector<40x1xf32>
    %137 = vector.broadcast %136 : vector<40x1xf32> to vector<40x40xf32>
    %138 = arith.mulf %133, %137 : vector<40x40xf32>
    %cst_36 = arith.constant dense<0.000000e+00> : vector<40x8xf32>
    %139 = tpu.matmul %138, %126, %cst_36 {dimension_numbers = #tpu.dot_dimension_numbers<[1], [0], [0], [1], [0, 0, 1, 1], [], []>} : vector<40x40xf32>, vector<40x8xf32>, vector<40x8xf32> -> vector<40x8xf32>
    %140 = tpu.concatenate %91, %107, %123, %139 in 1 : vector<40x8xf32>, vector<40x8xf32>, vector<40x8xf32>, vector<40x8xf32> -> vector<40x32xf32>
    %c0_37 = arith.constant 0 : index
    %c0_38 = arith.constant 0 : index
    %c0_39 = arith.constant 0 : index
    %141 = vector.load %arg4[%c0_37, %c0_38, %c0_39] : memref<2x32x32xf32, #tpu.memory_space<vmem>>, vector<1x32x32xf32>
    %142 = vector.shape_cast %141 : vector<1x32x32xf32> to vector<32x32xf32>
    %cst_40 = arith.constant dense<0.000000e+00> : vector<40x32xf32>
    %143 = tpu.matmul %140, %142, %cst_40 {dimension_numbers = #tpu.dot_dimension_numbers<[1], [0], [0], [1], [0, 0, 1, 1], [], []>} : vector<40x32xf32>, vector<32x32xf32>, vector<40x32xf32> -> vector<40x32xf32>
    %c3 = arith.constant 3 : index
    %c0_41 = arith.constant 0 : index
    %144 = vector.load %arg8[%c3, %c0_41] : memref<25x128xf32, #tpu.memory_space<vmem>>, vector<1x32xf32>
    %145 = vector.broadcast %144 : vector<1x32xf32> to vector<40x32xf32>
    %146 = arith.addf %143, %145 : vector<40x32xf32>
    %147 = arith.addf %39, %146 : vector<40x32xf32>
    %c4 = arith.constant 4 : index
    %c0_42 = arith.constant 0 : index
    %148 = vector.load %arg8[%c4, %c0_42] : memref<25x128xf32, #tpu.memory_space<vmem>>, vector<1x32xf32>
    %c5 = arith.constant 5 : index
    %c0_43 = arith.constant 0 : index
    %149 = vector.load %arg8[%c5, %c0_43] : memref<25x128xf32, #tpu.memory_space<vmem>>, vector<1x32xf32>
    %cst_44 = arith.constant dense<0.000000e+00> : vector<40xf32>
    %150 = vector.multi_reduction <add>, %147, %cst_44 [1] : vector<40x32xf32> to vector<40xf32>
    %151 = vector.shape_cast %150 : vector<40xf32> to vector<40x1xf32>
    %cst_45 = arith.constant 3.200000e+01 : f32
    %152 = vector.broadcast %cst_45 : f32 to vector<40x1xf32>
    %153 = arith.divf %151, %152 : vector<40x1xf32>
    %154 = vector.broadcast %153 : vector<40x1xf32> to vector<40x32xf32>
    %155 = arith.subf %147, %154 : vector<40x32xf32>
    %156 = arith.mulf %155, %155 : vector<40x32xf32>
    %cst_46 = arith.constant dense<0.000000e+00> : vector<40xf32>
    %157 = vector.multi_reduction <add>, %156, %cst_46 [1] : vector<40x32xf32> to vector<40xf32>
    %158 = vector.shape_cast %157 : vector<40xf32> to vector<40x1xf32>
    %cst_47 = arith.constant 3.200000e+01 : f32
    %159 = vector.broadcast %cst_47 : f32 to vector<40x1xf32>
    %160 = arith.divf %158, %159 : vector<40x1xf32>
    %161 = vector.broadcast %153 : vector<40x1xf32> to vector<40x32xf32>
    %162 = arith.subf %147, %161 : vector<40x32xf32>
    %cst_48 = arith.constant 9.99999997E-7 : f32
    %163 = vector.broadcast %cst_48 : f32 to vector<40x1xf32>
    %164 = arith.addf %160, %163 : vector<40x1xf32>
    %165 = math.rsqrt %164 : vector<40x1xf32>
    %166 = vector.broadcast %165 : vector<40x1xf32> to vector<40x32xf32>
    %167 = arith.mulf %162, %166 : vector<40x32xf32>
    %168 = vector.broadcast %148 : vector<1x32xf32> to vector<40x32xf32>
    %169 = arith.mulf %167, %168 : vector<40x32xf32>
    %170 = vector.broadcast %149 : vector<1x32xf32> to vector<40x32xf32>
    %171 = arith.addf %169, %170 : vector<40x32xf32>
    %c0_49 = arith.constant 0 : index
    %c0_50 = arith.constant 0 : index
    %c0_51 = arith.constant 0 : index
    %172 = vector.load %arg5[%c0_49, %c0_50, %c0_51] : memref<2x32x64xf32, #tpu.memory_space<vmem>>, vector<1x32x64xf32>
    %173 = vector.shape_cast %172 : vector<1x32x64xf32> to vector<32x64xf32>
    %cst_52 = arith.constant dense<0.000000e+00> : vector<40x64xf32>
    %174 = tpu.matmul %171, %173, %cst_52 {dimension_numbers = #tpu.dot_dimension_numbers<[1], [0], [0], [1], [0, 0, 1, 1], [], []>} : vector<40x32xf32>, vector<32x64xf32>, vector<40x64xf32> -> vector<40x64xf32>
    %c6 = arith.constant 6 : index
    %c0_53 = arith.constant 0 : index
    %175 = vector.load %arg8[%c6, %c0_53] : memref<25x128xf32, #tpu.memory_space<vmem>>, vector<1x64xf32>
    %176 = vector.broadcast %175 : vector<1x64xf32> to vector<40x64xf32>
    %177 = arith.addf %174, %176 : vector<40x64xf32>
    %cst_54 = arith.constant 5.000000e-01 : f32
    %178 = vector.broadcast %cst_54 : f32 to vector<40x64xf32>
    %179 = arith.mulf %178, %177 : vector<40x64xf32>
    %cst_55 = arith.constant 0.707106769 : f32
    %180 = vector.broadcast %cst_55 : f32 to vector<40x64xf32>
    %181 = arith.mulf %177, %180 : vector<40x64xf32>
    %cst_56 = arith.constant 0.000000e+00 : f32
    %182 = vector.broadcast %cst_56 : f32 to vector<40x64xf32>
    %183 = arith.cmpf oge, %181, %182 : vector<40x64xf32>
    %cst_57 = arith.constant 1.000000e+00 : f32
    %cst_58 = arith.constant -1.000000e+00 : f32
    %184 = vector.broadcast %cst_57 : f32 to vector<40x64xf32>
    %185 = vector.broadcast %cst_58 : f32 to vector<40x64xf32>
    %186 = arith.select %183, %184, %185 : vector<40x64xi1>, vector<40x64xf32>
    %187 = math.absf %181 : vector<40x64xf32>
    %cst_59 = arith.constant 0.327591091 : f32
    %188 = vector.broadcast %cst_59 : f32 to vector<40x64xf32>
    %189 = arith.mulf %188, %187 : vector<40x64xf32>
    %cst_60 = arith.constant 1.000000e+00 : f32
    %190 = vector.broadcast %cst_60 : f32 to vector<40x64xf32>
    %191 = arith.addf %190, %189 : vector<40x64xf32>
    %cst_61 = arith.constant 1.000000e+00 : f32
    %192 = vector.broadcast %cst_61 : f32 to vector<40x64xf32>
    %193 = arith.divf %192, %191 : vector<40x64xf32>
    %cst_62 = arith.constant 1.06140542 : f32
    %194 = vector.broadcast %cst_62 : f32 to vector<40x64xf32>
    %195 = arith.mulf %194, %193 : vector<40x64xf32>
    %cst_63 = arith.constant -1.45315206 : f32
    %196 = vector.broadcast %cst_63 : f32 to vector<40x64xf32>
    %197 = arith.addf %195, %196 : vector<40x64xf32>
    %198 = arith.mulf %197, %193 : vector<40x64xf32>
    %cst_64 = arith.constant 1.42141378 : f32
    %199 = vector.broadcast %cst_64 : f32 to vector<40x64xf32>
    %200 = arith.addf %198, %199 : vector<40x64xf32>
    %201 = arith.mulf %200, %193 : vector<40x64xf32>
    %cst_65 = arith.constant -0.284496725 : f32
    %202 = vector.broadcast %cst_65 : f32 to vector<40x64xf32>
    %203 = arith.addf %201, %202 : vector<40x64xf32>
    %204 = arith.mulf %203, %193 : vector<40x64xf32>
    %cst_66 = arith.constant 0.254829586 : f32
    %205 = vector.broadcast %cst_66 : f32 to vector<40x64xf32>
    %206 = arith.addf %204, %205 : vector<40x64xf32>
    %207 = arith.mulf %206, %193 : vector<40x64xf32>
    %cst_67 = arith.constant 0.000000e+00 : f32
    %208 = vector.broadcast %cst_67 : f32 to vector<40x64xf32>
    %209 = arith.subf %208, %187 : vector<40x64xf32>
    %210 = arith.mulf %209, %187 : vector<40x64xf32>
    %211 = math.exp %210 : vector<40x64xf32>
    %212 = arith.mulf %207, %211 : vector<40x64xf32>
    %cst_68 = arith.constant 1.000000e+00 : f32
    %213 = vector.broadcast %cst_68 : f32 to vector<40x64xf32>
    %214 = arith.subf %213, %212 : vector<40x64xf32>
    %215 = arith.mulf %186, %214 : vector<40x64xf32>
    %cst_69 = arith.constant 1.000000e+00 : f32
    %216 = vector.broadcast %cst_69 : f32 to vector<40x64xf32>
    %217 = arith.addf %216, %215 : vector<40x64xf32>
    %218 = arith.mulf %179, %217 : vector<40x64xf32>
    %c0_70 = arith.constant 0 : index
    %c0_71 = arith.constant 0 : index
    %c0_72 = arith.constant 0 : index
    %219 = vector.load %arg6[%c0_70, %c0_71, %c0_72] : memref<2x64x32xf32, #tpu.memory_space<vmem>>, vector<1x64x32xf32>
    %220 = vector.shape_cast %219 : vector<1x64x32xf32> to vector<64x32xf32>
    %cst_73 = arith.constant dense<0.000000e+00> : vector<40x32xf32>
    %221 = tpu.matmul %218, %220, %cst_73 {dimension_numbers = #tpu.dot_dimension_numbers<[1], [0], [0], [1], [0, 0, 1, 1], [], []>} : vector<40x64xf32>, vector<64x32xf32>, vector<40x32xf32> -> vector<40x32xf32>
    %c7 = arith.constant 7 : index
    %c0_74 = arith.constant 0 : index
    %222 = vector.load %arg8[%c7, %c0_74] : memref<25x128xf32, #tpu.memory_space<vmem>>, vector<1x32xf32>
    %223 = vector.broadcast %222 : vector<1x32xf32> to vector<40x32xf32>
    %224 = arith.addf %221, %223 : vector<40x32xf32>
    %225 = arith.addf %147, %224 : vector<40x32xf32>
    %c8 = arith.constant 8 : index
    %c0_75 = arith.constant 0 : index
    %226 = vector.load %arg8[%c8, %c0_75] : memref<25x128xf32, #tpu.memory_space<vmem>>, vector<1x32xf32>
    %c9 = arith.constant 9 : index
    %c0_76 = arith.constant 0 : index
    %227 = vector.load %arg8[%c9, %c0_76] : memref<25x128xf32, #tpu.memory_space<vmem>>, vector<1x32xf32>
    %cst_77 = arith.constant dense<0.000000e+00> : vector<40xf32>
    %228 = vector.multi_reduction <add>, %225, %cst_77 [1] : vector<40x32xf32> to vector<40xf32>
    %229 = vector.shape_cast %228 : vector<40xf32> to vector<40x1xf32>
    %cst_78 = arith.constant 3.200000e+01 : f32
    %230 = vector.broadcast %cst_78 : f32 to vector<40x1xf32>
    %231 = arith.divf %229, %230 : vector<40x1xf32>
    %232 = vector.broadcast %231 : vector<40x1xf32> to vector<40x32xf32>
    %233 = arith.subf %225, %232 : vector<40x32xf32>
    %234 = arith.mulf %233, %233 : vector<40x32xf32>
    %cst_79 = arith.constant dense<0.000000e+00> : vector<40xf32>
    %235 = vector.multi_reduction <add>, %234, %cst_79 [1] : vector<40x32xf32> to vector<40xf32>
    %236 = vector.shape_cast %235 : vector<40xf32> to vector<40x1xf32>
    %cst_80 = arith.constant 3.200000e+01 : f32
    %237 = vector.broadcast %cst_80 : f32 to vector<40x1xf32>
    %238 = arith.divf %236, %237 : vector<40x1xf32>
    %239 = vector.broadcast %231 : vector<40x1xf32> to vector<40x32xf32>
    %240 = arith.subf %225, %239 : vector<40x32xf32>
    %cst_81 = arith.constant 9.99999997E-7 : f32
    %241 = vector.broadcast %cst_81 : f32 to vector<40x1xf32>
    %242 = arith.addf %238, %241 : vector<40x1xf32>
    %243 = math.rsqrt %242 : vector<40x1xf32>
    %244 = vector.broadcast %243 : vector<40x1xf32> to vector<40x32xf32>
    %245 = arith.mulf %240, %244 : vector<40x32xf32>
    %246 = vector.broadcast %226 : vector<1x32xf32> to vector<40x32xf32>
    %247 = arith.mulf %245, %246 : vector<40x32xf32>
    %248 = vector.broadcast %227 : vector<1x32xf32> to vector<40x32xf32>
    %249 = arith.addf %247, %248 : vector<40x32xf32>
    %c1_82 = arith.constant 1 : index
    %c0_83 = arith.constant 0 : index
    %c0_84 = arith.constant 0 : index
    %250 = vector.load %arg3[%c1_82, %c0_83, %c0_84] : memref<2x32x96xf32, #tpu.memory_space<vmem>>, vector<1x32x96xf32>
    %251 = vector.shape_cast %250 : vector<1x32x96xf32> to vector<32x96xf32>
    %cst_85 = arith.constant dense<0.000000e+00> : vector<40x96xf32>
    %252 = tpu.matmul %249, %251, %cst_85 {dimension_numbers = #tpu.dot_dimension_numbers<[1], [0], [0], [1], [0, 0, 1, 1], [], []>} : vector<40x32xf32>, vector<32x96xf32>, vector<40x96xf32> -> vector<40x96xf32>
    %c10 = arith.constant 10 : index
    %c0_86 = arith.constant 0 : index
    %253 = vector.load %arg8[%c10, %c0_86] : memref<25x128xf32, #tpu.memory_space<vmem>>, vector<1x96xf32>
    %254 = vector.broadcast %253 : vector<1x96xf32> to vector<40x96xf32>
    %255 = arith.addf %252, %254 : vector<40x96xf32>
    %256 = vector.extract_strided_slice %255 {offsets = [0, 0], sizes = [40, 32], strides = [1, 1]} : vector<40x96xf32> to vector<40x32xf32>
    %cst_87 = arith.constant 0.353553385 : f32
    %257 = vector.broadcast %cst_87 : f32 to vector<40x32xf32>
    %258 = arith.mulf %256, %257 : vector<40x32xf32>
    %259 = vector.extract_strided_slice %255 {offsets = [0, 32], sizes = [40, 32], strides = [1, 1]} : vector<40x96xf32> to vector<40x32xf32>
    %260 = vector.extract_strided_slice %255 {offsets = [0, 64], sizes = [40, 32], strides = [1, 1]} : vector<40x96xf32> to vector<40x32xf32>
    %261 = vector.extract_strided_slice %258 {offsets = [0, 0], sizes = [40, 8], strides = [1, 1]} : vector<40x32xf32> to vector<40x8xf32>
    %262 = vector.extract_strided_slice %259 {offsets = [0, 0], sizes = [40, 8], strides = [1, 1]} : vector<40x32xf32> to vector<40x8xf32>
    %263 = vector.extract_strided_slice %260 {offsets = [0, 0], sizes = [40, 8], strides = [1, 1]} : vector<40x32xf32> to vector<40x8xf32>
    %cst_88 = arith.constant dense<0.000000e+00> : vector<40x40xf32>
    %264 = tpu.matmul %261, %262, %cst_88 {dimension_numbers = #tpu.dot_dimension_numbers<[1], [1], [0], [0], [0, 0, 1, 0], [], []>} : vector<40x8xf32>, vector<40x8xf32>, vector<40x40xf32> -> vector<40x40xf32>
    %265 = arith.addf %264, %40 : vector<40x40xf32>
    %cst_89 = arith.constant dense<0xFF800000> : vector<40xf32>
    %266 = vector.multi_reduction <maximumf>, %265, %cst_89 [1] : vector<40x40xf32> to vector<40xf32>
    %267 = vector.shape_cast %266 : vector<40xf32> to vector<40x1xf32>
    %268 = vector.broadcast %267 : vector<40x1xf32> to vector<40x40xf32>
    %269 = arith.subf %265, %268 : vector<40x40xf32>
    %270 = math.exp %269 : vector<40x40xf32>
    %cst_90 = arith.constant dense<0.000000e+00> : vector<40xf32>
    %271 = vector.multi_reduction <add>, %270, %cst_90 [1] : vector<40x40xf32> to vector<40xf32>
    %272 = vector.shape_cast %271 : vector<40xf32> to vector<40x1xf32>
    %273 = tpu.reciprocal %272 {approx = true} : vector<40x1xf32> -> vector<40x1xf32>
    %274 = vector.broadcast %273 : vector<40x1xf32> to vector<40x40xf32>
    %275 = arith.mulf %270, %274 : vector<40x40xf32>
    %cst_91 = arith.constant dense<0.000000e+00> : vector<40x8xf32>
    %276 = tpu.matmul %275, %263, %cst_91 {dimension_numbers = #tpu.dot_dimension_numbers<[1], [0], [0], [1], [0, 0, 1, 1], [], []>} : vector<40x40xf32>, vector<40x8xf32>, vector<40x8xf32> -> vector<40x8xf32>
    %277 = vector.extract_strided_slice %258 {offsets = [0, 8], sizes = [40, 8], strides = [1, 1]} : vector<40x32xf32> to vector<40x8xf32>
    %278 = vector.extract_strided_slice %259 {offsets = [0, 8], sizes = [40, 8], strides = [1, 1]} : vector<40x32xf32> to vector<40x8xf32>
    %279 = vector.extract_strided_slice %260 {offsets = [0, 8], sizes = [40, 8], strides = [1, 1]} : vector<40x32xf32> to vector<40x8xf32>
    %cst_92 = arith.constant dense<0.000000e+00> : vector<40x40xf32>
    %280 = tpu.matmul %277, %278, %cst_92 {dimension_numbers = #tpu.dot_dimension_numbers<[1], [1], [0], [0], [0, 0, 1, 0], [], []>} : vector<40x8xf32>, vector<40x8xf32>, vector<40x40xf32> -> vector<40x40xf32>
    %281 = arith.addf %280, %40 : vector<40x40xf32>
    %cst_93 = arith.constant dense<0xFF800000> : vector<40xf32>
    %282 = vector.multi_reduction <maximumf>, %281, %cst_93 [1] : vector<40x40xf32> to vector<40xf32>
    %283 = vector.shape_cast %282 : vector<40xf32> to vector<40x1xf32>
    %284 = vector.broadcast %283 : vector<40x1xf32> to vector<40x40xf32>
    %285 = arith.subf %281, %284 : vector<40x40xf32>
    %286 = math.exp %285 : vector<40x40xf32>
    %cst_94 = arith.constant dense<0.000000e+00> : vector<40xf32>
    %287 = vector.multi_reduction <add>, %286, %cst_94 [1] : vector<40x40xf32> to vector<40xf32>
    %288 = vector.shape_cast %287 : vector<40xf32> to vector<40x1xf32>
    %289 = tpu.reciprocal %288 {approx = true} : vector<40x1xf32> -> vector<40x1xf32>
    %290 = vector.broadcast %289 : vector<40x1xf32> to vector<40x40xf32>
    %291 = arith.mulf %286, %290 : vector<40x40xf32>
    %cst_95 = arith.constant dense<0.000000e+00> : vector<40x8xf32>
    %292 = tpu.matmul %291, %279, %cst_95 {dimension_numbers = #tpu.dot_dimension_numbers<[1], [0], [0], [1], [0, 0, 1, 1], [], []>} : vector<40x40xf32>, vector<40x8xf32>, vector<40x8xf32> -> vector<40x8xf32>
    %293 = vector.extract_strided_slice %258 {offsets = [0, 16], sizes = [40, 8], strides = [1, 1]} : vector<40x32xf32> to vector<40x8xf32>
    %294 = vector.extract_strided_slice %259 {offsets = [0, 16], sizes = [40, 8], strides = [1, 1]} : vector<40x32xf32> to vector<40x8xf32>
    %295 = vector.extract_strided_slice %260 {offsets = [0, 16], sizes = [40, 8], strides = [1, 1]} : vector<40x32xf32> to vector<40x8xf32>
    %cst_96 = arith.constant dense<0.000000e+00> : vector<40x40xf32>
    %296 = tpu.matmul %293, %294, %cst_96 {dimension_numbers = #tpu.dot_dimension_numbers<[1], [1], [0], [0], [0, 0, 1, 0], [], []>} : vector<40x8xf32>, vector<40x8xf32>, vector<40x40xf32> -> vector<40x40xf32>
    %297 = arith.addf %296, %40 : vector<40x40xf32>
    %cst_97 = arith.constant dense<0xFF800000> : vector<40xf32>
    %298 = vector.multi_reduction <maximumf>, %297, %cst_97 [1] : vector<40x40xf32> to vector<40xf32>
    %299 = vector.shape_cast %298 : vector<40xf32> to vector<40x1xf32>
    %300 = vector.broadcast %299 : vector<40x1xf32> to vector<40x40xf32>
    %301 = arith.subf %297, %300 : vector<40x40xf32>
    %302 = math.exp %301 : vector<40x40xf32>
    %cst_98 = arith.constant dense<0.000000e+00> : vector<40xf32>
    %303 = vector.multi_reduction <add>, %302, %cst_98 [1] : vector<40x40xf32> to vector<40xf32>
    %304 = vector.shape_cast %303 : vector<40xf32> to vector<40x1xf32>
    %305 = tpu.reciprocal %304 {approx = true} : vector<40x1xf32> -> vector<40x1xf32>
    %306 = vector.broadcast %305 : vector<40x1xf32> to vector<40x40xf32>
    %307 = arith.mulf %302, %306 : vector<40x40xf32>
    %cst_99 = arith.constant dense<0.000000e+00> : vector<40x8xf32>
    %308 = tpu.matmul %307, %295, %cst_99 {dimension_numbers = #tpu.dot_dimension_numbers<[1], [0], [0], [1], [0, 0, 1, 1], [], []>} : vector<40x40xf32>, vector<40x8xf32>, vector<40x8xf32> -> vector<40x8xf32>
    %309 = vector.extract_strided_slice %258 {offsets = [0, 24], sizes = [40, 8], strides = [1, 1]} : vector<40x32xf32> to vector<40x8xf32>
    %310 = vector.extract_strided_slice %259 {offsets = [0, 24], sizes = [40, 8], strides = [1, 1]} : vector<40x32xf32> to vector<40x8xf32>
    %311 = vector.extract_strided_slice %260 {offsets = [0, 24], sizes = [40, 8], strides = [1, 1]} : vector<40x32xf32> to vector<40x8xf32>
    %cst_100 = arith.constant dense<0.000000e+00> : vector<40x40xf32>
    %312 = tpu.matmul %309, %310, %cst_100 {dimension_numbers = #tpu.dot_dimension_numbers<[1], [1], [0], [0], [0, 0, 1, 0], [], []>} : vector<40x8xf32>, vector<40x8xf32>, vector<40x40xf32> -> vector<40x40xf32>
    %313 = arith.addf %312, %40 : vector<40x40xf32>
    %cst_101 = arith.constant dense<0xFF800000> : vector<40xf32>
    %314 = vector.multi_reduction <maximumf>, %313, %cst_101 [1] : vector<40x40xf32> to vector<40xf32>
    %315 = vector.shape_cast %314 : vector<40xf32> to vector<40x1xf32>
    %316 = vector.broadcast %315 : vector<40x1xf32> to vector<40x40xf32>
    %317 = arith.subf %313, %316 : vector<40x40xf32>
    %318 = math.exp %317 : vector<40x40xf32>
    %cst_102 = arith.constant dense<0.000000e+00> : vector<40xf32>
    %319 = vector.multi_reduction <add>, %318, %cst_102 [1] : vector<40x40xf32> to vector<40xf32>
    %320 = vector.shape_cast %319 : vector<40xf32> to vector<40x1xf32>
    %321 = tpu.reciprocal %320 {approx = true} : vector<40x1xf32> -> vector<40x1xf32>
    %322 = vector.broadcast %321 : vector<40x1xf32> to vector<40x40xf32>
    %323 = arith.mulf %318, %322 : vector<40x40xf32>
    %cst_103 = arith.constant dense<0.000000e+00> : vector<40x8xf32>
    %324 = tpu.matmul %323, %311, %cst_103 {dimension_numbers = #tpu.dot_dimension_numbers<[1], [0], [0], [1], [0, 0, 1, 1], [], []>} : vector<40x40xf32>, vector<40x8xf32>, vector<40x8xf32> -> vector<40x8xf32>
    %325 = tpu.concatenate %276, %292, %308, %324 in 1 : vector<40x8xf32>, vector<40x8xf32>, vector<40x8xf32>, vector<40x8xf32> -> vector<40x32xf32>
    %c1_104 = arith.constant 1 : index
    %c0_105 = arith.constant 0 : index
    %c0_106 = arith.constant 0 : index
    %326 = vector.load %arg4[%c1_104, %c0_105, %c0_106] : memref<2x32x32xf32, #tpu.memory_space<vmem>>, vector<1x32x32xf32>
    %327 = vector.shape_cast %326 : vector<1x32x32xf32> to vector<32x32xf32>
    %cst_107 = arith.constant dense<0.000000e+00> : vector<40x32xf32>
    %328 = tpu.matmul %325, %327, %cst_107 {dimension_numbers = #tpu.dot_dimension_numbers<[1], [0], [0], [1], [0, 0, 1, 1], [], []>} : vector<40x32xf32>, vector<32x32xf32>, vector<40x32xf32> -> vector<40x32xf32>
    %c11 = arith.constant 11 : index
    %c0_108 = arith.constant 0 : index
    %329 = vector.load %arg8[%c11, %c0_108] : memref<25x128xf32, #tpu.memory_space<vmem>>, vector<1x32xf32>
    %330 = vector.broadcast %329 : vector<1x32xf32> to vector<40x32xf32>
    %331 = arith.addf %328, %330 : vector<40x32xf32>
    %332 = arith.addf %225, %331 : vector<40x32xf32>
    %c12 = arith.constant 12 : index
    %c0_109 = arith.constant 0 : index
    %333 = vector.load %arg8[%c12, %c0_109] : memref<25x128xf32, #tpu.memory_space<vmem>>, vector<1x32xf32>
    %c13 = arith.constant 13 : index
    %c0_110 = arith.constant 0 : index
    %334 = vector.load %arg8[%c13, %c0_110] : memref<25x128xf32, #tpu.memory_space<vmem>>, vector<1x32xf32>
    %cst_111 = arith.constant dense<0.000000e+00> : vector<40xf32>
    %335 = vector.multi_reduction <add>, %332, %cst_111 [1] : vector<40x32xf32> to vector<40xf32>
    %336 = vector.shape_cast %335 : vector<40xf32> to vector<40x1xf32>
    %cst_112 = arith.constant 3.200000e+01 : f32
    %337 = vector.broadcast %cst_112 : f32 to vector<40x1xf32>
    %338 = arith.divf %336, %337 : vector<40x1xf32>
    %339 = vector.broadcast %338 : vector<40x1xf32> to vector<40x32xf32>
    %340 = arith.subf %332, %339 : vector<40x32xf32>
    %341 = arith.mulf %340, %340 : vector<40x32xf32>
    %cst_113 = arith.constant dense<0.000000e+00> : vector<40xf32>
    %342 = vector.multi_reduction <add>, %341, %cst_113 [1] : vector<40x32xf32> to vector<40xf32>
    %343 = vector.shape_cast %342 : vector<40xf32> to vector<40x1xf32>
    %cst_114 = arith.constant 3.200000e+01 : f32
    %344 = vector.broadcast %cst_114 : f32 to vector<40x1xf32>
    %345 = arith.divf %343, %344 : vector<40x1xf32>
    %346 = vector.broadcast %338 : vector<40x1xf32> to vector<40x32xf32>
    %347 = arith.subf %332, %346 : vector<40x32xf32>
    %cst_115 = arith.constant 9.99999997E-7 : f32
    %348 = vector.broadcast %cst_115 : f32 to vector<40x1xf32>
    %349 = arith.addf %345, %348 : vector<40x1xf32>
    %350 = math.rsqrt %349 : vector<40x1xf32>
    %351 = vector.broadcast %350 : vector<40x1xf32> to vector<40x32xf32>
    %352 = arith.mulf %347, %351 : vector<40x32xf32>
    %353 = vector.broadcast %333 : vector<1x32xf32> to vector<40x32xf32>
    %354 = arith.mulf %352, %353 : vector<40x32xf32>
    %355 = vector.broadcast %334 : vector<1x32xf32> to vector<40x32xf32>
    %356 = arith.addf %354, %355 : vector<40x32xf32>
    %c1_116 = arith.constant 1 : index
    %c0_117 = arith.constant 0 : index
    %c0_118 = arith.constant 0 : index
    %357 = vector.load %arg5[%c1_116, %c0_117, %c0_118] : memref<2x32x64xf32, #tpu.memory_space<vmem>>, vector<1x32x64xf32>
    %358 = vector.shape_cast %357 : vector<1x32x64xf32> to vector<32x64xf32>
    %cst_119 = arith.constant dense<0.000000e+00> : vector<40x64xf32>
    %359 = tpu.matmul %356, %358, %cst_119 {dimension_numbers = #tpu.dot_dimension_numbers<[1], [0], [0], [1], [0, 0, 1, 1], [], []>} : vector<40x32xf32>, vector<32x64xf32>, vector<40x64xf32> -> vector<40x64xf32>
    %c14 = arith.constant 14 : index
    %c0_120 = arith.constant 0 : index
    %360 = vector.load %arg8[%c14, %c0_120] : memref<25x128xf32, #tpu.memory_space<vmem>>, vector<1x64xf32>
    %361 = vector.broadcast %360 : vector<1x64xf32> to vector<40x64xf32>
    %362 = arith.addf %359, %361 : vector<40x64xf32>
    %cst_121 = arith.constant 5.000000e-01 : f32
    %363 = vector.broadcast %cst_121 : f32 to vector<40x64xf32>
    %364 = arith.mulf %363, %362 : vector<40x64xf32>
    %cst_122 = arith.constant 0.707106769 : f32
    %365 = vector.broadcast %cst_122 : f32 to vector<40x64xf32>
    %366 = arith.mulf %362, %365 : vector<40x64xf32>
    %cst_123 = arith.constant 0.000000e+00 : f32
    %367 = vector.broadcast %cst_123 : f32 to vector<40x64xf32>
    %368 = arith.cmpf oge, %366, %367 : vector<40x64xf32>
    %cst_124 = arith.constant 1.000000e+00 : f32
    %cst_125 = arith.constant -1.000000e+00 : f32
    %369 = vector.broadcast %cst_124 : f32 to vector<40x64xf32>
    %370 = vector.broadcast %cst_125 : f32 to vector<40x64xf32>
    %371 = arith.select %368, %369, %370 : vector<40x64xi1>, vector<40x64xf32>
    %372 = math.absf %366 : vector<40x64xf32>
    %cst_126 = arith.constant 0.327591091 : f32
    %373 = vector.broadcast %cst_126 : f32 to vector<40x64xf32>
    %374 = arith.mulf %373, %372 : vector<40x64xf32>
    %cst_127 = arith.constant 1.000000e+00 : f32
    %375 = vector.broadcast %cst_127 : f32 to vector<40x64xf32>
    %376 = arith.addf %375, %374 : vector<40x64xf32>
    %cst_128 = arith.constant 1.000000e+00 : f32
    %377 = vector.broadcast %cst_128 : f32 to vector<40x64xf32>
    %378 = arith.divf %377, %376 : vector<40x64xf32>
    %cst_129 = arith.constant 1.06140542 : f32
    %379 = vector.broadcast %cst_129 : f32 to vector<40x64xf32>
    %380 = arith.mulf %379, %378 : vector<40x64xf32>
    %cst_130 = arith.constant -1.45315206 : f32
    %381 = vector.broadcast %cst_130 : f32 to vector<40x64xf32>
    %382 = arith.addf %380, %381 : vector<40x64xf32>
    %383 = arith.mulf %382, %378 : vector<40x64xf32>
    %cst_131 = arith.constant 1.42141378 : f32
    %384 = vector.broadcast %cst_131 : f32 to vector<40x64xf32>
    %385 = arith.addf %383, %384 : vector<40x64xf32>
    %386 = arith.mulf %385, %378 : vector<40x64xf32>
    %cst_132 = arith.constant -0.284496725 : f32
    %387 = vector.broadcast %cst_132 : f32 to vector<40x64xf32>
    %388 = arith.addf %386, %387 : vector<40x64xf32>
    %389 = arith.mulf %388, %378 : vector<40x64xf32>
    %cst_133 = arith.constant 0.254829586 : f32
    %390 = vector.broadcast %cst_133 : f32 to vector<40x64xf32>
    %391 = arith.addf %389, %390 : vector<40x64xf32>
    %392 = arith.mulf %391, %378 : vector<40x64xf32>
    %cst_134 = arith.constant 0.000000e+00 : f32
    %393 = vector.broadcast %cst_134 : f32 to vector<40x64xf32>
    %394 = arith.subf %393, %372 : vector<40x64xf32>
    %395 = arith.mulf %394, %372 : vector<40x64xf32>
    %396 = math.exp %395 : vector<40x64xf32>
    %397 = arith.mulf %392, %396 : vector<40x64xf32>
    %cst_135 = arith.constant 1.000000e+00 : f32
    %398 = vector.broadcast %cst_135 : f32 to vector<40x64xf32>
    %399 = arith.subf %398, %397 : vector<40x64xf32>
    %400 = arith.mulf %371, %399 : vector<40x64xf32>
    %cst_136 = arith.constant 1.000000e+00 : f32
    %401 = vector.broadcast %cst_136 : f32 to vector<40x64xf32>
    %402 = arith.addf %401, %400 : vector<40x64xf32>
    %403 = arith.mulf %364, %402 : vector<40x64xf32>
    %c1_137 = arith.constant 1 : index
    %c0_138 = arith.constant 0 : index
    %c0_139 = arith.constant 0 : index
    %404 = vector.load %arg6[%c1_137, %c0_138, %c0_139] : memref<2x64x32xf32, #tpu.memory_space<vmem>>, vector<1x64x32xf32>
    %405 = vector.shape_cast %404 : vector<1x64x32xf32> to vector<64x32xf32>
    %cst_140 = arith.constant dense<0.000000e+00> : vector<40x32xf32>
    %406 = tpu.matmul %403, %405, %cst_140 {dimension_numbers = #tpu.dot_dimension_numbers<[1], [0], [0], [1], [0, 0, 1, 1], [], []>} : vector<40x64xf32>, vector<64x32xf32>, vector<40x32xf32> -> vector<40x32xf32>
    %c15 = arith.constant 15 : index
    %c0_141 = arith.constant 0 : index
    %407 = vector.load %arg8[%c15, %c0_141] : memref<25x128xf32, #tpu.memory_space<vmem>>, vector<1x32xf32>
    %408 = vector.broadcast %407 : vector<1x32xf32> to vector<40x32xf32>
    %409 = arith.addf %406, %408 : vector<40x32xf32>
    %410 = arith.addf %332, %409 : vector<40x32xf32>
    %411 = vector.extract_strided_slice %410 {offsets = [0, 0], sizes = [1, 32], strides = [1, 1]} : vector<40x32xf32> to vector<1x32xf32>
    %412 = vector.extract_strided_slice %410 {offsets = [5, 0], sizes = [1, 32], strides = [1, 1]} : vector<40x32xf32> to vector<1x32xf32>
    %413 = vector.extract_strided_slice %410 {offsets = [10, 0], sizes = [1, 32], strides = [1, 1]} : vector<40x32xf32> to vector<1x32xf32>
    %414 = vector.extract_strided_slice %410 {offsets = [15, 0], sizes = [1, 32], strides = [1, 1]} : vector<40x32xf32> to vector<1x32xf32>
    %415 = vector.extract_strided_slice %410 {offsets = [20, 0], sizes = [1, 32], strides = [1, 1]} : vector<40x32xf32> to vector<1x32xf32>
    %416 = vector.extract_strided_slice %410 {offsets = [25, 0], sizes = [1, 32], strides = [1, 1]} : vector<40x32xf32> to vector<1x32xf32>
    %417 = vector.extract_strided_slice %410 {offsets = [30, 0], sizes = [1, 32], strides = [1, 1]} : vector<40x32xf32> to vector<1x32xf32>
    %418 = vector.extract_strided_slice %410 {offsets = [35, 0], sizes = [1, 32], strides = [1, 1]} : vector<40x32xf32> to vector<1x32xf32>
    %419 = tpu.concatenate %411, %412, %413, %414, %415, %416, %417, %418 in 0 : vector<1x32xf32>, vector<1x32xf32>, vector<1x32xf32>, vector<1x32xf32>, vector<1x32xf32>, vector<1x32xf32>, vector<1x32xf32>, vector<1x32xf32> -> vector<8x32xf32>
    %c17 = arith.constant 17 : index
    %c0_142 = arith.constant 0 : index
    %420 = vector.load %arg8[%c17, %c0_142] : memref<25x128xf32, #tpu.memory_space<vmem>>, vector<1x32xf32>
    %c18 = arith.constant 18 : index
    %c0_143 = arith.constant 0 : index
    %421 = vector.load %arg8[%c18, %c0_143] : memref<25x128xf32, #tpu.memory_space<vmem>>, vector<1x32xf32>
    %cst_144 = arith.constant dense<0.000000e+00> : vector<8xf32>
    %422 = vector.multi_reduction <add>, %419, %cst_144 [1] : vector<8x32xf32> to vector<8xf32>
    %423 = vector.shape_cast %422 : vector<8xf32> to vector<8x1xf32>
    %cst_145 = arith.constant 3.200000e+01 : f32
    %424 = vector.broadcast %cst_145 : f32 to vector<8x1xf32>
    %425 = arith.divf %423, %424 : vector<8x1xf32>
    %426 = vector.broadcast %425 : vector<8x1xf32> to vector<8x32xf32>
    %427 = arith.subf %419, %426 : vector<8x32xf32>
    %428 = arith.mulf %427, %427 : vector<8x32xf32>
    %cst_146 = arith.constant dense<0.000000e+00> : vector<8xf32>
    %429 = vector.multi_reduction <add>, %428, %cst_146 [1] : vector<8x32xf32> to vector<8xf32>
    %430 = vector.shape_cast %429 : vector<8xf32> to vector<8x1xf32>
    %cst_147 = arith.constant 3.200000e+01 : f32
    %431 = vector.broadcast %cst_147 : f32 to vector<8x1xf32>
    %432 = arith.divf %430, %431 : vector<8x1xf32>
    %433 = vector.broadcast %425 : vector<8x1xf32> to vector<8x32xf32>
    %434 = arith.subf %419, %433 : vector<8x32xf32>
    %cst_148 = arith.constant 9.99999997E-7 : f32
    %435 = vector.broadcast %cst_148 : f32 to vector<8x1xf32>
    %436 = arith.addf %432, %435 : vector<8x1xf32>
    %437 = math.rsqrt %436 : vector<8x1xf32>
    %438 = vector.broadcast %437 : vector<8x1xf32> to vector<8x32xf32>
    %439 = arith.mulf %434, %438 : vector<8x32xf32>
    %440 = vector.broadcast %420 : vector<1x32xf32> to vector<8x32xf32>
    %441 = arith.mulf %439, %440 : vector<8x32xf32>
    %442 = vector.broadcast %421 : vector<1x32xf32> to vector<8x32xf32>
    %443 = arith.addf %441, %442 : vector<8x32xf32>
    %c0_149 = arith.constant 0 : index
    %c0_150 = arith.constant 0 : index
    %444 = vector.load %arg7[%c0_149, %c0_150] : memref<32x128xf32, #tpu.memory_space<vmem>>, vector<32x128xf32>
    %cst_151 = arith.constant dense<0.000000e+00> : vector<8x128xf32>
    %445 = tpu.matmul %443, %444, %cst_151 {dimension_numbers = #tpu.dot_dimension_numbers<[1], [0], [0], [1], [0, 0, 1, 1], [], []>} : vector<8x32xf32>, vector<32x128xf32>, vector<8x128xf32> -> vector<8x128xf32>
    %c19 = arith.constant 19 : index
    %c0_152 = arith.constant 0 : index
    %446 = vector.load %arg8[%c19, %c0_152] : memref<25x128xf32, #tpu.memory_space<vmem>>, vector<1x128xf32>
    %447 = vector.broadcast %446 : vector<1x128xf32> to vector<8x128xf32>
    %448 = arith.addf %445, %447 : vector<8x128xf32>
    %c0_153 = arith.constant 0 : index
    %c0_154 = arith.constant 0 : index
    %449 = vector.load %arg10[%c0_153, %c0_154] : memref<8x128xf32, #tpu.memory_space<vmem>>, vector<8x128xf32>
    tpu.vector_store %arg10[%c0_153, %c0_154], %448 {strides = array<i32>} : memref<8x128xf32, #tpu.memory_space<vmem>>, vector<8x128xf32>,
    return
  }
  func.func @transform_0(%arg0: i32) -> (i32, i32) {
    %c0_i32 = arith.constant 0 : i32
    %c0_i32_0 = arith.constant 0 : i32
    return %arg0, %c0_i32 : i32, i32
  }
  func.func @transform_1(%arg0: i32) -> (i32, i32) {
    %c0_i32 = arith.constant 0 : i32
    %c0_i32_0 = arith.constant 0 : i32
    %c0_i32_1 = arith.constant 0 : i32
    return %c0_i32, %c0_i32_0 : i32, i32
  }
  func.func @transform_2(%arg0: i32) -> (i32, i32, i32) {
    %c0_i32 = arith.constant 0 : i32
    %c0_i32_0 = arith.constant 0 : i32
    %c0_i32_1 = arith.constant 0 : i32
    %c0_i32_2 = arith.constant 0 : i32
    return %c0_i32, %c0_i32_0, %c0_i32_1 : i32, i32, i32
  }
  func.func @transform_3(%arg0: i32) -> (i32, i32, i32) {
    %c0_i32 = arith.constant 0 : i32
    %c0_i32_0 = arith.constant 0 : i32
    %c0_i32_1 = arith.constant 0 : i32
    %c0_i32_2 = arith.constant 0 : i32
    return %c0_i32, %c0_i32_0, %c0_i32_1 : i32, i32, i32
  }
  func.func @transform_4(%arg0: i32) -> (i32, i32, i32) {
    %c0_i32 = arith.constant 0 : i32
    %c0_i32_0 = arith.constant 0 : i32
    %c0_i32_1 = arith.constant 0 : i32
    %c0_i32_2 = arith.constant 0 : i32
    return %c0_i32, %c0_i32_0, %c0_i32_1 : i32, i32, i32
  }
  func.func @transform_5(%arg0: i32) -> (i32, i32, i32) {
    %c0_i32 = arith.constant 0 : i32
    %c0_i32_0 = arith.constant 0 : i32
    %c0_i32_1 = arith.constant 0 : i32
    %c0_i32_2 = arith.constant 0 : i32
    return %c0_i32, %c0_i32_0, %c0_i32_1 : i32, i32, i32
  }
  func.func @transform_6(%arg0: i32) -> (i32, i32) {
    %c0_i32 = arith.constant 0 : i32
    %c0_i32_0 = arith.constant 0 : i32
    %c0_i32_1 = arith.constant 0 : i32
    return %c0_i32, %c0_i32_0 : i32, i32
  }
  func.func @transform_7(%arg0: i32) -> (i32, i32) {
    %c0_i32 = arith.constant 0 : i32
    %c0_i32_0 = arith.constant 0 : i32
    %c0_i32_1 = arith.constant 0 : i32
    return %c0_i32, %c0_i32_0 : i32, i32
  }
  func.func @transform_8(%arg0: i32) -> (i32, i32) {
    %c0_i32 = arith.constant 0 : i32
    %c0_i32_0 = arith.constant 0 : i32
    %c0_i32_1 = arith.constant 0 : i32
    return %c0_i32, %c0_i32_0 : i32, i32
  }
  func.func @transform_9(%arg0: i32) -> (i32, i32) {
    %c0_i32 = arith.constant 0 : i32
    %c0_i32_0 = arith.constant 0 : i32
    return %arg0, %c0_i32 : i32, i32
  }
}

</mosaic_0001>

<llo_original>
// kernel: vit_forward.1
$region0: #{vit_forward.1}
  #allocation0 [shape = 'u32[]', space=smem, size = 0x4, offset = 0x4, fixed_abs, tag = 'smem constant byte address 0x4 - core index']
  #allocation1 [shape = 'u32[72,128]{1,0:T(1,128)}', space=vmem, size = 0x9000, scoped, tag = 'internal scratch']
  %s0 = inlined_call_operand.vmem [shape: f32[64,3072], index: 0, kind: input, shape index: {}]
  %s1 = inlined_call_operand.vmem [shape: f32[3072,32], index: 1, kind: input, shape index: {}]
  %s2 = inlined_call_operand.vmem [shape: f32[2,32,96], index: 2, kind: input, shape index: {}]
  %s3 = inlined_call_operand.vmem [shape: f32[2,32,32], index: 3, kind: input, shape index: {}]
  %s4 = inlined_call_operand.vmem [shape: f32[2,32,64], index: 4, kind: input, shape index: {}]
  %s5 = inlined_call_operand.vmem [shape: f32[2,64,32], index: 5, kind: input, shape index: {}]
  %s6 = inlined_call_operand.vmem [shape: f32[32,128], index: 6, kind: input, shape index: {}]
  %s7 = inlined_call_operand.vmem [shape: f32[25,128], index: 7, kind: input, shape index: {}]
  %s8 = inlined_call_operand.vmem [shape: f32[40,40], index: 8, kind: input, shape index: {}]
  %s9 = inlined_call_operand.hbm [shape: f32[16,128], index: 9, kind: output, shape index: {}]
  %s10 = sld [smem:[#allocation0]]
  $region69: #{vit_forward.1} parent=0
    _
  %s12 = ssub.s32 1, %s10
  %s13 = scalar_select 0, %s12, %s10
  $region1: #{vit_forward.1} parent=0
    #allocation2 [shape = 'u8[8192]{0}', space=vmem, size = 0x2000, scoped, tag = 'output window, operand 0']
    #allocation3 [shape = 's32[2]{0}', space=sflag, size = 0x8, scoped, tag = 'scoped memory for vit_forward.1']
    %14 = vsyncpa [#allocation3], 0
    %s15 = scalar_lea.sflag [#allocation3], 1
    %16 = vsyncpa %s15, 0
    loop: start=0, step=1, limit=4
    $region2: #{vit_forward.1} parent=1 // loop_pre_header
      _
    $region3: #{vit_forward.1} parent=1 // loop_header
      %s18 = sphi 0, %s22
      %p19 = scmp.ge.s32.totalorder %s18, 4
      %s28 = sphi 0, %s30
      %s31 = sphi 0, %s28
      %s32 = sphi 0, %s31
      %s48 = sphi 0, %s32
      %s52 = sphi 0, %s52
      %s54 = sphi 0, %s52
      %s55 = sphi 0, %s54
      %s69 = sphi 0, %s55
      %s73 = sphi 0, %s73
      %s75 = sphi 0, %s73
      %s76 = sphi 0, %s75
      %s90 = sphi 0, %s76
      %s94 = sphi 0, %s94
      %s96 = sphi 0, %s94
      %s97 = sphi 0, %s96
      %s111 = sphi 0, %s97
      %s115 = sphi 0, %s115
      %s117 = sphi 0, %s115
      %s118 = sphi 0, %s117
      %s132 = sphi 0, %s118
      %s136 = sphi 0, %s136
      %s138 = sphi 0, %s136
      %s139 = sphi 0, %s138
      %s153 = sphi 0, %s139
      %s157 = sphi 0, %s157
      %s159 = sphi 0, %s157
      %s160 = sphi 0, %s159
      %s174 = sphi 0, %s160
      %s178 = sphi 0, %s178
      %s180 = sphi 0, %s178
      %s181 = sphi 0, %s180
      %s195 = sphi 0, %s181
      %s199 = sphi 0, %s199
      %s201 = sphi 0, %s199
      %s202 = sphi 0, %s201
      %s216 = sphi 0, %s202
      %s222 = sphi 0, %s224
      %s225 = sphi 0, %s222
      %s226 = sphi 0, %s225
      %s242 = sphi 0, %s226
    $region4: #{vit_forward.1} parent=1 // loop_header_branch
      %21 = sbr.rel (%p19) target = $region8
    $region5: #{vit_forward.1} parent=1 // loop_body
      %s23 = ssub.s32 %s18, 1
      %s24 = ssub.s32 %s18, 2
      %s25 = sadd.s32 %s18, 1
      %s26 = ssub.s32 %s18, %s25
      %p27 = scmp.eq.s32.totalorder %s26, 0
      %s29 = sadd.s32 %s28, 1
      %s30 = scalar_select %p27, %s28, %s29
      %p33 = pneg %p27
      %p34 = scmp.eq.s32.totalorder %s18, 1
      %p35 = por %p33, %p34
      %p36 = scmp.ne.s32.totalorder %s28, %s31
      %p37 = scmp.eq.s32.totalorder %s18, 0
      %p38 = por %p36, %p37
      %p39 = scmp.ne.s32.totalorder %s28, %s31
      %p40 = scmp.eq.s32.totalorder %s23, 1
      %p41 = por %p39, %p40
      %p42 = scmp.ne.s32.totalorder %s31, %s32
      %p43 = scmp.eq.s32.totalorder %s23, 0
      %p44 = por %p42, %p43
      %p45 = scmp.ne.s32.totalorder %s31, %s32
      %p46 = scmp.eq.s32.totalorder %s24, 1
      %p47 = por %p45, %p46
      %p49 = scmp.ne.s32.totalorder %s32, %s48
      %p50 = scmp.eq.s32.totalorder %s24, 0
      %p51 = por %p49, %p50
      %s53 = sadd.s32 %s52, 1
      %p56 = scmp.eq.s32.totalorder %s18, 1
      %p57 = scmp.ne.s32.totalorder %s52, %s54
      %p58 = scmp.eq.s32.totalorder %s18, 0
      %p59 = por %p57, %p58
      %p60 = scmp.ne.s32.totalorder %s52, %s54
      %p61 = scmp.eq.s32.totalorder %s23, 1
      %p62 = por %p60, %p61
      %p63 = scmp.ne.s32.totalorder %s54, %s55
      %p64 = scmp.eq.s32.totalorder %s23, 0
      %p65 = por %p63, %p64
      %p66 = scmp.ne.s32.totalorder %s54, %s55
      %p67 = scmp.eq.s32.totalorder %s24, 1
      %p68 = por %p66, %p67
      %p70 = scmp.ne.s32.totalorder %s55, %s69
      %p71 = scmp.eq.s32.totalorder %s24, 0
      %p72 = por %p70, %p71
      %s74 = sadd.s32 %s73, 1
      %p77 = scmp.eq.s32.totalorder %s18, 1
      %p78 = scmp.ne.s32.totalorder %s73, %s75
      %p79 = scmp.eq.s32.totalorder %s18, 0
      %p80 = por %p78, %p79
      %p81 = scmp.ne.s32.totalorder %s73, %s75
      %p82 = scmp.eq.s32.totalorder %s23, 1
      %p83 = por %p81, %p82
      %p84 = scmp.ne.s32.totalorder %s75, %s76
      %p85 = scmp.eq.s32.totalorder %s23, 0
      %p86 = por %p84, %p85
      %p87 = scmp.ne.s32.totalorder %s75, %s76
      %p88 = scmp.eq.s32.totalorder %s24, 1
      %p89 = por %p87, %p88
      %p91 = scmp.ne.s32.totalorder %s76, %s90
      %p92 = scmp.eq.s32.totalorder %s24, 0
      %p93 = por %p91, %p92
      %s95 = sadd.s32 %s94, 1
      %p98 = scmp.eq.s32.totalorder %s18, 1
      %p99 = scmp.ne.s32.totalorder %s94, %s96
      %p100 = scmp.eq.s32.totalorder %s18, 0
      %p101 = por %p99, %p100
      %p102 = scmp.ne.s32.totalorder %s94, %s96
      %p103 = scmp.eq.s32.totalorder %s23, 1
      %p104 = por %p102, %p103
      %p105 = scmp.ne.s32.totalorder %s96, %s97
      %p106 = scmp.eq.s32.totalorder %s23, 0
      %p107 = por %p105, %p106
      %p108 = scmp.ne.s32.totalorder %s96, %s97
      %p109 = scmp.eq.s32.totalorder %s24, 1
      %p110 = por %p108, %p109
      %p112 = scmp.ne.s32.totalorder %s97, %s111
      %p113 = scmp.eq.s32.totalorder %s24, 0
      %p114 = por %p112, %p113
      %s116 = sadd.s32 %s115, 1
      %p119 = scmp.eq.s32.totalorder %s18, 1
      %p120 = scmp.ne.s32.totalorder %s115, %s117
      %p121 = scmp.eq.s32.totalorder %s18, 0
      %p122 = por %p120, %p121
      %p123 = scmp.ne.s32.totalorder %s115, %s117
      %p124 = scmp.eq.s32.totalorder %s23, 1
      %p125 = por %p123, %p124
      %p126 = scmp.ne.s32.totalorder %s117, %s118
      %p127 = scmp.eq.s32.totalorder %s23, 0
      %p128 = por %p126, %p127
      %p129 = scmp.ne.s32.totalorder %s117, %s118
      %p130 = scmp.eq.s32.totalorder %s24, 1
      %p131 = por %p129, %p130
      %p133 = scmp.ne.s32.totalorder %s118, %s132
      %p134 = scmp.eq.s32.totalorder %s24, 0
      %p135 = por %p133, %p134
      %s137 = sadd.s32 %s136, 1
      %p140 = scmp.eq.s32.totalorder %s18, 1
      %p141 = scmp.ne.s32.totalorder %s136, %s138
      %p142 = scmp.eq.s32.totalorder %s18, 0
      %p143 = por %p141, %p142
      %p144 = scmp.ne.s32.totalorder %s136, %s138
      %p145 = scmp.eq.s32.totalorder %s23, 1
      %p146 = por %p144, %p145
      %p147 = scmp.ne.s32.totalorder %s138, %s139
      %p148 = scmp.eq.s32.totalorder %s23, 0
      %p149 = por %p147, %p148
      %p150 = scmp.ne.s32.totalorder %s138, %s139
      %p151 = scmp.eq.s32.totalorder %s24, 1
      %p152 = por %p150, %p151
      %p154 = scmp.ne.s32.totalorder %s139, %s153
      %p155 = scmp.eq.s32.totalorder %s24, 0
      %p156 = por %p154, %p155
      %s158 = sadd.s32 %s157, 1
      %p161 = scmp.eq.s32.totalorder %s18, 1
      %p162 = scmp.ne.s32.totalorder %s157, %s159
      %p163 = scmp.eq.s32.totalorder %s18, 0
      %p164 = por %p162, %p163
      %p165 = scmp.ne.s32.totalorder %s157, %s159
      %p166 = scmp.eq.s32.totalorder %s23, 1
      %p167 = por %p165, %p166
      %p168 = scmp.ne.s32.totalorder %s159, %s160
      %p169 = scmp.eq.s32.totalorder %s23, 0
      %p170 = por %p168, %p169
      %p171 = scmp.ne.s32.totalorder %s159, %s160
      %p172 = scmp.eq.s32.totalorder %s24, 1
      %p173 = por %p171, %p172
      %p175 = scmp.ne.s32.totalorder %s160, %s174
      %p176 = scmp.eq.s32.totalorder %s24, 0
      %p177 = por %p175, %p176
      %s179 = sadd.s32 %s178, 1
      %p182 = scmp.eq.s32.totalorder %s18, 1
      %p183 = scmp.ne.s32.totalorder %s178, %s180
      %p184 = scmp.eq.s32.totalorder %s18, 0
      %p185 = por %p183, %p184
      %p186 = scmp.ne.s32.totalorder %s178, %s180
      %p187 = scmp.eq.s32.totalorder %s23, 1
      %p188 = por %p186, %p187
      %p189 = scmp.ne.s32.totalorder %s180, %s181
      %p190 = scmp.eq.s32.totalorder %s23, 0
      %p191 = por %p189, %p190
      %p192 = scmp.ne.s32.totalorder %s180, %s181
      %p193 = scmp.eq.s32.totalorder %s24, 1
      %p194 = por %p192, %p193
      %p196 = scmp.ne.s32.totalorder %s181, %s195
      %p197 = scmp.eq.s32.totalorder %s24, 0
      %p198 = por %p196, %p197
      %s200 = sadd.s32 %s199, 1
      %p203 = scmp.eq.s32.totalorder %s18, 1
      %p204 = scmp.ne.s32.totalorder %s199, %s201
      %p205 = scmp.eq.s32.totalorder %s18, 0
      %p206 = por %p204, %p205
      %p207 = scmp.ne.s32.totalorder %s199, %s201
      %p208 = scmp.eq.s32.totalorder %s23, 1
      %p209 = por %p207, %p208
      %p210 = scmp.ne.s32.totalorder %s201, %s202
      %p211 = scmp.eq.s32.totalorder %s23, 0
      %p212 = por %p210, %p211
      %p213 = scmp.ne.s32.totalorder %s201, %s202
      %p214 = scmp.eq.s32.totalorder %s24, 1
      %p215 = por %p213, %p214
      %p217 = scmp.ne.s32.totalorder %s202, %s216
      %p218 = scmp.eq.s32.totalorder %s24, 0
      %p219 = por %p217, %p218
      %s220 = ssub.s32 %s18, %s25
      %p221 = scmp.eq.s32.totalorder %s220, 0
      %s223 = sadd.s32 %s222, 1
      %s224 = scalar_select %p221, %s222, %s223
      %p227 = pneg %p221
      %p228 = scmp.eq.s32.totalorder %s18, 1
      %p229 = por %p227, %p228
      %p230 = scmp.ne.s32.totalorder %s222, %s225
      %p231 = scmp.eq.s32.totalorder %s18, 0
      %p232 = por %p230, %p231
      %p233 = scmp.ne.s32.totalorder %s222, %s225
      %p234 = scmp.eq.s32.totalorder %s23, 1
      %p235 = por %p233, %p234
      %p236 = scmp.ne.s32.totalorder %s225, %s226
      %p237 = scmp.eq.s32.totalorder %s23, 0
      %p238 = por %p236, %p237
      %p239 = scmp.ne.s32.totalorder %s225, %s226
      %p240 = scmp.eq.s32.totalorder %s24, 1
      %p241 = por %p239, %p240
      %p243 = scmp.ne.s32.totalorder %s226, %s242
      %p244 = scmp.eq.s32.totalorder %s24, 0
      %p245 = por %p243, %p244
      %p246 = scmp.le.s32.totalorder 1, %s18
      %p247 = scmp.lt.s32.totalorder %s18, 3
      %p248 = pnand %p246, %p247
      %p249 = pneg %p248
      // Predicated region
      $region9: #{vit_forward.1} parent=5 // pred_check
        _
      $region10: #{vit_forward.1} parent=5 // pred_check_branch
        %251 = sbr.rel (%p248) target = $region12
      $region11: #{vit_forward.1} parent=5 // pred_region
        %s252 = ssub.s32 %s18, 1
        // Predicated region
        $region13: #{vit_forward.1} parent=11 // pred_check
          %p253 = pneg %p65
        $region14: #{vit_forward.1} parent=11 // pred_check_branch
          %255 = sbr.rel (%p253) target = $region16
        $region15: #{vit_forward.1} parent=11 // pred_region
          _
        $region16: #{vit_forward.1} parent=11 // pred_fallthru
          _
        // Predicated region
        $region17: #{vit_forward.1} parent=11 // pred_check
          %p256 = pneg %p86
        $region18: #{vit_forward.1} parent=11 // pred_check_branch
          %258 = sbr.rel (%p256) target = $region20
        $region19: #{vit_forward.1} parent=11 // pred_region
          _
        $region20: #{vit_forward.1} parent=11 // pred_fallthru
          _
        // Predicated region
        $region21: #{vit_forward.1} parent=11 // pred_check
          %p259 = pneg %p107
        $region22: #{vit_forward.1} parent=11 // pred_check_branch
          %261 = sbr.rel (%p259) target = $region24
        $region23: #{vit_forward.1} parent=11 // pred_region
          _
        $region24: #{vit_forward.1} parent=11 // pred_fallthru
          _
        // Predicated region
        $region25: #{vit_forward.1} parent=11 // pred_check
          %p262 = pneg %p128
        $region26: #{vit_forward.1} parent=11 // pred_check_branch
          %264 = sbr.rel (%p262) target = $region28
        $region27: #{vit_forward.1} parent=11 // pred_region
          _
        $region28: #{vit_forward.1} parent=11 // pred_fallthru
          _
        // Predicated region
        $region29: #{vit_forward.1} parent=11 // pred_check
          %p265 = pneg %p149
        $region30: #{vit_forward.1} parent=11 // pred_check_branch
          %267 = sbr.rel (%p265) target = $region32
        $region31: #{vit_forward.1} parent=11 // pred_region
          _
        $region32: #{vit_forward.1} parent=11 // pred_fallthru
          _
        // Predicated region
        $region33: #{vit_forward.1} parent=11 // pred_check
          %p268 = pneg %p170
        $region34: #{vit_forward.1} parent=11 // pred_check_branch
          %270 = sbr.rel (%p268) target = $region36
        $region35: #{vit_forward.1} parent=11 // pred_region
          _
        $region36: #{vit_forward.1} parent=11 // pred_fallthru
          _
        // Predicated region
        $region37: #{vit_forward.1} parent=11 // pred_check
          %p271 = pneg %p191
        $region38: #{vit_forward.1} parent=11 // pred_check_branch
          %273 = sbr.rel (%p271) target = $region40
        $region39: #{vit_forward.1} parent=11 // pred_region
          _
        $region40: #{vit_forward.1} parent=11 // pred_fallthru
          _
        // Predicated region
        $region41: #{vit_forward.1} parent=11 // pred_check
          %p274 = pneg %p212
        $region42: #{vit_forward.1} parent=11 // pred_check_branch
          %276 = sbr.rel (%p274) target = $region44
        $region43: #{vit_forward.1} parent=11 // pred_region
          _
        $region44: #{vit_forward.1} parent=11 // pred_fallthru
          _
      $region12: #{vit_forward.1} parent=5 // pred_fallthru
        _
      %p277 = scmp.lt.s32.totalorder %s18, 2
      // Predicated region
      $region45: #{vit_forward.1} parent=5 // pred_check
        %p278 = pneg %p277
      $region46: #{vit_forward.1} parent=5 // pred_check_branch
        %280 = sbr.rel (%p278) target = $region48
      $region47: #{vit_forward.1} parent=5 // pred_region
        // Predicated region
        $region49: #{vit_forward.1} parent=47 // pred_check
          %p281 = pneg %p38
        $region50: #{vit_forward.1} parent=47 // pred_check_branch
          %283 = sbr.rel (%p281) target = $region52
        $region51: #{vit_forward.1} parent=47 // pred_region
          %s284 = smul.u32 4, %s18
          %p285 = scmp.lt.s32.totalorder %s284, 7
          %s286 = scalar_select %p285, %s284, 7
          %s287 = smul.addr %s286, 24
          %s288 = smul.addr %s287, 8
          %s289 = scalar_lea.vmem %s0, %s288
          %s290 = smul.u32 4, %s18
        $region52: #{vit_forward.1} parent=47 // pred_fallthru
          _
      $region48: #{vit_forward.1} parent=5 // pred_fallthru
        _
      %p291 = scmp.le.s32.totalorder 1, %s18
      %p292 = scmp.lt.s32.totalorder %s18, 3
      %p293 = pnand %p291, %p292
      %p294 = pneg %p293
      // Predicated region
      $region53: #{vit_forward.1} parent=5 // pred_check
        _
      $region54: #{vit_forward.1} parent=5 // pred_check_branch
        %296 = sbr.rel (%p293) target = $region56
      $region55: #{vit_forward.1} parent=5 // pred_region
        %s297 = ssub.s32 %s18, 1
        %s298 = smul.u32 4, %s23
        %p299 = scmp.lt.s32.totalorder %s298, 7
        %s300 = scalar_select %p299, %s298, 7
        %s301 = smul.addr %s300, 24
        %s302 = smul.addr %s301, 8
        %s303 = scalar_lea.vmem %s0, %s302
        %p304 = pneg %p44
        %p305 = pneg %p41
        %p306 = pneg %p65
        %p307 = pneg %p62
        %p308 = pneg %p86
        %p309 = pneg %p83
        %p310 = pneg %p107
        %p311 = pneg %p104
        %p312 = pneg %p128
        %p313 = pneg %p125
        %p314 = pneg %p149
        %p315 = pneg %p146
        %p316 = pneg %p170
        %p317 = pneg %p167
        %p318 = pneg %p191
        %p319 = pneg %p188
        %p320 = pneg %p212
        %p321 = pneg %p209
        %p322 = pneg %p238
        %p323 = pneg %p235
        %s324 = sand.u32 %s225, 1
        %s325 = scalar_lea.sflag [#allocation3], %s324
        %s326 = sand.u32 %s225, 1
        %s327 = smul.addr %s326, 8
        %s328 = scalar_lea.vmem [#allocation2], %s327
        %s329 = smul.u32 4, %s23
        %p330 = scmp.lt.s32.totalorder %s329, 7
        %s331 = scalar_select %p330, %s329, 7
        %s332 = smul.addr %s331, 24
        %s333 = smul.addr %s332, 8
        %s334 = scalar_lea.vmem %s0, %s333
        %s335 = smul.u32 4, %s23
        %v336 = vld [vmem:[%s334] sm:$0xff]
        %v337 = vld [vmem:[%s334 + $0x8] sm:$0xff]
        %v338 = vld [vmem:[%s334 + $0x10] sm:$0xff]
        %v339 = vld [vmem:[%s334 + $0x18] sm:$0xff]
        %v340 = vld [vmem:[%s334 + $0x20] sm:$0xff]
        %v341 = vld [vmem:[%s334 + $0x28] sm:$0xff]
        %v342 = vld [vmem:[%s334 + $0x30] sm:$0xff]
        %v343 = vld [vmem:[%s334 + $0x38] sm:$0xff]
        %v344 = vld [vmem:[%s334 + $0x40] sm:$0xff]
        %v345 = vld [vmem:[%s334 + $0x48] sm:$0xff]
        %v346 = vld [vmem:[%s334 + $0x50] sm:$0xff]
        %v347 = vld [vmem:[%s334 + $0x58] sm:$0xff]
        %v348 = vld [vmem:[%s334 + $0x60] sm:$0xff]
        %v349 = vld [vmem:[%s334 + $0x68] sm:$0xff]
        %v350 = vld [vmem:[%s334 + $0x70] sm:$0xff]
        %v351 = vld [vmem:[%s334 + $0x78] sm:$0xff]
        %v352 = vld [vmem:[%s334 + $0x80] sm:$0xff]
        %v353 = vld [vmem:[%s334 + $0x88] sm:$0xff]
        %v354 = vld [vmem:[%s334 + $0x90] sm:$0xff]
        %v355 = vld [vmem:[%s334 + $0x98] sm:$0xff]
        %v356 = vld [vmem:[%s334 + $0xa0] sm:$0xff]
        %v357 = vld [vmem:[%s334 + $0xa8] sm:$0xff]
        %v358 = vld [vmem:[%s334 + $0xb0] sm:$0xff]
        %v359 = vld [vmem:[%s334 + $0xb8] sm:$0xff]
        %v360 = vld [vmem:[%s334 + $0xc0] sm:$0xff]
        %v361 = vld [vmem:[%s334 + $0xc8] sm:$0xff]
        %v362 = vld [vmem:[%s334 + $0xd0] sm:$0xff]
        %v363 = vld [vmem:[%s334 + $0xd8] sm:$0xff]
        %v364 = vld [vmem:[%s334 + $0xe0] sm:$0xff]
        %v365 = vld [vmem:[%s334 + $0xe8] sm:$0xff]
        %v366 = vld [vmem:[%s334 + $0xf0] sm:$0xff]
        %v367 = vld [vmem:[%s334 + $0xf8] sm:$0xff]
        %v368 = vld [vmem:[%s334 + $0x100] sm:$0xff]
        %v369 = vld [vmem:[%s334 + $0x108] sm:$0xff]
        %v370 = vld [vmem:[%s334 + $0x110] sm:$0xff]
        %v371 = vld [vmem:[%s334 + $0x118] sm:$0xff]
        %v372 = vld [vmem:[%s334 + $0x120] sm:$0xff]
        %v373 = vld [vmem:[%s334 + $0x128] sm:$0xff]
        %v374 = vld [vmem:[%s334 + $0x130] sm:$0xff]
        %v375 = vld [vmem:[%s334 + $0x138] sm:$0xff]
        %v376 = vld [vmem:[%s334 + $0x140] sm:$0xff]
        %v377 = vld [vmem:[%s334 + $0x148] sm:$0xff]
        %v378 = vld [vmem:[%s334 + $0x150] sm:$0xff]
        %v379 = vld [vmem:[%s334 + $0x158] sm:$0xff]
        %v380 = vld [vmem:[%s334 + $0x160] sm:$0xff]
        %v381 = vld [vmem:[%s334 + $0x168] sm:$0xff]
        %v382 = vld [vmem:[%s334 + $0x170] sm:$0xff]
        %v383 = vld [vmem:[%s334 + $0x178] sm:$0xff]
        %v384 = vld [vmem:[%s334 + $0x180] sm:$0xff]
        %v385 = vld [vmem:[%s334 + $0x188] sm:$0xff]
        %v386 = vld [vmem:[%s334 + $0x190] sm:$0xff]
        %v387 = vld [vmem:[%s334 + $0x198] sm:$0xff]
        %v388 = vld [vmem:[%s334 + $0x1a0] sm:$0xff]
        %v389 = vld [vmem:[%s334 + $0x1a8] sm:$0xff]
        %v390 = vld [vmem:[%s334 + $0x1b0] sm:$0xff]
        %v391 = vld [vmem:[%s334 + $0x1b8] sm:$0xff]
        %v392 = vld [vmem:[%s334 + $0x1c0] sm:$0xff]
        %v393 = vld [vmem:[%s334 + $0x1c8] sm:$0xff]
        %v394 = vld [vmem:[%s334 + $0x1d0] sm:$0xff]
        %v395 = vld [vmem:[%s334 + $0x1d8] sm:$0xff]
        %v396 = vld [vmem:[%s334 + $0x1e0] sm:$0xff]
        %v397 = vld [vmem:[%s334 + $0x1e8] sm:$0xff]
        %v398 = vld [vmem:[%s334 + $0x1f0] sm:$0xff]
        %v399 = vld [vmem:[%s334 + $0x1f8] sm:$0xff]
        %v400 = vld [vmem:[%s334 + $0x200] sm:$0xff]
        %v401 = vld [vmem:[%s334 + $0x208] sm:$0xff]
        %v402 = vld [vmem:[%s334 + $0x210] sm:$0xff]
        %v403 = vld [vmem:[%s334 + $0x218] sm:$0xff]
        %v404 = vld [vmem:[%s334 + $0x220] sm:$0xff]
        %v405 = vld [vmem:[%s334 + $0x228] sm:$0xff]
        %v406 = vld [vmem:[%s334 + $0x230] sm:$0xff]
        %v407 = vld [vmem:[%s334 + $0x238] sm:$0xff]
        %v408 = vld [vmem:[%s334 + $0x240] sm:$0xff]
        %v409 = vld [vmem:[%s334 + $0x248] sm:$0xff]
        %v410 = vld [vmem:[%s334 + $0x250] sm:$0xff]
        %v411 = vld [vmem:[%s334 + $0x258] sm:$0xff]
        %v412 = vld [vmem:[%s334 + $0x260] sm:$0xff]
        %v413 = vld [vmem:[%s334 + $0x268] sm:$0xff]
        %v414 = vld [vmem:[%s334 + $0x270] sm:$0xff]
        %v415 = vld [vmem:[%s334 + $0x278] sm:$0xff]
        %v416 = vld [vmem:[%s334 + $0x280] sm:$0xff]
        %v417 = vld [vmem:[%s334 + $0x288] sm:$0xff]
        %v418 = vld [vmem:[%s334 + $0x290] sm:$0xff]
        %v419 = vld [vmem:[%s334 + $0x298] sm:$0xff]
        %v420 = vld [vmem:[%s334 + $0x2a0] sm:$0xff]
        %v421 = vld [vmem:[%s334 + $0x2a8] sm:$0xff]
        %v422 = vld [vmem:[%s334 + $0x2b0] sm:$0xff]
        %v423 = vld [vmem:[%s334 + $0x2b8] sm:$0xff]
        %v424 = vld [vmem:[%s334 + $0x2c0] sm:$0xff]
        %v425 = vld [vmem:[%s334 + $0x2c8] sm:$0xff]
        %v426 = vld [vmem:[%s334 + $0x2d0] sm:$0xff]
        %v427 = vld [vmem:[%s334 + $0x2d8] sm:$0xff]
        %v428 = vld [vmem:[%s334 + $0x2e0] sm:$0xff]
        %v429 = vld [vmem:[%s334 + $0x2e8] sm:$0xff]
        %v430 = vld [vmem:[%s334 + $0x2f0] sm:$0xff]
        %v431 = vld [vmem:[%s334 + $0x2f8] sm:$0xff]
        %v432 = vld [vmem:[%s1] sm:$0xff]
        %v433 = vld [vmem:[%s1 + $0x8] sm:$0xff]
        %v434 = vld [vmem:[%s1 + $0x10] sm:$0xff]
        %v435 = vld [vmem:[%s1 + $0x18] sm:$0xff]
        %v436 = vld [vmem:[%s1 + $0x20] sm:$0xff]
        %v437 = vld [vmem:[%s1 + $0x28] sm:$0xff]
        %v438 = vld [vmem:[%s1 + $0x30] sm:$0xff]
        %v439 = vld [vmem:[%s1 + $0x38] sm:$0xff]
        %v440 = vld [vmem:[%s1 + $0x40] sm:$0xff]
        %v441 = vld [vmem:[%s1 + $0x48] sm:$0xff]
        %v442 = vld [vmem:[%s1 + $0x50] sm:$0xff]
        %v443 = vld [vmem:[%s1 + $0x58] sm:$0xff]
        %v444 = vld [vmem:[%s1 + $0x60] sm:$0xff]
        %v445 = vld [vmem:[%s1 + $0x68] sm:$0xff]
        %v446 = vld [vmem:[%s1 + $0x70] sm:$0xff]
        %v447 = vld [vmem:[%s1 + $0x78] sm:$0xff]
        %v448 = vld [vmem:[%s1 + $0x80] sm:$0xff]
        %v449 = vld [vmem:[%s1 + $0x88] sm:$0xff]
        %v450 = vld [vmem:[%s1 + $0x90] sm:$0xff]
        %v451 = vld [vmem:[%s1 + $0x98] sm:$0xff]
        %v452 = vld [vmem:[%s1 + $0xa0] sm:$0xff]
        %v453 = vld [vmem:[%s1 + $0xa8] sm:$0xff]
        %v454 = vld [vmem:[%s1 + $0xb0] sm:$0xff]
        %v455 = vld [vmem:[%s1 + $0xb8] sm:$0xff]
        %v456 = vld [vmem:[%s1 + $0xc0] sm:$0xff]
        %v457 = vld [vmem:[%s1 + $0xc8] sm:$0xff]
        %v458 = vld [vmem:[%s1 + $0xd0] sm:$0xff]
        %v459 = vld [vmem:[%s1 + $0xd8] sm:$0xff]
        %v460 = vld [vmem:[%s1 + $0xe0] sm:$0xff]
        %v461 = vld [vmem:[%s1 + $0xe8] sm:$0xff]
        %v462 = vld [vmem:[%s1 + $0xf0] sm:$0xff]
        %v463 = vld [vmem:[%s1 + $0xf8] sm:$0xff]
        %v464 = vld [vmem:[%s1 + $0x100] sm:$0xff]
        %v465 = vld [vmem:[%s1 + $0x108] sm:$0xff]
        %v466 = vld [vmem:[%s1 + $0x110] sm:$0xff]
        %v467 = vld [vmem:[%s1 + $0x118] sm:$0xff]
        %v468 = vld [vmem:[%s1 + $0x120] sm:$0xff]
        %v469 = vld [vmem:[%s1 + $0x128] sm:$0xff]
        %v470 = vld [vmem:[%s1 + $0x130] sm:$0xff]
        %v471 = vld [vmem:[%s1 + $0x138] sm:$0xff]
        %v472 = vld [vmem:[%s1 + $0x140] sm:$0xff]
        %v473 = vld [vmem:[%s1 + $0x148] sm:$0xff]
        %v474 = vld [vmem:[%s1 + $0x150] sm:$0xff]
        %v475 = vld [vmem:[%s1 + $0x158] sm:$0xff]
        %v476 = vld [vmem:[%s1 + $0x160] sm:$0xff]
        %v477 = vld [vmem:[%s1 + $0x168] sm:$0xff]
        %v478 = vld [vmem:[%s1 + $0x170] sm:$0xff]
        %v479 = vld [vmem:[%s1 + $0x178] sm:$0xff]
        %v480 = vld [vmem:[%s1 + $0x180] sm:$0xff]
        %v481 = vld [vmem:[%s1 + $0x188] sm:$0xff]
        %v482 = vld [vmem:[%s1 + $0x190] sm:$0xff]
        %v483 = vld [vmem:[%s1 + $0x198] sm:$0xff]
        %v484 = vld [vmem:[%s1 + $0x1a0] sm:$0xff]
        %v485 = vld [vmem:[%s1 + $0x1a8] sm:$0xff]
        %v486 = vld [vmem:[%s1 + $0x1b0] sm:$0xff]
        %v487 = vld [vmem:[%s1 + $0x1b8] sm:$0xff]
        %v488 = vld [vmem:[%s1 + $0x1c0] sm:$0xff]
        %v489 = vld [vmem:[%s1 + $0x1c8] sm:$0xff]
        %v490 = vld [vmem:[%s1 + $0x1d0] sm:$0xff]
        %v491 = vld [vmem:[%s1 + $0x1d8] sm:$0xff]
        %v492 = vld [vmem:[%s1 + $0x1e0] sm:$0xff]
        %v493 = vld [vmem:[%s1 + $0x1e8] sm:$0xff]
        %v494 = vld [vmem:[%s1 + $0x1f0] sm:$0xff]
        %v495 = vld [vmem:[%s1 + $0x1f8] sm:$0xff]
        %v496 = vld [vmem:[%s1 + $0x200] sm:$0xff]
        %v497 = vld [vmem:[%s1 + $0x208] sm:$0xff]
        %v498 = vld [vmem:[%s1 + $0x210] sm:$0xff]
        %v499 = vld [vmem:[%s1 + $0x218] sm:$0xff]
        %v500 = vld [vmem:[%s1 + $0x220] sm:$0xff]
        %v501 = vld [vmem:[%s1 + $0x228] sm:$0xff]
        %v502 = vld [vmem:[%s1 + $0x230] sm:$0xff]
        %v503 = vld [vmem:[%s1 + $0x238] sm:$0xff]
        %v504 = vld [vmem:[%s1 + $0x240] sm:$0xff]
        %v505 = vld [vmem:[%s1 + $0x248] sm:$0xff]
        %v506 = vld [vmem:[%s1 + $0x250] sm:$0xff]
        %v507 = vld [vmem:[%s1 + $0x258] sm:$0xff]
        %v508 = vld [vmem:[%s1 + $0x260] sm:$0xff]
        %v509 = vld [vmem:[%s1 + $0x268] sm:$0xff]
        %v510 = vld [vmem:[%s1 + $0x270] sm:$0xff]
        %v511 = vld [vmem:[%s1 + $0x278] sm:$0xff]
        %v512 = vld [vmem:[%s1 + $0x280] sm:$0xff]
        %v513 = vld [vmem:[%s1 + $0x288] sm:$0xff]
        %v514 = vld [vmem:[%s1 + $0x290] sm:$0xff]
        %v515 = vld [vmem:[%s1 + $0x298] sm:$0xff]
        %v516 = vld [vmem:[%s1 + $0x2a0] sm:$0xff]
        %v517 = vld [vmem:[%s1 + $0x2a8] sm:$0xff]
        %v518 = vld [vmem:[%s1 + $0x2b0] sm:$0xff]
        %v519 = vld [vmem:[%s1 + $0x2b8] sm:$0xff]
        %v520 = vld [vmem:[%s1 + $0x2c0] sm:$0xff]
        %v521 = vld [vmem:[%s1 + $0x2c8] sm:$0xff]
        %v522 = vld [vmem:[%s1 + $0x2d0] sm:$0xff]
        %v523 = vld [vmem:[%s1 + $0x2d8] sm:$0xff]
        %v524 = vld [vmem:[%s1 + $0x2e0] sm:$0xff]
        %v525 = vld [vmem:[%s1 + $0x2e8] sm:$0xff]
        %v526 = vld [vmem:[%s1 + $0x2f0] sm:$0xff]
        %v527 = vld [vmem:[%s1 + $0x2f8] sm:$0xff]
        %v528 = vld [vmem:[%s1 + $0x300] sm:$0xff]
        %v529 = vld [vmem:[%s1 + $0x308] sm:$0xff]
        %v530 = vld [vmem:[%s1 + $0x310] sm:$0xff]
        %v531 = vld [vmem:[%s1 + $0x318] sm:$0xff]
        %v532 = vld [vmem:[%s1 + $0x320] sm:$0xff]
        %v533 = vld [vmem:[%s1 + $0x328] sm:$0xff]
        %v534 = vld [vmem:[%s1 + $0x330] sm:$0xff]
        %v535 = vld [vmem:[%s1 + $0x338] sm:$0xff]
        %v536 = vld [vmem:[%s1 + $0x340] sm:$0xff]
        %v537 = vld [vmem:[%s1 + $0x348] sm:$0xff]
        %v538 = vld [vmem:[%s1 + $0x350] sm:$0xff]
        %v539 = vld [vmem:[%s1 + $0x358] sm:$0xff]
        %v540 = vld [vmem:[%s1 + $0x360] sm:$0xff]
        %v541 = vld [vmem:[%s1 + $0x368] sm:$0xff]
        %v542 = vld [vmem:[%s1 + $0x370] sm:$0xff]
        %v543 = vld [vmem:[%s1 + $0x378] sm:$0xff]
        %v544 = vld [vmem:[%s1 + $0x380] sm:$0xff]
        %v545 = vld [vmem:[%s1 + $0x388] sm:$0xff]
        %v546 = vld [vmem:[%s1 + $0x390] sm:$0xff]
        %v547 = vld [vmem:[%s1 + $0x398] sm:$0xff]
        %v548 = vld [vmem:[%s1 + $0x3a0] sm:$0xff]
        %v549 = vld [vmem:[%s1 + $0x3a8] sm:$0xff]
        %v550 = vld [vmem:[%s1 + $0x3b0] sm:$0xff]
        %v551 = vld [vmem:[%s1 + $0x3b8] sm:$0xff]
        %v552 = vld [vmem:[%s1 + $0x3c0] sm:$0xff]
        %v553 = vld [vmem:[%s1 + $0x3c8] sm:$0xff]
        %v554 = vld [vmem:[%s1 + $0x3d0] sm:$0xff]
        %v555 = vld [vmem:[%s1 + $0x3d8] sm:$0xff]
        %v556 = vld [vmem:[%s1 + $0x3e0] sm:$0xff]
        %v557 = vld [vmem:[%s1 + $0x3e8] sm:$0xff]
        %v558 = vld [vmem:[%s1 + $0x3f0] sm:$0xff]
        %v559 = vld [vmem:[%s1 + $0x3f8] sm:$0xff]
        %v560 = vld [vmem:[%s1 + $0x400] sm:$0xff]
        %v561 = vld [vmem:[%s1 + $0x408] sm:$0xff]
        %v562 = vld [vmem:[%s1 + $0x410] sm:$0xff]
        %v563 = vld [vmem:[%s1 + $0x418] sm:$0xff]
        %v564 = vld [vmem:[%s1 + $0x420] sm:$0xff]
        %v565 = vld [vmem:[%s1 + $0x428] sm:$0xff]
        %v566 = vld [vmem:[%s1 + $0x430] sm:$0xff]
        %v567 = vld [vmem:[%s1 + $0x438] sm:$0xff]
        %v568 = vld [vmem:[%s1 + $0x440] sm:$0xff]
        %v569 = vld [vmem:[%s1 + $0x448] sm:$0xff]
        %v570 = vld [vmem:[%s1 + $0x450] sm:$0xff]
        %v571 = vld [vmem:[%s1 + $0x458] sm:$0xff]
        %v572 = vld [vmem:[%s1 + $0x460] sm:$0xff]
        %v573 = vld [vmem:[%s1 + $0x468] sm:$0xff]
        %v574 = vld [vmem:[%s1 + $0x470] sm:$0xff]
        %v575 = vld [vmem:[%s1 + $0x478] sm:$0xff]
        %v576 = vld [vmem:[%s1 + $0x480] sm:$0xff]
        %v577 = vld [vmem:[%s1 + $0x488] sm:$0xff]
        %v578 = vld [vmem:[%s1 + $0x490] sm:$0xff]
        %v579 = vld [vmem:[%s1 + $0x498] sm:$0xff]
        %v580 = vld [vmem:[%s1 + $0x4a0] sm:$0xff]
        %v581 = vld [vmem:[%s1 + $0x4a8] sm:$0xff]
        %v582 = vld [vmem:[%s1 + $0x4b0] sm:$0xff]
        %v583 = vld [vmem:[%s1 + $0x4b8] sm:$0xff]
        %v584 = vld [vmem:[%s1 + $0x4c0] sm:$0xff]
        %v585 = vld [vmem:[%s1 + $0x4c8] sm:$0xff]
        %v586 = vld [vmem:[%s1 + $0x4d0] sm:$0xff]
        %v587 = vld [vmem:[%s1 + $0x4d8] sm:$0xff]
        %v588 = vld [vmem:[%s1 + $0x4e0] sm:$0xff]
        %v589 = vld [vmem:[%s1 + $0x4e8] sm:$0xff]
        %v590 = vld [vmem:[%s1 + $0x4f0] sm:$0xff]
        %v591 = vld [vmem:[%s1 + $0x4f8] sm:$0xff]
        %v592 = vld [vmem:[%s1 + $0x500] sm:$0xff]
        %v593 = vld [vmem:[%s1 + $0x508] sm:$0xff]
        %v594 = vld [vmem:[%s1 + $0x510] sm:$0xff]
        %v595 = vld [vmem:[%s1 + $0x518] sm:$0xff]
        %v596 = vld [vmem:[%s1 + $0x520] sm:$0xff]
        %v597 = vld [vmem:[%s1 + $0x528] sm:$0xff]
        %v598 = vld [vmem:[%s1 + $0x530] sm:$0xff]
        %v599 = vld [vmem:[%s1 + $0x538] sm:$0xff]
        %v600 = vld [vmem:[%s1 + $0x540] sm:$0xff]
        %v601 = vld [vmem:[%s1 + $0x548] sm:$0xff]
        %v602 = vld [vmem:[%s1 + $0x550] sm:$0xff]
        %v603 = vld [vmem:[%s1 + $0x558] sm:$0xff]
        %v604 = vld [vmem:[%s1 + $0x560] sm:$0xff]
        %v605 = vld [vmem:[%s1 + $0x568] sm:$0xff]
        %v606 = vld [vmem:[%s1 + $0x570] sm:$0xff]
        %v607 = vld [vmem:[%s1 + $0x578] sm:$0xff]
        %v608 = vld [vmem:[%s1 + $0x580] sm:$0xff]
        %v609 = vld [vmem:[%s1 + $0x588] sm:$0xff]
        %v610 = vld [vmem:[%s1 + $0x590] sm:$0xff]
        %v611 = vld [vmem:[%s1 + $0x598] sm:$0xff]
        %v612 = vld [vmem:[%s1 + $0x5a0] sm:$0xff]
        %v613 = vld [vmem:[%s1 + $0x5a8] sm:$0xff]
        %v614 = vld [vmem:[%s1 + $0x5b0] sm:$0xff]
        %v615 = vld [vmem:[%s1 + $0x5b8] sm:$0xff]
        %v616 = vld [vmem:[%s1 + $0x5c0] sm:$0xff]
        %v617 = vld [vmem:[%s1 + $0x5c8] sm:$0xff]
        %v618 = vld [vmem:[%s1 + $0x5d0] sm:$0xff]
        %v619 = vld [vmem:[%s1 + $0x5d8] sm:$0xff]
        %v620 = vld [vmem:[%s1 + $0x5e0] sm:$0xff]
        %v621 = vld [vmem:[%s1 + $0x5e8] sm:$0xff]
        %v622 = vld [vmem:[%s1 + $0x5f0] sm:$0xff]
        %v623 = vld [vmem:[%s1 + $0x5f8] sm:$0xff]
        %v624 = vld [vmem:[%s1 + $0x600] sm:$0xff]
        %v625 = vld [vmem:[%s1 + $0x608] sm:$0xff]
        %v626 = vld [vmem:[%s1 + $0x610] sm:$0xff]
        %v627 = vld [vmem:[%s1 + $0x618] sm:$0xff]
        %v628 = vld [vmem:[%s1 + $0x620] sm:$0xff]
        %v629 = vld [vmem:[%s1 + $0x628] sm:$0xff]
        %v630 = vld [vmem:[%s1 + $0x630] sm:$0xff]
        %v631 = vld [vmem:[%s1 + $0x638] sm:$0xff]
        %v632 = vld [vmem:[%s1 + $0x640] sm:$0xff]
        %v633 = vld [vmem:[%s1 + $0x648] sm:$0xff]
        %v634 = vld [vmem:[%s1 + $0x650] sm:$0xff]
        %v635 = vld [vmem:[%s1 + $0x658] sm:$0xff]
        %v636 = vld [vmem:[%s1 + $0x660] sm:$0xff]
        %v637 = vld [vmem:[%s1 + $0x668] sm:$0xff]
        %v638 = vld [vmem:[%s1 + $0x670] sm:$0xff]
        %v639 = vld [vmem:[%s1 + $0x678] sm:$0xff]
        %v640 = vld [vmem:[%s1 + $0x680] sm:$0xff]
        %v641 = vld [vmem:[%s1 + $0x688] sm:$0xff]
        %v642 = vld [vmem:[%s1 + $0x690] sm:$0xff]
        %v643 = vld [vmem:[%s1 + $0x698] sm:$0xff]
        %v644 = vld [vmem:[%s1 + $0x6a0] sm:$0xff]
        %v645 = vld [vmem:[%s1 + $0x6a8] sm:$0xff]
        %v646 = vld [vmem:[%s1 + $0x6b0] sm:$0xff]
        %v647 = vld [vmem:[%s1 + $0x6b8] sm:$0xff]
        %v648 = vld [vmem:[%s1 + $0x6c0] sm:$0xff]
        %v649 = vld [vmem:[%s1 + $0x6c8] sm:$0xff]
        %v650 = vld [vmem:[%s1 + $0x6d0] sm:$0xff]
        %v651 = vld [vmem:[%s1 + $0x6d8] sm:$0xff]
        %v652 = vld [vmem:[%s1 + $0x6e0] sm:$0xff]
        %v653 = vld [vmem:[%s1 + $0x6e8] sm:$0xff]
        %v654 = vld [vmem:[%s1 + $0x6f0] sm:$0xff]
        %v655 = vld [vmem:[%s1 + $0x6f8] sm:$0xff]
        %v656 = vld [vmem:[%s1 + $0x700] sm:$0xff]
        %v657 = vld [vmem:[%s1 + $0x708] sm:$0xff]
        %v658 = vld [vmem:[%s1 + $0x710] sm:$0xff]
        %v659 = vld [vmem:[%s1 + $0x718] sm:$0xff]
        %v660 = vld [vmem:[%s1 + $0x720] sm:$0xff]
        %v661 = vld [vmem:[%s1 + $0x728] sm:$0xff]
        %v662 = vld [vmem:[%s1 + $0x730] sm:$0xff]
        %v663 = vld [vmem:[%s1 + $0x738] sm:$0xff]
        %v664 = vld [vmem:[%s1 + $0x740] sm:$0xff]
        %v665 = vld [vmem:[%s1 + $0x748] sm:$0xff]
        %v666 = vld [vmem:[%s1 + $0x750] sm:$0xff]
        %v667 = vld [vmem:[%s1 + $0x758] sm:$0xff]
        %v668 = vld [vmem:[%s1 + $0x760] sm:$0xff]
        %v669 = vld [vmem:[%s1 + $0x768] sm:$0xff]
        %v670 = vld [vmem:[%s1 + $0x770] sm:$0xff]
        %v671 = vld [vmem:[%s1 + $0x778] sm:$0xff]
        %v672 = vld [vmem:[%s1 + $0x780] sm:$0xff]
        %v673 = vld [vmem:[%s1 + $0x788] sm:$0xff]
        %v674 = vld [vmem:[%s1 + $0x790] sm:$0xff]
        %v675 = vld [vmem:[%s1 + $0x798] sm:$0xff]
        %v676 = vld [vmem:[%s1 + $0x7a0] sm:$0xff]
        %v677 = vld [vmem:[%s1 + $0x7a8] sm:$0xff]
        %v678 = vld [vmem:[%s1 + $0x7b0] sm:$0xff]
        %v679 = vld [vmem:[%s1 + $0x7b8] sm:$0xff]
        %v680 = vld [vmem:[%s1 + $0x7c0] sm:$0xff]
        %v681 = vld [vmem:[%s1 + $0x7c8] sm:$0xff]
        %v682 = vld [vmem:[%s1 + $0x7d0] sm:$0xff]
        %v683 = vld [vmem:[%s1 + $0x7d8] sm:$0xff]
        %v684 = vld [vmem:[%s1 + $0x7e0] sm:$0xff]
        %v685 = vld [vmem:[%s1 + $0x7e8] sm:$0xff]
        %v686 = vld [vmem:[%s1 + $0x7f0] sm:$0xff]
        %v687 = vld [vmem:[%s1 + $0x7f8] sm:$0xff]
        %v688 = vld [vmem:[%s1 + $0x800] sm:$0xff]
        %v689 = vld [vmem:[%s1 + $0x808] sm:$0xff]
        %v690 = vld [vmem:[%s1 + $0x810] sm:$0xff]
        %v691 = vld [vmem:[%s1 + $0x818] sm:$0xff]
        %v692 = vld [vmem:[%s1 + $0x820] sm:$0xff]
        %v693 = vld [vmem:[%s1 + $0x828] sm:$0xff]
        %v694 = vld [vmem:[%s1 + $0x830] sm:$0xff]
        %v695 = vld [vmem:[%s1 + $0x838] sm:$0xff]
        %v696 = vld [vmem:[%s1 + $0x840] sm:$0xff]
        %v697 = vld [vmem:[%s1 + $0x848] sm:$0xff]
        %v698 = vld [vmem:[%s1 + $0x850] sm:$0xff]
        %v699 = vld [vmem:[%s1 + $0x858] sm:$0xff]
        %v700 = vld [vmem:[%s1 + $0x860] sm:$0xff]
        %v701 = vld [vmem:[%s1 + $0x868] sm:$0xff]
        %v702 = vld [vmem:[%s1 + $0x870] sm:$0xff]
        %v703 = vld [vmem:[%s1 + $0x878] sm:$0xff]
        %v704 = vld [vmem:[%s1 + $0x880] sm:$0xff]
        %v705 = vld [vmem:[%s1 + $0x888] sm:$0xff]
        %v706 = vld [vmem:[%s1 + $0x890] sm:$0xff]
        %v707 = vld [vmem:[%s1 + $0x898] sm:$0xff]
        %v708 = vld [vmem:[%s1 + $0x8a0] sm:$0xff]
        %v709 = vld [vmem:[%s1 + $0x8a8] sm:$0xff]
        %v710 = vld [vmem:[%s1 + $0x8b0] sm:$0xff]
        %v711 = vld [vmem:[%s1 + $0x8b8] sm:$0xff]
        %v712 = vld [vmem:[%s1 + $0x8c0] sm:$0xff]
        %v713 = vld [vmem:[%s1 + $0x8c8] sm:$0xff]
        %v714 = vld [vmem:[%s1 + $0x8d0] sm:$0xff]
        %v715 = vld [vmem:[%s1 + $0x8d8] sm:$0xff]
        %v716 = vld [vmem:[%s1 + $0x8e0] sm:$0xff]
        %v717 = vld [vmem:[%s1 + $0x8e8] sm:$0xff]
        %v718 = vld [vmem:[%s1 + $0x8f0] sm:$0xff]
        %v719 = vld [vmem:[%s1 + $0x8f8] sm:$0xff]
        %v720 = vld [vmem:[%s1 + $0x900] sm:$0xff]
        %v721 = vld [vmem:[%s1 + $0x908] sm:$0xff]
        %v722 = vld [vmem:[%s1 + $0x910] sm:$0xff]
        %v723 = vld [vmem:[%s1 + $0x918] sm:$0xff]
        %v724 = vld [vmem:[%s1 + $0x920] sm:$0xff]
        %v725 = vld [vmem:[%s1 + $0x928] sm:$0xff]
        %v726 = vld [vmem:[%s1 + $0x930] sm:$0xff]
        %v727 = vld [vmem:[%s1 + $0x938] sm:$0xff]
        %v728 = vld [vmem:[%s1 + $0x940] sm:$0xff]
        %v729 = vld [vmem:[%s1 + $0x948] sm:$0xff]
        %v730 = vld [vmem:[%s1 + $0x950] sm:$0xff]
        %v731 = vld [vmem:[%s1 + $0x958] sm:$0xff]
        %v732 = vld [vmem:[%s1 + $0x960] sm:$0xff]
        %v733 = vld [vmem:[%s1 + $0x968] sm:$0xff]
        %v734 = vld [vmem:[%s1 + $0x970] sm:$0xff]
        %v735 = vld [vmem:[%s1 + $0x978] sm:$0xff]
        %v736 = vld [vmem:[%s1 + $0x980] sm:$0xff]
        %v737 = vld [vmem:[%s1 + $0x988] sm:$0xff]
        %v738 = vld [vmem:[%s1 + $0x990] sm:$0xff]
        %v739 = vld [vmem:[%s1 + $0x998] sm:$0xff]
        %v740 = vld [vmem:[%s1 + $0x9a0] sm:$0xff]
        %v741 = vld [vmem:[%s1 + $0x9a8] sm:$0xff]
        %v742 = vld [vmem:[%s1 + $0x9b0] sm:$0xff]
        %v743 = vld [vmem:[%s1 + $0x9b8] sm:$0xff]
        %v744 = vld [vmem:[%s1 + $0x9c0] sm:$0xff]
        %v745 = vld [vmem:[%s1 + $0x9c8] sm:$0xff]
        %v746 = vld [vmem:[%s1 + $0x9d0] sm:$0xff]
        %v747 = vld [vmem:[%s1 + $0x9d8] sm:$0xff]
        %v748 = vld [vmem:[%s1 + $0x9e0] sm:$0xff]
        %v749 = vld [vmem:[%s1 + $0x9e8] sm:$0xff]
        %v750 = vld [vmem:[%s1 + $0x9f0] sm:$0xff]
        %v751 = vld [vmem:[%s1 + $0x9f8] sm:$0xff]
        %v752 = vld [vmem:[%s1 + $0xa00] sm:$0xff]
        %v753 = vld [vmem:[%s1 + $0xa08] sm:$0xff]
        %v754 = vld [vmem:[%s1 + $0xa10] sm:$0xff]
        %v755 = vld [vmem:[%s1 + $0xa18] sm:$0xff]
        %v756 = vld [vmem:[%s1 + $0xa20] sm:$0xff]
        %v757 = vld [vmem:[%s1 + $0xa28] sm:$0xff]
        %v758 = vld [vmem:[%s1 + $0xa30] sm:$0xff]
        %v759 = vld [vmem:[%s1 + $0xa38] sm:$0xff]
        %v760 = vld [vmem:[%s1 + $0xa40] sm:$0xff]
        %v761 = vld [vmem:[%s1 + $0xa48] sm:$0xff]
        %v762 = vld [vmem:[%s1 + $0xa50] sm:$0xff]
        %v763 = vld [vmem:[%s1 + $0xa58] sm:$0xff]
        %v764 = vld [vmem:[%s1 + $0xa60] sm:$0xff]
        %v765 = vld [vmem:[%s1 + $0xa68] sm:$0xff]
        %v766 = vld [vmem:[%s1 + $0xa70] sm:$0xff]
        %v767 = vld [vmem:[%s1 + $0xa78] sm:$0xff]
        %v768 = vld [vmem:[%s1 + $0xa80] sm:$0xff]
        %v769 = vld [vmem:[%s1 + $0xa88] sm:$0xff]
        %v770 = vld [vmem:[%s1 + $0xa90] sm:$0xff]
        %v771 = vld [vmem:[%s1 + $0xa98] sm:$0xff]
        %v772 = vld [vmem:[%s1 + $0xaa0] sm:$0xff]
        %v773 = vld [vmem:[%s1 + $0xaa8] sm:$0xff]
        %v774 = vld [vmem:[%s1 + $0xab0] sm:$0xff]
        %v775 = vld [vmem:[%s1 + $0xab8] sm:$0xff]
        %v776 = vld [vmem:[%s1 + $0xac0] sm:$0xff]
        %v777 = vld [vmem:[%s1 + $0xac8] sm:$0xff]
        %v778 = vld [vmem:[%s1 + $0xad0] sm:$0xff]
        %v779 = vld [vmem:[%s1 + $0xad8] sm:$0xff]
        %v780 = vld [vmem:[%s1 + $0xae0] sm:$0xff]
        %v781 = vld [vmem:[%s1 + $0xae8] sm:$0xff]
        %v782 = vld [vmem:[%s1 + $0xaf0] sm:$0xff]
        %v783 = vld [vmem:[%s1 + $0xaf8] sm:$0xff]
        %v784 = vld [vmem:[%s1 + $0xb00] sm:$0xff]
        %v785 = vld [vmem:[%s1 + $0xb08] sm:$0xff]
        %v786 = vld [vmem:[%s1 + $0xb10] sm:$0xff]
        %v787 = vld [vmem:[%s1 + $0xb18] sm:$0xff]
        %v788 = vld [vmem:[%s1 + $0xb20] sm:$0xff]
        %v789 = vld [vmem:[%s1 + $0xb28] sm:$0xff]
        %v790 = vld [vmem:[%s1 + $0xb30] sm:$0xff]
        %v791 = vld [vmem:[%s1 + $0xb38] sm:$0xff]
        %v792 = vld [vmem:[%s1 + $0xb40] sm:$0xff]
        %v793 = vld [vmem:[%s1 + $0xb48] sm:$0xff]
        %v794 = vld [vmem:[%s1 + $0xb50] sm:$0xff]
        %v795 = vld [vmem:[%s1 + $0xb58] sm:$0xff]
        %v796 = vld [vmem:[%s1 + $0xb60] sm:$0xff]
        %v797 = vld [vmem:[%s1 + $0xb68] sm:$0xff]
        %v798 = vld [vmem:[%s1 + $0xb70] sm:$0xff]
        %v799 = vld [vmem:[%s1 + $0xb78] sm:$0xff]
        %v800 = vld [vmem:[%s1 + $0xb80] sm:$0xff]
        %v801 = vld [vmem:[%s1 + $0xb88] sm:$0xff]
        %v802 = vld [vmem:[%s1 + $0xb90] sm:$0xff]
        %v803 = vld [vmem:[%s1 + $0xb98] sm:$0xff]
        %v804 = vld [vmem:[%s1 + $0xba0] sm:$0xff]
        %v805 = vld [vmem:[%s1 + $0xba8] sm:$0xff]
        %v806 = vld [vmem:[%s1 + $0xbb0] sm:$0xff]
        %v807 = vld [vmem:[%s1 + $0xbb8] sm:$0xff]
        %v808 = vld [vmem:[%s1 + $0xbc0] sm:$0xff]
        %v809 = vld [vmem:[%s1 + $0xbc8] sm:$0xff]
        %v810 = vld [vmem:[%s1 + $0xbd0] sm:$0xff]
        %v811 = vld [vmem:[%s1 + $0xbd8] sm:$0xff]
        %v812 = vld [vmem:[%s1 + $0xbe0] sm:$0xff]
        %v813 = vld [vmem:[%s1 + $0xbe8] sm:$0xff]
        %v814 = vld [vmem:[%s1 + $0xbf0] sm:$0xff]
        %v815 = vld [vmem:[%s1 + $0xbf8] sm:$0xff]
        %v816 = vld [vmem:[%s7 + $0x10] sm:$0x1]
        %v817 = vperm.slane %v816, 0
        %818 = vmatpush.msra.mxu0 %v447
        %819 = vmatpush.msra.mxu0 %v446
        %820 = vmatpush.msra.mxu0 %v445
        %821 = vmatpush.msra.mxu0 %v444
        %822 = vmatpush.msra.mxu0 %v443
        %823 = vmatpush.msra.mxu0 %v442
        %824 = vmatpush.msra.mxu0 %v441
        %825 = vmatpush.msra.mxu0 %v440
        %826 = vmatpush.msra.mxu0 %v439
        %827 = vmatpush.msra.mxu0 %v438
        %828 = vmatpush.msra.mxu0 %v437
        %829 = vmatpush.msra.mxu0 %v436
        %830 = vmatpush.msra.mxu0 %v435
        %831 = vmatpush.msra.mxu0 %v434
        %832 = vmatpush.msra.mxu0 %v433
        %833 = vmatpush.msra.mxu0 %v432
        %834 = vmatmul.f32.gmra.mxu0 %v336
        %v835 = vpop.f32.mrf.mxu0
        %v836 = vadd.f32 %v817, %v835
        %837 = vmatmul.f32.gmra.mxu0 %v360
        %v838 = vpop.f32.mrf.mxu0
        %v839 = vadd.f32 %v817, %v838
        %840 = vmatmul.f32.gmra.mxu0 %v384
        %v841 = vpop.f32.mrf.mxu0
        %v842 = vadd.f32 %v817, %v841
        %843 = vmatmul.f32.gmra.mxu0 %v408
        %v844 = vpop.f32.mrf.mxu0
        %v845 = vadd.f32 %v817, %v844
        %846 = vdwg.mxu0
        %847 = vmatpush.msra.mxu0 %v463
        %848 = vmatpush.msra.mxu0 %v462
        %849 = vmatpush.msra.mxu0 %v461
        %850 = vmatpush.msra.mxu0 %v460
        %851 = vmatpush.msra.mxu0 %v459
        %852 = vmatpush.msra.mxu0 %v458
        %853 = vmatpush.msra.mxu0 %v457
        %854 = vmatpush.msra.mxu0 %v456
        %855 = vmatpush.msra.mxu0 %v455
        %856 = vmatpush.msra.mxu0 %v454
        %857 = vmatpush.msra.mxu0 %v453
        %858 = vmatpush.msra.mxu0 %v452
        %859 = vmatpush.msra.mxu0 %v451
        %860 = vmatpush.msra.mxu0 %v450
        %861 = vmatpush.msra.mxu0 %v449
        %862 = vmatpush.msra.mxu0 %v448
        %863 = vmatmul.f32.gmra.mxu0 %v337
        %v864 = vpop.f32.mrf.mxu0
        %v865 = vadd.f32 %v836, %v864
        %866 = vmatmul.f32.gmra.mxu0 %v361
        %v867 = vpop.f32.mrf.mxu0
        %v868 = vadd.f32 %v839, %v867
        %869 = vmatmul.f32.gmra.mxu0 %v385
        %v870 = vpop.f32.mrf.mxu0
        %v871 = vadd.f32 %v842, %v870
        %872 = vmatmul.f32.gmra.mxu0 %v409
        %v873 = vpop.f32.mrf.mxu0
        %v874 = vadd.f32 %v845, %v873
        %875 = vdwg.mxu0
        %876 = vmatpush.msra.mxu0 %v479
        %877 = vmatpush.msra.mxu0 %v478
        %878 = vmatpush.msra.mxu0 %v477
        %879 = vmatpush.msra.mxu0 %v476
        %880 = vmatpush.msra.mxu0 %v475
        %881 = vmatpush.msra.mxu0 %v474
        %882 = vmatpush.msra.mxu0 %v473
        %883 = vmatpush.msra.mxu0 %v472
        %884 = vmatpush.msra.mxu0 %v471
        %885 = vmatpush.msra.mxu0 %v470
        %886 = vmatpush.msra.mxu0 %v469
        %887 = vmatpush.msra.mxu0 %v468
        %888 = vmatpush.msra.mxu0 %v467
        %889 = vmatpush.msra.mxu0 %v466
        %890 = vmatpush.msra.mxu0 %v465
        %891 = vmatpush.msra.mxu0 %v464
        %892 = vmatmul.f32.gmra.mxu0 %v338
        %v893 = vpop.f32.mrf.mxu0
        %v894 = vadd.f32 %v865, %v893
        %895 = vmatmul.f32.gmra.mxu0 %v362
        %v896 = vpop.f32.mrf.mxu0
        %v897 = vadd.f32 %v868, %v896
        %898 = vmatmul.f32.gmra.mxu0 %v386
        %v899 = vpop.f32.mrf.mxu0
        %v900 = vadd.f32 %v871, %v899
        %901 = vmatmul.f32.gmra.mxu0 %v410
        %v902 = vpop.f32.mrf.mxu0
        %v903 = vadd.f32 %v874, %v902
        %904 = vdwg.mxu0
        %905 = vmatpush.msra.mxu0 %v495
        %906 = vmatpush.msra.mxu0 %v494
        %907 = vmatpush.msra.mxu0 %v493
        %908 = vmatpush.msra.mxu0 %v492
        %909 = vmatpush.msra.mxu0 %v491
        %910 = vmatpush.msra.mxu0 %v490
        %911 = vmatpush.msra.mxu0 %v489
        %912 = vmatpush.msra.mxu0 %v488
        %913 = vmatpush.msra.mxu0 %v487
        %914 = vmatpush.msra.mxu0 %v486
        %915 = vmatpush.msra.mxu0 %v485
        %916 = vmatpush.msra.mxu0 %v484
        %917 = vmatpush.msra.mxu0 %v483
        %918 = vmatpush.msra.mxu0 %v482
        %919 = vmatpush.msra.mxu0 %v481
        %920 = vmatpush.msra.mxu0 %v480
        %921 = vmatmul.f32.gmra.mxu0 %v339
        %v922 = vpop.f32.mrf.mxu0
        %v923 = vadd.f32 %v894, %v922
        %924 = vmatmul.f32.gmra.mxu0 %v363
        %v925 = vpop.f32.mrf.mxu0
        %v926 = vadd.f32 %v897, %v925
        %927 = vmatmul.f32.gmra.mxu0 %v387
        %v928 = vpop.f32.mrf.mxu0
        %v929 = vadd.f32 %v900, %v928
        %930 = vmatmul.f32.gmra.mxu0 %v411
        %v931 = vpop.f32.mrf.mxu0
        %v932 = vadd.f32 %v903, %v931
        %933 = vdwg.mxu0
        %934 = vmatpush.msra.mxu0 %v511
        %935 = vmatpush.msra.mxu0 %v510
        %936 = vmatpush.msra.mxu0 %v509
        %937 = vmatpush.msra.mxu0 %v508
        %938 = vmatpush.msra.mxu0 %v507
        %939 = vmatpush.msra.mxu0 %v506
        %940 = vmatpush.msra.mxu0 %v505
        %941 = vmatpush.msra.mxu0 %v504
        %942 = vmatpush.msra.mxu0 %v503
        %943 = vmatpush.msra.mxu0 %v502
        %944 = vmatpush.msra.mxu0 %v501
        %945 = vmatpush.msra.mxu0 %v500
        %946 = vmatpush.msra.mxu0 %v499
        %947 = vmatpush.msra.mxu0 %v498
        %948 = vmatpush.msra.mxu0 %v497
        %949 = vmatpush.msra.mxu0 %v496
        %950 = vmatmul.f32.gmra.mxu0 %v340
        %v951 = vpop.f32.mrf.mxu0
        %v952 = vadd.f32 %v923, %v951
        %953 = vmatmul.f32.gmra.mxu0 %v364
        %v954 = vpop.f32.mrf.mxu0
        %v955 = vadd.f32 %v926, %v954
        %956 = vmatmul.f32.gmra.mxu0 %v388
        %v957 = vpop.f32.mrf.mxu0
        %v958 = vadd.f32 %v929, %v957
        %959 = vmatmul.f32.gmra.mxu0 %v412
        %v960 = vpop.f32.mrf.mxu0
        %v961 = vadd.f32 %v932, %v960
        %962 = vdwg.mxu0
        %963 = vmatpush.msra.mxu0 %v527
        %964 = vmatpush.msra.mxu0 %v526
        %965 = vmatpush.msra.mxu0 %v525
        %966 = vmatpush.msra.mxu0 %v524
        %967 = vmatpush.msra.mxu0 %v523
        %968 = vmatpush.msra.mxu0 %v522
        %969 = vmatpush.msra.mxu0 %v521
        %970 = vmatpush.msra.mxu0 %v520
        %971 = vmatpush.msra.mxu0 %v519
        %972 = vmatpush.msra.mxu0 %v518
        %973 = vmatpush.msra.mxu0 %v517
        %974 = vmatpush.msra.mxu0 %v516
        %975 = vmatpush.msra.mxu0 %v515
        %976 = vmatpush.msra.mxu0 %v514
        %977 = vmatpush.msra.mxu0 %v513
        %978 = vmatpush.msra.mxu0 %v512
        %979 = vmatmul.f32.gmra.mxu0 %v341
        %v980 = vpop.f32.mrf.mxu0
        %v981 = vadd.f32 %v952, %v980
        %982 = vmatmul.f32.gmra.mxu0 %v365
        %v983 = vpop.f32.mrf.mxu0
        %v984 = vadd.f32 %v955, %v983
        %985 = vmatmul.f32.gmra.mxu0 %v389
        %v986 = vpop.f32.mrf.mxu0
        %v987 = vadd.f32 %v958, %v986
        %988 = vmatmul.f32.gmra.mxu0 %v413
        %v989 = vpop.f32.mrf.mxu0
        %v990 = vadd.f32 %v961, %v989
        %991 = vdwg.mxu0
        %992 = vmatpush.msra.mxu0 %v543
        %993 = vmatpush.msra.mxu0 %v542
        %994 = vmatpush.msra.mxu0 %v541
        %995 = vmatpush.msra.mxu0 %v540
        %996 = vmatpush.msra.mxu0 %v539
        %997 = vmatpush.msra.mxu0 %v538
        %998 = vmatpush.msra.mxu0 %v537
        %999 = vmatpush.msra.mxu0 %v536
        %1000 = vmatpush.msra.mxu0 %v535
        %1001 = vmatpush.msra.mxu0 %v534
        %1002 = vmatpush.msra.mxu0 %v533
        %1003 = vmatpush.msra.mxu0 %v532
        %1004 = vmatpush.msra.mxu0 %v531
        %1005 = vmatpush.msra.mxu0 %v530
        %1006 = vmatpush.msra.mxu0 %v529
        %1007 = vmatpush.msra.mxu0 %v528
        %1008 = vmatmul.f32.gmra.mxu0 %v342
        %v1009 = vpop.f32.mrf.mxu0
        %v1010 = vadd.f32 %v981, %v1009
        %1011 = vmatmul.f32.gmra.mxu0 %v366
        %v1012 = vpop.f32.mrf.mxu0
        %v1013 = vadd.f32 %v984, %v1012
        %1014 = vmatmul.f32.gmra.mxu0 %v390
        %v1015 = vpop.f32.mrf.mxu0
        %v1016 = vadd.f32 %v987, %v1015
        %1017 = vmatmul.f32.gmra.mxu0 %v414
        %v1018 = vpop.f32.mrf.mxu0
        %v1019 = vadd.f32 %v990, %v1018
        %1020 = vdwg.mxu0
        %1021 = vmatpush.msra.mxu0 %v559
        %1022 = vmatpush.msra.mxu0 %v558
        %1023 = vmatpush.msra.mxu0 %v557
        %1024 = vmatpush.msra.mxu0 %v556
        %1025 = vmatpush.msra.mxu0 %v555
        %1026 = vmatpush.msra.mxu0 %v554
        %1027 = vmatpush.msra.mxu0 %v553
        %1028 = vmatpush.msra.mxu0 %v552
        %1029 = vmatpush.msra.mxu0 %v551
        %1030 = vmatpush.msra.mxu0 %v550
        %1031 = vmatpush.msra.mxu0 %v549
        %1032 = vmatpush.msra.mxu0 %v548
        %1033 = vmatpush.msra.mxu0 %v547
        %1034 = vmatpush.msra.mxu0 %v546
        %1035 = vmatpush.msra.mxu0 %v545
        %1036 = vmatpush.msra.mxu0 %v544
        %1037 = vmatmul.f32.gmra.mxu0 %v343
        %v1038 = vpop.f32.mrf.mxu0
        %v1039 = vadd.f32 %v1010, %v1038
        %1040 = vmatmul.f32.gmra.mxu0 %v367
        %v1041 = vpop.f32.mrf.mxu0
        %v1042 = vadd.f32 %v1013, %v1041
        %1043 = vmatmul.f32.gmra.mxu0 %v391
        %v1044 = vpop.f32.mrf.mxu0
        %v1045 = vadd.f32 %v1016, %v1044
        %1046 = vmatmul.f32.gmra.mxu0 %v415
        %v1047 = vpop.f32.mrf.mxu0
        %v1048 = vadd.f32 %v1019, %v1047
        %1049 = vdwg.mxu0
        %1050 = vmatpush.msra.mxu0 %v575
        %1051 = vmatpush.msra.mxu0 %v574
        %1052 = vmatpush.msra.mxu0 %v573
        %1053 = vmatpush.msra.mxu0 %v572
        %1054 = vmatpush.msra.mxu0 %v571
        %1055 = vmatpush.msra.mxu0 %v570
        %1056 = vmatpush.msra.mxu0 %v569
        %1057 = vmatpush.msra.mxu0 %v568
        %1058 = vmatpush.msra.mxu0 %v567
        %1059 = vmatpush.msra.mxu0 %v566
        %1060 = vmatpush.msra.mxu0 %v565
        %1061 = vmatpush.msra.mxu0 %v564
        %1062 = vmatpush.msra.mxu0 %v563
        %1063 = vmatpush.msra.mxu0 %v562
        %1064 = vmatpush.msra.mxu0 %v561
        %1065 = vmatpush.msra.mxu0 %v560
        %1066 = vmatmul.f32.gmra.mxu0 %v344
        %v1067 = vpop.f32.mrf.mxu0
        %v1068 = vadd.f32 %v1039, %v1067
        %1069 = vmatmul.f32.gmra.mxu0 %v368
        %v1070 = vpop.f32.mrf.mxu0
        %v1071 = vadd.f32 %v1042, %v1070
        %1072 = vmatmul.f32.gmra.mxu0 %v392
        %v1073 = vpop.f32.mrf.mxu0
        %v1074 = vadd.f32 %v1045, %v1073
        %1075 = vmatmul.f32.gmra.mxu0 %v416
        %v1076 = vpop.f32.mrf.mxu0
        %v1077 = vadd.f32 %v1048, %v1076
        %1078 = vdwg.mxu0
        %1079 = vmatpush.msra.mxu0 %v591
        %1080 = vmatpush.msra.mxu0 %v590
        %1081 = vmatpush.msra.mxu0 %v589
        %1082 = vmatpush.msra.mxu0 %v588
        %1083 = vmatpush.msra.mxu0 %v587
        %1084 = vmatpush.msra.mxu0 %v586
        %1085 = vmatpush.msra.mxu0 %v585
        %1086 = vmatpush.msra.mxu0 %v584
        %1087 = vmatpush.msra.mxu0 %v583
        %1088 = vmatpush.msra.mxu0 %v582
        %1089 = vmatpush.msra.mxu0 %v581
        %1090 = vmatpush.msra.mxu0 %v580
        %1091 = vmatpush.msra.mxu0 %v579
        %1092 = vmatpush.msra.mxu0 %v578
        %1093 = vmatpush.msra.mxu0 %v577
        %1094 = vmatpush.msra.mxu0 %v576
        %1095 = vmatmul.f32.gmra.mxu0 %v345
        %v1096 = vpop.f32.mrf.mxu0
        %v1097 = vadd.f32 %v1068, %v1096
        %1098 = vmatmul.f32.gmra.mxu0 %v369
        %v1099 = vpop.f32.mrf.mxu0
        %v1100 = vadd.f32 %v1071, %v1099
        %1101 = vmatmul.f32.gmra.mxu0 %v393
        %v1102 = vpop.f32.mrf.mxu0
        %v1103 = vadd.f32 %v1074, %v1102
        %1104 = vmatmul.f32.gmra.mxu0 %v417
        %v1105 = vpop.f32.mrf.mxu0
        %v1106 = vadd.f32 %v1077, %v1105
        %1107 = vdwg.mxu0
        %1108 = vmatpush.msra.mxu0 %v607
        %1109 = vmatpush.msra.mxu0 %v606
        %1110 = vmatpush.msra.mxu0 %v605
        %1111 = vmatpush.msra.mxu0 %v604
        %1112 = vmatpush.msra.mxu0 %v603
        %1113 = vmatpush.msra.mxu0 %v602
        %1114 = vmatpush.msra.mxu0 %v601
        %1115 = vmatpush.msra.mxu0 %v600
        %1116 = vmatpush.msra.mxu0 %v599
        %1117 = vmatpush.msra.mxu0 %v598
        %1118 = vmatpush.msra.mxu0 %v597
        %1119 = vmatpush.msra.mxu0 %v596
        %1120 = vmatpush.msra.mxu0 %v595
        %1121 = vmatpush.msra.mxu0 %v594
        %1122 = vmatpush.msra.mxu0 %v593
        %1123 = vmatpush.msra.mxu0 %v592
        %1124 = vmatmul.f32.gmra.mxu0 %v346
        %v1125 = vpop.f32.mrf.mxu0
        %v1126 = vadd.f32 %v1097, %v1125
        %1127 = vmatmul.f32.gmra.mxu0 %v370
        %v1128 = vpop.f32.mrf.mxu0
        %v1129 = vadd.f32 %v1100, %v1128
        %1130 = vmatmul.f32.gmra.mxu0 %v394
        %v1131 = vpop.f32.mrf.mxu0
        %v1132 = vadd.f32 %v1103, %v1131
        %1133 = vmatmul.f32.gmra.mxu0 %v418
        %v1134 = vpop.f32.mrf.mxu0
        %v1135 = vadd.f32 %v1106, %v1134
        %1136 = vdwg.mxu0
        %1137 = vmatpush.msra.mxu0 %v623
        %1138 = vmatpush.msra.mxu0 %v622
        %1139 = vmatpush.msra.mxu0 %v621
        %1140 = vmatpush.msra.mxu0 %v620
        %1141 = vmatpush.msra.mxu0 %v619
        %1142 = vmatpush.msra.mxu0 %v618
        %1143 = vmatpush.msra.mxu0 %v617
        %1144 = vmatpush.msra.mxu0 %v616
        %1145 = vmatpush.msra.mxu0 %v615
        %1146 = vmatpush.msra.mxu0 %v614
        %1147 = vmatpush.msra.mxu0 %v613
        %1148 = vmatpush.msra.mxu0 %v612
        %1149 = vmatpush.msra.mxu0 %v611
        %1150 = vmatpush.msra.mxu0 %v610
        %1151 = vmatpush.msra.mxu0 %v609
        %1152 = vmatpush.msra.mxu0 %v608
        %1153 = vmatmul.f32.gmra.mxu0 %v347
        %v1154 = vpop.f32.mrf.mxu0
        %v1155 = vadd.f32 %v1126, %v1154
        %1156 = vmatmul.f32.gmra.mxu0 %v371
        %v1157 = vpop.f32.mrf.mxu0
        %v1158 = vadd.f32 %v1129, %v1157
        %1159 = vmatmul.f32.gmra.mxu0 %v395
        %v1160 = vpop.f32.mrf.mxu0
        %v1161 = vadd.f32 %v1132, %v1160
        %1162 = vmatmul.f32.gmra.mxu0 %v419
        %v1163 = vpop.f32.mrf.mxu0
        %v1164 = vadd.f32 %v1135, %v1163
        %1165 = vdwg.mxu0
        %1166 = vmatpush.msra.mxu0 %v639
        %1167 = vmatpush.msra.mxu0 %v638
        %1168 = vmatpush.msra.mxu0 %v637
        %1169 = vmatpush.msra.mxu0 %v636
        %1170 = vmatpush.msra.mxu0 %v635
        %1171 = vmatpush.msra.mxu0 %v634
        %1172 = vmatpush.msra.mxu0 %v633
        %1173 = vmatpush.msra.mxu0 %v632
        %1174 = vmatpush.msra.mxu0 %v631
        %1175 = vmatpush.msra.mxu0 %v630
        %1176 = vmatpush.msra.mxu0 %v629
        %1177 = vmatpush.msra.mxu0 %v628
        %1178 = vmatpush.msra.mxu0 %v627
        %1179 = vmatpush.msra.mxu0 %v626
        %1180 = vmatpush.msra.mxu0 %v625
        %1181 = vmatpush.msra.mxu0 %v624
        %1182 = vmatmul.f32.gmra.mxu0 %v348
        %v1183 = vpop.f32.mrf.mxu0
        %v1184 = vadd.f32 %v1155, %v1183
        %1185 = vmatmul.f32.gmra.mxu0 %v372
        %v1186 = vpop.f32.mrf.mxu0
        %v1187 = vadd.f32 %v1158, %v1186
        %1188 = vmatmul.f32.gmra.mxu0 %v396
        %v1189 = vpop.f32.mrf.mxu0
        %v1190 = vadd.f32 %v1161, %v1189
        %1191 = vmatmul.f32.gmra.mxu0 %v420
        %v1192 = vpop.f32.mrf.mxu0
        %v1193 = vadd.f32 %v1164, %v1192
        %1194 = vdwg.mxu0
        %1195 = vmatpush.msra.mxu0 %v655
        %1196 = vmatpush.msra.mxu0 %v654
        %1197 = vmatpush.msra.mxu0 %v653
        %1198 = vmatpush.msra.mxu0 %v652
        %1199 = vmatpush.msra.mxu0 %v651
        %1200 = vmatpush.msra.mxu0 %v650
        %1201 = vmatpush.msra.mxu0 %v649
        %1202 = vmatpush.msra.mxu0 %v648
        %1203 = vmatpush.msra.mxu0 %v647
        %1204 = vmatpush.msra.mxu0 %v646
        %1205 = vmatpush.msra.mxu0 %v645
        %1206 = vmatpush.msra.mxu0 %v644
        %1207 = vmatpush.msra.mxu0 %v643
        %1208 = vmatpush.msra.mxu0 %v642
        %1209 = vmatpush.msra.mxu0 %v641
        %1210 = vmatpush.msra.mxu0 %v640
        %1211 = vmatmul.f32.gmra.mxu0 %v349
        %v1212 = vpop.f32.mrf.mxu0
        %v1213 = vadd.f32 %v1184, %v1212
        %1214 = vmatmul.f32.gmra.mxu0 %v373
        %v1215 = vpop.f32.mrf.mxu0
        %v1216 = vadd.f32 %v1187, %v1215
        %1217 = vmatmul.f32.gmra.mxu0 %v397
        %v1218 = vpop.f32.mrf.mxu0
        %v1219 = vadd.f32 %v1190, %v1218
        %1220 = vmatmul.f32.gmra.mxu0 %v421
        %v1221 = vpop.f32.mrf.mxu0
        %v1222 = vadd.f32 %v1193, %v1221
        %1223 = vdwg.mxu0
        %1224 = vmatpush.msra.mxu0 %v671
        %1225 = vmatpush.msra.mxu0 %v670
        %1226 = vmatpush.msra.mxu0 %v669
        %1227 = vmatpush.msra.mxu0 %v668
        %1228 = vmatpush.msra.mxu0 %v667
        %1229 = vmatpush.msra.mxu0 %v666
        %1230 = vmatpush.msra.mxu0 %v665
        %1231 = vmatpush.msra.mxu0 %v664
        %1232 = vmatpush.msra.mxu0 %v663
        %1233 = vmatpush.msra.mxu0 %v662
        %1234 = vmatpush.msra.mxu0 %v661
        %1235 = vmatpush.msra.mxu0 %v660
        %1236 = vmatpush.msra.mxu0 %v659
        %1237 = vmatpush.msra.mxu0 %v658
        %1238 = vmatpush.msra.mxu0 %v657
        %1239 = vmatpush.msra.mxu0 %v656
        %1240 = vmatmul.f32.gmra.mxu0 %v350
        %v1241 = vpop.f32.mrf.mxu0
        %v1242 = vadd.f32 %v1213, %v1241
        %1243 = vmatmul.f32.gmra.mxu0 %v374
        %v1244 = vpop.f32.mrf.mxu0
        %v1245 = vadd.f32 %v1216, %v1244
        %1246 = vmatmul.f32.gmra.mxu0 %v398
        %v1247 = vpop.f32.mrf.mxu0
        %v1248 = vadd.f32 %v1219, %v1247
        %1249 = vmatmul.f32.gmra.mxu0 %v422
        %v1250 = vpop.f32.mrf.mxu0
        %v1251 = vadd.f32 %v1222, %v1250
        %1252 = vdwg.mxu0
        %1253 = vmatpush.msra.mxu0 %v687
        %1254 = vmatpush.msra.mxu0 %v686
        %1255 = vmatpush.msra.mxu0 %v685
        %1256 = vmatpush.msra.mxu0 %v684
        %1257 = vmatpush.msra.mxu0 %v683
        %1258 = vmatpush.msra.mxu0 %v682
        %1259 = vmatpush.msra.mxu0 %v681
        %1260 = vmatpush.msra.mxu0 %v680
        %1261 = vmatpush.msra.mxu0 %v679
        %1262 = vmatpush.msra.mxu0 %v678
        %1263 = vmatpush.msra.mxu0 %v677
        %1264 = vmatpush.msra.mxu0 %v676
        %1265 = vmatpush.msra.mxu0 %v675
        %1266 = vmatpush.msra.mxu0 %v674
        %1267 = vmatpush.msra.mxu0 %v673
        %1268 = vmatpush.msra.mxu0 %v672
        %1269 = vmatmul.f32.gmra.mxu0 %v351
        %v1270 = vpop.f32.mrf.mxu0
        %v1271 = vadd.f32 %v1242, %v1270
        %1272 = vmatmul.f32.gmra.mxu0 %v375
        %v1273 = vpop.f32.mrf.mxu0
        %v1274 = vadd.f32 %v1245, %v1273
        %1275 = vmatmul.f32.gmra.mxu0 %v399
        %v1276 = vpop.f32.mrf.mxu0
        %v1277 = vadd.f32 %v1248, %v1276
        %1278 = vmatmul.f32.gmra.mxu0 %v423
        %v1279 = vpop.f32.mrf.mxu0
        %v1280 = vadd.f32 %v1251, %v1279
        %1281 = vdwg.mxu0
        %1282 = vmatpush.msra.mxu0 %v703
        %1283 = vmatpush.msra.mxu0 %v702
        %1284 = vmatpush.msra.mxu0 %v701
        %1285 = vmatpush.msra.mxu0 %v700
        %1286 = vmatpush.msra.mxu0 %v699
        %1287 = vmatpush.msra.mxu0 %v698
        %1288 = vmatpush.msra.mxu0 %v697
        %1289 = vmatpush.msra.mxu0 %v696
        %1290 = vmatpush.msra.mxu0 %v695
        %1291 = vmatpush.msra.mxu0 %v694
        %1292 = vmatpush.msra.mxu0 %v693
        %1293 = vmatpush.msra.mxu0 %v692
        %1294 = vmatpush.msra.mxu0 %v691
        %1295 = vmatpush.msra.mxu0 %v690
        %1296 = vmatpush.msra.mxu0 %v689
        %1297 = vmatpush.msra.mxu0 %v688
        %1298 = vmatmul.f32.gmra.mxu0 %v352
        %v1299 = vpop.f32.mrf.mxu0
        %v1300 = vadd.f32 %v1271, %v1299
        %1301 = vmatmul.f32.gmra.mxu0 %v376
        %v1302 = vpop.f32.mrf.mxu0
        %v1303 = vadd.f32 %v1274, %v1302
        %1304 = vmatmul.f32.gmra.mxu0 %v400
        %v1305 = vpop.f32.mrf.mxu0
        %v1306 = vadd.f32 %v1277, %v1305
        %1307 = vmatmul.f32.gmra.mxu0 %v424
        %v1308 = vpop.f32.mrf.mxu0
        %v1309 = vadd.f32 %v1280, %v1308
        %1310 = vdwg.mxu0
        %1311 = vmatpush.msra.mxu0 %v719
        %1312 = vmatpush.msra.mxu0 %v718
        %1313 = vmatpush.msra.mxu0 %v717
        %1314 = vmatpush.msra.mxu0 %v716
        %1315 = vmatpush.msra.mxu0 %v715
        %1316 = vmatpush.msra.mxu0 %v714
        %1317 = vmatpush.msra.mxu0 %v713
        %1318 = vmatpush.msra.mxu0 %v712
        %1319 = vmatpush.msra.mxu0 %v711
        %1320 = vmatpush.msra.mxu0 %v710
        %1321 = vmatpush.msra.mxu0 %v709
        %1322 = vmatpush.msra.mxu0 %v708
        %1323 = vmatpush.msra.mxu0 %v707
        %1324 = vmatpush.msra.mxu0 %v706
        %1325 = vmatpush.msra.mxu0 %v705
        %1326 = vmatpush.msra.mxu0 %v704
        %1327 = vmatmul.f32.gmra.mxu0 %v353
        %v1328 = vpop.f32.mrf.mxu0
        %v1329 = vadd.f32 %v1300, %v1328
        %1330 = vmatmul.f32.gmra.mxu0 %v377
        %v1331 = vpop.f32.mrf.mxu0
        %v1332 = vadd.f32 %v1303, %v1331
        %1333 = vmatmul.f32.gmra.mxu0 %v401
        %v1334 = vpop.f32.mrf.mxu0
        %v1335 = vadd.f32 %v1306, %v1334
        %1336 = vmatmul.f32.gmra.mxu0 %v425
        %v1337 = vpop.f32.mrf.mxu0
        %v1338 = vadd.f32 %v1309, %v1337
        %1339 = vdwg.mxu0
        %1340 = vmatpush.msra.mxu0 %v735
        %1341 = vmatpush.msra.mxu0 %v734
        %1342 = vmatpush.msra.mxu0 %v733
        %1343 = vmatpush.msra.mxu0 %v732
        %1344 = vmatpush.msra.mxu0 %v731
        %1345 = vmatpush.msra.mxu0 %v730
        %1346 = vmatpush.msra.mxu0 %v729
        %1347 = vmatpush.msra.mxu0 %v728
        %1348 = vmatpush.msra.mxu0 %v727
        %1349 = vmatpush.msra.mxu0 %v726
        %1350 = vmatpush.msra.mxu0 %v725
        %1351 = vmatpush.msra.mxu0 %v724
        %1352 = vmatpush.msra.mxu0 %v723
        %1353 = vmatpush.msra.mxu0 %v722
        %1354 = vmatpush.msra.mxu0 %v721
        %1355 = vmatpush.msra.mxu0 %v720
        %1356 = vmatmul.f32.gmra.mxu0 %v354
        %v1357 = vpop.f32.mrf.mxu0
        %v1358 = vadd.f32 %v1329, %v1357
        %1359 = vmatmul.f32.gmra.mxu0 %v378
        %v1360 = vpop.f32.mrf.mxu0
        %v1361 = vadd.f32 %v1332, %v1360
        %1362 = vmatmul.f32.gmra.mxu0 %v402
        %v1363 = vpop.f32.mrf.mxu0
        %v1364 = vadd.f32 %v1335, %v1363
        %1365 = vmatmul.f32.gmra.mxu0 %v426
        %v1366 = vpop.f32.mrf.mxu0
        %v1367 = vadd.f32 %v1338, %v1366
        %1368 = vdwg.mxu0
        %1369 = vmatpush.msra.mxu0 %v751
        %1370 = vmatpush.msra.mxu0 %v750
        %1371 = vmatpush.msra.mxu0 %v749
        %1372 = vmatpush.msra.mxu0 %v748
        %1373 = vmatpush.msra.mxu0 %v747
        %1374 = vmatpush.msra.mxu0 %v746
        %1375 = vmatpush.msra.mxu0 %v745
        %1376 = vmatpush.msra.mxu0 %v744
        %1377 = vmatpush.msra.mxu0 %v743
        %1378 = vmatpush.msra.mxu0 %v742
        %1379 = vmatpush.msra.mxu0 %v741
        %1380 = vmatpush.msra.mxu0 %v740
        %1381 = vmatpush.msra.mxu0 %v739
        %1382 = vmatpush.msra.mxu0 %v738
        %1383 = vmatpush.msra.mxu0 %v737
        %1384 = vmatpush.msra.mxu0 %v736
        %1385 = vmatmul.f32.gmra.mxu0 %v355
        %v1386 = vpop.f32.mrf.mxu0
        %v1387 = vadd.f32 %v1358, %v1386
        %1388 = vmatmul.f32.gmra.mxu0 %v379
        %v1389 = vpop.f32.mrf.mxu0
        %v1390 = vadd.f32 %v1361, %v1389
        %1391 = vmatmul.f32.gmra.mxu0 %v403
        %v1392 = vpop.f32.mrf.mxu0
        %v1393 = vadd.f32 %v1364, %v1392
        %1394 = vmatmul.f32.gmra.mxu0 %v427
        %v1395 = vpop.f32.mrf.mxu0
        %v1396 = vadd.f32 %v1367, %v1395
        %1397 = vdwg.mxu0
        %1398 = vmatpush.msra.mxu0 %v767
        %1399 = vmatpush.msra.mxu0 %v766
        %1400 = vmatpush.msra.mxu0 %v765
        %1401 = vmatpush.msra.mxu0 %v764
        %1402 = vmatpush.msra.mxu0 %v763
        %1403 = vmatpush.msra.mxu0 %v762
        %1404 = vmatpush.msra.mxu0 %v761
        %1405 = vmatpush.msra.mxu0 %v760
        %1406 = vmatpush.msra.mxu0 %v759
        %1407 = vmatpush.msra.mxu0 %v758
        %1408 = vmatpush.msra.mxu0 %v757
        %1409 = vmatpush.msra.mxu0 %v756
        %1410 = vmatpush.msra.mxu0 %v755
        %1411 = vmatpush.msra.mxu0 %v754
        %1412 = vmatpush.msra.mxu0 %v753
        %1413 = vmatpush.msra.mxu0 %v752
        %1414 = vmatmul.f32.gmra.mxu0 %v356
        %v1415 = vpop.f32.mrf.mxu0
        %v1416 = vadd.f32 %v1387, %v1415
        %1417 = vmatmul.f32.gmra.mxu0 %v380
        %v1418 = vpop.f32.mrf.mxu0
        %v1419 = vadd.f32 %v1390, %v1418
        %1420 = vmatmul.f32.gmra.mxu0 %v404
        %v1421 = vpop.f32.mrf.mxu0
        %v1422 = vadd.f32 %v1393, %v1421
        %1423 = vmatmul.f32.gmra.mxu0 %v428
        %v1424 = vpop.f32.mrf.mxu0
        %v1425 = vadd.f32 %v1396, %v1424
        %1426 = vdwg.mxu0
        %1427 = vmatpush.msra.mxu0 %v783
        %1428 = vmatpush.msra.mxu0 %v782
        %1429 = vmatpush.msra.mxu0 %v781
        %1430 = vmatpush.msra.mxu0 %v780
        %1431 = vmatpush.msra.mxu0 %v779
        %1432 = vmatpush.msra.mxu0 %v778
        %1433 = vmatpush.msra.mxu0 %v777
        %1434 = vmatpush.msra.mxu0 %v776
        %1435 = vmatpush.msra.mxu0 %v775
        %1436 = vmatpush.msra.mxu0 %v774
        %1437 = vmatpush.msra.mxu0 %v773
        %1438 = vmatpush.msra.mxu0 %v772
        %1439 = vmatpush.msra.mxu0 %v771
        %1440 = vmatpush.msra.mxu0 %v770
        %1441 = vmatpush.msra.mxu0 %v769
        %1442 = vmatpush.msra.mxu0 %v768
        %1443 = vmatmul.f32.gmra.mxu0 %v357
        %v1444 = vpop.f32.mrf.mxu0
        %v1445 = vadd.f32 %v1416, %v1444
        %1446 = vmatmul.f32.gmra.mxu0 %v381
        %v1447 = vpop.f32.mrf.mxu0
        %v1448 = vadd.f32 %v1419, %v1447
        %1449 = vmatmul.f32.gmra.mxu0 %v405
        %v1450 = vpop.f32.mrf.mxu0
        %v1451 = vadd.f32 %v1422, %v1450
        %1452 = vmatmul.f32.gmra.mxu0 %v429
        %v1453 = vpop.f32.mrf.mxu0
        %v1454 = vadd.f32 %v1425, %v1453
        %1455 = vdwg.mxu0
        %1456 = vmatpush.msra.mxu0 %v799
        %1457 = vmatpush.msra.mxu0 %v798
        %1458 = vmatpush.msra.mxu0 %v797
        %1459 = vmatpush.msra.mxu0 %v796
        %1460 = vmatpush.msra.mxu0 %v795
        %1461 = vmatpush.msra.mxu0 %v794
        %1462 = vmatpush.msra.mxu0 %v793
        %1463 = vmatpush.msra.mxu0 %v792
        %1464 = vmatpush.msra.mxu0 %v791
        %1465 = vmatpush.msra.mxu0 %v790
        %1466 = vmatpush.msra.mxu0 %v789
        %1467 = vmatpush.msra.mxu0 %v788
        %1468 = vmatpush.msra.mxu0 %v787
        %1469 = vmatpush.msra.mxu0 %v786
        %1470 = vmatpush.msra.mxu0 %v785
        %1471 = vmatpush.msra.mxu0 %v784
        %1472 = vmatmul.f32.gmra.mxu0 %v358
        %v1473 = vpop.f32.mrf.mxu0
        %v1474 = vadd.f32 %v1445, %v1473
        %1475 = vmatmul.f32.gmra.mxu0 %v382
        %v1476 = vpop.f32.mrf.mxu0
        %v1477 = vadd.f32 %v1448, %v1476
        %1478 = vmatmul.f32.gmra.mxu0 %v406
        %v1479 = vpop.f32.mrf.mxu0
        %v1480 = vadd.f32 %v1451, %v1479
        %1481 = vmatmul.f32.gmra.mxu0 %v430
        %v1482 = vpop.f32.mrf.mxu0
        %v1483 = vadd.f32 %v1454, %v1482
        %1484 = vdwg.mxu0
        %1485 = vmatpush.msra.mxu0 %v815
        %1486 = vmatpush.msra.mxu0 %v814
        %1487 = vmatpush.msra.mxu0 %v813
        %1488 = vmatpush.msra.mxu0 %v812
        %1489 = vmatpush.msra.mxu0 %v811
        %1490 = vmatpush.msra.mxu0 %v810
        %1491 = vmatpush.msra.mxu0 %v809
        %1492 = vmatpush.msra.mxu0 %v808
        %1493 = vmatpush.msra.mxu0 %v807
        %1494 = vmatpush.msra.mxu0 %v806
        %1495 = vmatpush.msra.mxu0 %v805
        %1496 = vmatpush.msra.mxu0 %v804
        %1497 = vmatpush.msra.mxu0 %v803
        %1498 = vmatpush.msra.mxu0 %v802
        %1499 = vmatpush.msra.mxu0 %v801
        %1500 = vmatpush.msra.mxu0 %v800
        %1501 = vmatmul.f32.gmra.mxu0 %v359
        %v1502 = vpop.f32.mrf.mxu0
        %v1503 = vadd.f32 %v1474, %v1502
        %1504 = vmatmul.f32.gmra.mxu0 %v383
        %v1505 = vpop.f32.mrf.mxu0
        %v1506 = vadd.f32 %v1477, %v1505
        %1507 = vmatmul.f32.gmra.mxu0 %v407
        %v1508 = vpop.f32.mrf.mxu0
        %v1509 = vadd.f32 %v1480, %v1508
        %1510 = vmatmul.f32.gmra.mxu0 %v431
        %v1511 = vpop.f32.mrf.mxu0
        %v1512 = vadd.f32 %v1483, %v1511
        %1513 = vdwg.mxu0
        %v1514 = vld [vmem:[%s7 + $0x14] sm:$0x1f]
        %v1516 = vrot.slane %v1514, 1
        %v1518 = vadd.f32 %v1503, %v1516
        %v1519 = vrot.slane %v1514, 5
        %v1521 = vadd.f32 %v1503, %v1519
        %v1522 = vadd.f32 %v1506, %v1516
        %v1523 = vadd.f32 %v1506, %v1519
        %v1524 = vadd.f32 %v1509, %v1516
        %v1525 = vadd.f32 %v1509, %v1519
        %v1526 = vadd.f32 %v1512, %v1516
        %v1527 = vadd.f32 %v1512, %v1519
        %v1529 = vrot.slane %v1518, 7
        %v1531 = vrot.slane %v1514, 3
        %v1534 = vrot.slane %v1521, 6
        %v1536 = vrot.slane %v1514, 6
        %v1539 = vrot.slane %v1522, 5
        %v1542 = vrot.slane %v1523, 4
        %v1544 = vrot.slane %v1514, 4
        %v1547 = vrot.slane %v1524, 3
        %v1549 = vrot.slane %v1514, 7
        %v1552 = vrot.slane %v1525, 2
        %v1554 = vrot.slane %v1514, 2
        %v1557 = vrot.slane %v1526, 1
        %vm1559 = vcmask 1040384
        %v1560 = vsel %vm1559, %v1514, %v1529
        %vm1561 = vcmask 1044480
        %v1562 = vsel %vm1561, %v1560, %v1531
        %vm1563 = vcmask 1045504
        %v1564 = vsel %vm1563, %v1562, %v1534
        %vm1565 = vcmask 1041408
        %v1566 = vsel %vm1565, %v1534, %v1536
        %vm1567 = vcmask 1042432
        %v1568 = vsel %vm1567, %v1566, %v1539
        %vm1569 = vcmask 1046528
        %v1570 = vsel %vm1569, %v1568, %v1516
        %vm1571 = vcmask 1043456
        %v1572 = vsel %vm1571, %v1542, %v1544
        %v1573 = vsel %vm1561, %v1572, %v1547
        %v1574 = vsel %vm1559, %v1547, %v1549
        %v1575 = vsel %vm1565, %v1574, %v1552
        %v1576 = vsel %vm1563, %v1575, %v1554
        %v1577 = vsel %vm1569, %v1576, %v1557
        %v1578 = vsel %vm1567, %v1557, %v1519
        %v1579 = vsel %vm1571, %v1578, %v1527
        %v1580 = vld [vmem:[%s8] sm:$0xff]
        %v1581 = vld [vmem:[%s8 + $0x8] sm:$0xff]
        %v1582 = vld [vmem:[%s8 + $0x10] sm:$0xff]
        %v1583 = vld [vmem:[%s8 + $0x18] sm:$0xff]
        %v1584 = vld [vmem:[%s8 + $0x20] sm:$0xff]
        %v1585 = vld [vmem:[%s7] sm:$0x1]
        %v1586 = vld [vmem:[%s7 + $0x1] sm:$0x1]
        %vm1587 = vcmask 261120
        %v1588 = vsel %vm1587, %v1564, 0.0
        %1589 = vadd.xlane.f32.xlu0 %v1588
        %v1590 = vpop.xlane.xlu0 %1589
        %v1591 = vsel %vm1587, %v1570, 0.0
        %1592 = vadd.xlane.f32.xlu0 %v1591
        %v1593 = vpop.xlane.xlu0 %1592
        %v1594 = vsel %vm1587, %v1573, 0.0
        %1595 = vadd.xlane.f32.xlu0 %v1594
        %v1596 = vpop.xlane.xlu0 %1595
        %v1597 = vsel %vm1587, %v1577, 0.0
        %1598 = vadd.xlane.f32.xlu0 %v1597
        %v1599 = vpop.xlane.xlu0 %1598
        %v1600 = vsel %vm1587, %v1579, 0.0
        %1601 = vadd.xlane.f32.xlu0 %v1600
        %v1602 = vpop.xlane.xlu0 %1601
        %v1603 = vrcp.pop 32.0
        %v1604 = vmul.f32 32.0, %v1603
        %v1605 = vsub.f32 1.0, %v1604
        %v1606 = vmul.f32 %v1603, %v1605
        %v1607 = vadd.f32 %v1603, %v1606
        %vm1608 = vweird.f32 %v1603
        %v1609 = vsel %vm1608, %v1603, %v1607
        %v1610 = vmul.f32 %v1590, %v1609
        %v1611 = vmul.f32 %v1593, %v1609
        %v1612 = vmul.f32 %v1596, %v1609
        %v1613 = vmul.f32 %v1599, %v1609
        %v1614 = vmul.f32 %v1602, %v1609
        %v1615 = vsub.f32 %v1564, %v1610
        %v1616 = vsub.f32 %v1570, %v1611
        %v1617 = vsub.f32 %v1573, %v1612
        %v1618 = vsub.f32 %v1577, %v1613
        %v1619 = vsub.f32 %v1579, %v1614
        %v1620 = vmul.f32 %v1615, %v1615
        %v1621 = vmul.f32 %v1616, %v1616
        %v1622 = vmul.f32 %v1617, %v1617
        %v1623 = vmul.f32 %v1618, %v1618
        %v1624 = vmul.f32 %v1619, %v1619
        %v1625 = vsel %vm1587, %v1620, 0.0
        %1626 = vadd.xlane.f32.xlu0 %v1625
        %v1627 = vpop.xlane.xlu0 %1626
        %v1628 = vsel %vm1587, %v1621, 0.0
        %1629 = vadd.xlane.f32.xlu0 %v1628
        %v1630 = vpop.xlane.xlu0 %1629
        %v1631 = vsel %vm1587, %v1622, 0.0
        %1632 = vadd.xlane.f32.xlu0 %v1631
        %v1633 = vpop.xlane.xlu0 %1632
        %v1634 = vsel %vm1587, %v1623, 0.0
        %1635 = vadd.xlane.f32.xlu0 %v1634
        %v1636 = vpop.xlane.xlu0 %1635
        %v1637 = vsel %vm1587, %v1624, 0.0
        %1638 = vadd.xlane.f32.xlu0 %v1637
        %v1639 = vpop.xlane.xlu0 %1638
        %v1640 = vmul.f32 %v1627, %v1609
        %v1641 = vmul.f32 %v1630, %v1609
        %v1642 = vmul.f32 %v1633, %v1609
        %v1643 = vmul.f32 %v1636, %v1609
        %v1644 = vmul.f32 %v1639, %v1609
        %v1645 = vadd.f32 %v1640, 1e-06
        %v1646 = vadd.f32 %v1641, 1e-06
        %v1647 = vadd.f32 %v1642, 1e-06
        %v1648 = vadd.f32 %v1643, 1e-06
        %v1649 = vadd.f32 %v1644, 1e-06
        %v1650 = vrsqrt.pop %v1645
        %v1651 = vmul.f32 %v1650, %v1645
        %v1652 = vmul.f32 %v1651, %v1650
        %v1653 = vmul.f32 0.5, %v1652
        %v1654 = vsub.f32 1.5, %v1653
        %v1655 = vmul.f32 %v1650, %v1654
        %vm1656 = vweird.f32 %v1645
        %vm1657 = vweird.f32 %v1650
        %vm1658 = vmor %vm1656, %vm1657
        %v1659 = vsel %vm1658, %v1650, %v1655
        %v1660 = vrsqrt.pop %v1646
        %v1661 = vmul.f32 %v1660, %v1646
        %v1662 = vmul.f32 %v1661, %v1660
        %v1663 = vmul.f32 0.5, %v1662
        %v1664 = vsub.f32 1.5, %v1663
        %v1665 = vmul.f32 %v1660, %v1664
        %vm1666 = vweird.f32 %v1646
        %vm1667 = vweird.f32 %v1660
        %vm1668 = vmor %vm1666, %vm1667
        %v1669 = vsel %vm1668, %v1660, %v1665
        %v1670 = vrsqrt.pop %v1647
        %v1671 = vmul.f32 %v1670, %v1647
        %v1672 = vmul.f32 %v1671, %v1670
        %v1673 = vmul.f32 0.5, %v1672
        %v1674 = vsub.f32 1.5, %v1673
        %v1675 = vmul.f32 %v1670, %v1674
        %vm1676 = vweird.f32 %v1647
        %vm1677 = vweird.f32 %v1670
        %vm1678 = vmor %vm1676, %vm1677
        %v1679 = vsel %vm1678, %v1670, %v1675
        %v1680 = vrsqrt.pop %v1648
        %v1681 = vmul.f32 %v1680, %v1648
        %v1682 = vmul.f32 %v1681, %v1680
        %v1683 = vmul.f32 0.5, %v1682
        %v1684 = vsub.f32 1.5, %v1683
        %v1685 = vmul.f32 %v1680, %v1684
        %vm1686 = vweird.f32 %v1648
        %vm1687 = vweird.f32 %v1680
        %vm1688 = vmor %vm1686, %vm1687
        %v1689 = vsel %vm1688, %v1680, %v1685
        %v1690 = vrsqrt.pop %v1649
        %v1691 = vmul.f32 %v1690, %v1649
        %v1692 = vmul.f32 %v1691, %v1690
        %v1693 = vmul.f32 0.5, %v1692
        %v1694 = vsub.f32 1.5, %v1693
        %v1695 = vmul.f32 %v1690, %v1694
        %vm1696 = vweird.f32 %v1649
        %vm1697 = vweird.f32 %v1690
        %vm1698 = vmor %vm1696, %vm1697
        %v1699 = vsel %vm1698, %v1690, %v1695
        %v1700 = vmul.f32 %v1615, %v1659
        %v1701 = vmul.f32 %v1616, %v1669
        %v1702 = vmul.f32 %v1617, %v1679
        %v1703 = vmul.f32 %v1618, %v1689
        %v1704 = vmul.f32 %v1619, %v1699
        %v1705 = vperm.slane %v1585, 0
        %v1706 = vmul.f32 %v1700, %v1705
        %v1707 = vmul.f32 %v1701, %v1705
        %v1708 = vmul.f32 %v1702, %v1705
        %v1709 = vmul.f32 %v1703, %v1705
        %v1710 = vmul.f32 %v1704, %v1705
        %v1711 = vperm.slane %v1586, 0
        %v1712 = vadd.f32 %v1706, %v1711
        %v1713 = vadd.f32 %v1707, %v1711
        %v1714 = vadd.f32 %v1708, %v1711
        %v1715 = vadd.f32 %v1709, %v1711
        %v1716 = vadd.f32 %v1710, %v1711
        %v1717 = vld [vmem:[%s2] sm:$0xff]
        %v1718 = vld [vmem:[%s2 + $0x8] sm:$0xff]
        %v1719 = vld [vmem:[%s2 + $0x10] sm:$0xff]
        %v1720 = vld [vmem:[%s2 + $0x18] sm:$0xff]
        %v1721 = vld [vmem:[%s7 + $0x2] sm:$0x1]
        %v1722 = vperm.slane %v1721, 0
        %v1724 = vsel %vm1587, %v1712, 0
        %v1727 = vsel %vm1587, %v1713, 0
        %v1730 = vsel %vm1587, %v1714, 0
        %v1733 = vsel %vm1587, %v1715, 0
        %v1736 = vsel %vm1587, %v1716, 0
        %1738 = vmatpush.msra.mxu0 0.0
        %1739 = vmatpush.msra.mxu0 0.0
        %1740 = vmatpush.msra.mxu0 0.0
        %1741 = vmatpush.msra.mxu0 0.0
        %1742 = vmatpush.msra.mxu0 0.0
        %1743 = vmatpush.msra.mxu0 0.0
        %1744 = vmatpush.msra.mxu0 0.0
        %1745 = vmatpush.msra.mxu0 0.0
        %1746 = vmatpush.msra.mxu0 0.0
        %1747 = vmatpush.msra.mxu0 0.0
        %1748 = vmatpush.msra.mxu0 0.0
        %1749 = vmatpush.msra.mxu0 0.0
        %1750 = vmatpush.msra.mxu0 %v1720
        %1751 = vmatpush.msra.mxu0 %v1719
        %1752 = vmatpush.msra.mxu0 %v1718
        %1753 = vmatpush.msra.mxu0 %v1717
        %1754 = vmatmul.f32.gmra.mxu0 %v1724
        %v1755 = vpop.f32.mrf.mxu0
        %v1756 = vadd.f32 %v1722, %v1755
        %1757 = vmatmul.f32.gmra.mxu0 %v1727
        %v1758 = vpop.f32.mrf.mxu0
        %v1759 = vadd.f32 %v1722, %v1758
        %1760 = vmatmul.f32.gmra.mxu0 %v1730
        %v1761 = vpop.f32.mrf.mxu0
        %v1762 = vadd.f32 %v1722, %v1761
        %1763 = vmatmul.f32.gmra.mxu0 %v1733
        %v1764 = vpop.f32.mrf.mxu0
        %v1765 = vadd.f32 %v1722, %v1764
        %1766 = vmatmul.f32.gmra.mxu0 %v1736
        %v1767 = vpop.f32.mrf.mxu0
        %v1768 = vadd.f32 %v1722, %v1767
        %1769 = vdwg.mxu0
        %v1770 = vmul.f32 %v1756, 0.35355338
        %v1771 = vmul.f32 %v1759, 0.35355338
        %v1772 = vmul.f32 %v1762, 0.35355338
        %v1773 = vmul.f32 %v1765, 0.35355338
        %v1774 = vmul.f32 %v1768, 0.35355338
        %1780 = vrot.lane.b32.xlu0 %v1756, 96
        %v1781 = vpop.permute.xlu0 %1780
        %1782 = vrot.lane.b32.xlu0 %v1759, 96
        %v1783 = vpop.permute.xlu0 %1782
        %1784 = vrot.lane.b32.xlu0 %v1762, 96
        %v1785 = vpop.permute.xlu0 %1784
        %1786 = vrot.lane.b32.xlu0 %v1765, 96
        %v1787 = vpop.permute.xlu0 %1786
        %1788 = vrot.lane.b32.xlu0 %v1768, 96
        %v1789 = vpop.permute.xlu0 %1788
        %vm1790 = vcmask 64512
        %v1792 = vsel %vm1790, %v1770, 0
        %v1795 = vsel %vm1790, %v1771, 0
        %v1798 = vsel %vm1790, %v1772, 0
        %v1801 = vsel %vm1790, %v1773, 0
        %v1804 = vsel %vm1790, %v1774, 0
        %v1806 = vsel %vm1790, %v1781, 0
        %v1808 = vsel %vm1790, %v1783, 0
        %v1810 = vsel %vm1790, %v1785, 0
        %v1812 = vsel %vm1790, %v1787, 0
        %v1814 = vsel %vm1790, %v1789, 0
        %1816 = vmatpush.xpose.msra.mxu0 0.0
        %1817 = vmatpush.xpose.msra.mxu0 0.0
        %1818 = vmatpush.xpose.msra.mxu0 0.0
        %1819 = vmatpush.xpose.msra.mxu0 0.0
        %1820 = vmatpush.xpose.msra.mxu0 0.0
        %1821 = vmatpush.xpose.msra.mxu0 0.0
        %1822 = vmatpush.xpose.msra.mxu0 0.0
        %1823 = vmatpush.xpose.msra.mxu0 0.0
        %1824 = vmatpush.xpose.msra.mxu0 0.0
        %1825 = vmatpush.xpose.msra.mxu0 0.0
        %1826 = vmatpush.xpose.msra.mxu0 0.0
        %1827 = vmatpush.xpose.msra.mxu0 %v1814
        %1828 = vmatpush.xpose.msra.mxu0 %v1812
        %1829 = vmatpush.xpose.msra.mxu0 %v1810
        %1830 = vmatpush.xpose.msra.mxu0 %v1808
        %1831 = vmatpush.xpose.msra.mxu0 %v1806
        %1832 = vmatmul.f32.gmra.mxu0 %v1792
        %v1833 = vpop.f32.mrf.mxu0
        %v1834 = vadd.f32 %v1580, %v1833
        %1835 = vmatmul.f32.gmra.mxu0 %v1795
        %v1836 = vpop.f32.mrf.mxu0
        %v1837 = vadd.f32 %v1581, %v1836
        %1838 = vmatmul.f32.gmra.mxu0 %v1798
        %v1839 = vpop.f32.mrf.mxu0
        %v1840 = vadd.f32 %v1582, %v1839
        %1841 = vmatmul.f32.gmra.mxu0 %v1801
        %v1842 = vpop.f32.mrf.mxu0
        %v1843 = vadd.f32 %v1583, %v1842
        %1844 = vmatmul.f32.gmra.mxu0 %v1804
        %v1845 = vpop.f32.mrf.mxu0
        %v1846 = vadd.f32 %v1584, %v1845
        %1847 = vdwg.mxu0
        %vm1848 = vcmask 326656
        %v1849 = vsel %vm1848, %v1834, -inf
        %1850 = vmax.xlane.f32.xlu0 %v1849
        %v1851 = vpop.xlane.xlu0 %1850
        %v1852 = vsel %vm1848, %v1837, -inf
        %1853 = vmax.xlane.f32.xlu0 %v1852
        %v1854 = vpop.xlane.xlu0 %1853
        %v1855 = vsel %vm1848, %v1840, -inf
        %1856 = vmax.xlane.f32.xlu0 %v1855
        %v1857 = vpop.xlane.xlu0 %1856
        %v1858 = vsel %vm1848, %v1843, -inf
        %1859 = vmax.xlane.f32.xlu0 %v1858
        %v1860 = vpop.xlane.xlu0 %1859
        %v1861 = vsel %vm1848, %v1846, -inf
        %1862 = vmax.xlane.f32.xlu0 %v1861
        %v1863 = vpop.xlane.xlu0 %1862
        %v1864 = vsub.f32 %v1834, %v1851
        %v1865 = vsub.f32 %v1837, %v1854
        %v1866 = vsub.f32 %v1840, %v1857
        %v1867 = vsub.f32 %v1843, %v1860
        %v1868 = vsub.f32 %v1846, %v1863
        %v1869 = vmul.f32 %v1864, 1.442695
        %v1870 = vpow.pop %v1869
        %v1871 = vmul.f32 %v1865, 1.442695
        %v1872 = vpow.pop %v1871
        %v1873 = vmul.f32 %v1866, 1.442695
        %v1874 = vpow.pop %v1873
        %v1875 = vmul.f32 %v1867, 1.442695
        %v1876 = vpow.pop %v1875
        %v1877 = vmul.f32 %v1868, 1.442695
        %v1878 = vpow.pop %v1877
        %v1879 = vsel %vm1848, %v1870, 0.0
        %1880 = vadd.xlane.f32.xlu0 %v1879
        %v1881 = vpop.xlane.xlu0 %1880
        %v1882 = vsel %vm1848, %v1872, 0.0
        %1883 = vadd.xlane.f32.xlu0 %v1882
        %v1884 = vpop.xlane.xlu0 %1883
        %v1885 = vsel %vm1848, %v1874, 0.0
        %1886 = vadd.xlane.f32.xlu0 %v1885
        %v1887 = vpop.xlane.xlu0 %1886
        %v1888 = vsel %vm1848, %v1876, 0.0
        %1889 = vadd.xlane.f32.xlu0 %v1888
        %v1890 = vpop.xlane.xlu0 %1889
        %v1891 = vsel %vm1848, %v1878, 0.0
        %1892 = vadd.xlane.f32.xlu0 %v1891
        %v1893 = vpop.xlane.xlu0 %1892
        %v1894 = vrcp.pop %v1881
        %v1895 = vrcp.pop %v1884
        %v1896 = vrcp.pop %v1887
        %v1897 = vrcp.pop %v1890
        %v1898 = vrcp.pop %v1893
        %v1899 = vmul.f32 %v1870, %v1894
        %v1900 = vmul.f32 %v1872, %v1895
        %v1901 = vmul.f32 %v1874, %v1896
        %v1902 = vmul.f32 %v1876, %v1897
        %v1903 = vmul.f32 %v1878, %v1898
        %1904 = vrot.lane.b32.xlu0 %v1756, 64
        %v1905 = vpop.permute.xlu0 %1904
        %1906 = vrot.lane.b32.xlu0 %v1759, 64
        %v1907 = vpop.permute.xlu0 %1906
        %1908 = vrot.lane.b32.xlu0 %v1762, 64
        %v1909 = vpop.permute.xlu0 %1908
        %1910 = vrot.lane.b32.xlu0 %v1765, 64
        %v1911 = vpop.permute.xlu0 %1910
        %1912 = vrot.lane.b32.xlu0 %v1768, 64
        %v1913 = vpop.permute.xlu0 %1912
        %v1920 = vsel %vm1848, %v1899, 0
        %v1923 = vsel %vm1848, %v1900, 0
        %v1926 = vsel %vm1848, %v1901, 0
        %v1929 = vsel %vm1848, %v1902, 0
        %v1932 = vsel %vm1848, %v1903, 0
        %1934 = vmatpush.msra.mxu0 0.0
        %1935 = vmatpush.msra.mxu0 0.0
        %1936 = vmatpush.msra.mxu0 0.0
        %1937 = vmatpush.msra.mxu0 0.0
        %1938 = vmatpush.msra.mxu0 0.0
        %1939 = vmatpush.msra.mxu0 0.0
        %1940 = vmatpush.msra.mxu0 0.0
        %1941 = vmatpush.msra.mxu0 0.0
        %1942 = vmatpush.msra.mxu0 0.0
        %1943 = vmatpush.msra.mxu0 0.0
        %1944 = vmatpush.msra.mxu0 0.0
        %1945 = vmatpush.msra.mxu0 %v1913
        %1946 = vmatpush.msra.mxu0 %v1911
        %1947 = vmatpush.msra.mxu0 %v1909
        %1948 = vmatpush.msra.mxu0 %v1907
        %1949 = vmatpush.msra.mxu0 %v1905
        %1950 = vmatmul.f32.gmra.mxu0 %v1920
        %v1951 = vpop.f32.mrf.mxu0
        %v1952 = vadd.f32 0.0, %v1951
        %1953 = vmatmul.f32.gmra.mxu0 %v1923
        %v1954 = vpop.f32.mrf.mxu0
        %v1955 = vadd.f32 0.0, %v1954
        %1956 = vmatmul.f32.gmra.mxu0 %v1926
        %v1957 = vpop.f32.mrf.mxu0
        %v1958 = vadd.f32 0.0, %v1957
        %1959 = vmatmul.f32.gmra.mxu0 %v1929
        %v1960 = vpop.f32.mrf.mxu0
        %v1961 = vadd.f32 0.0, %v1960
        %1962 = vmatmul.f32.gmra.mxu0 %v1932
        %v1963 = vpop.f32.mrf.mxu0
        %v1964 = vadd.f32 0.0, %v1963
        %1965 = vdwg.mxu0
        %1966 = vrot.lane.b32.xlu0 %v1770, 120
        %v1967 = vpop.permute.xlu0 %1966
        %1968 = vrot.lane.b32.xlu0 %v1771, 120
        %v1969 = vpop.permute.xlu0 %1968
        %1970 = vrot.lane.b32.xlu0 %v1772, 120
        %v1971 = vpop.permute.xlu0 %1970
        %1972 = vrot.lane.b32.xlu0 %v1773, 120
        %v1973 = vpop.permute.xlu0 %1972
        %1974 = vrot.lane.b32.xlu0 %v1774, 120
        %v1975 = vpop.permute.xlu0 %1974
        %1976 = vrot.lane.b32.xlu0 %v1756, 88
        %v1977 = vpop.permute.xlu0 %1976
        %1978 = vrot.lane.b32.xlu0 %v1759, 88
        %v1979 = vpop.permute.xlu0 %1978
        %1980 = vrot.lane.b32.xlu0 %v1762, 88
        %v1981 = vpop.permute.xlu0 %1980
        %1982 = vrot.lane.b32.xlu0 %v1765, 88
        %v1983 = vpop.permute.xlu0 %1982
        %1984 = vrot.lane.b32.xlu0 %v1768, 88
        %v1985 = vpop.permute.xlu0 %1984
        %v1986 = vsel %vm1790, %v1967, 0
        %v1988 = vsel %vm1790, %v1969, 0
        %v1990 = vsel %vm1790, %v1971, 0
        %v1992 = vsel %vm1790, %v1973, 0
        %v1994 = vsel %vm1790, %v1975, 0
        %v1996 = vsel %vm1790, %v1977, 0
        %v1998 = vsel %vm1790, %v1979, 0
        %v2000 = vsel %vm1790, %v1981, 0
        %v2002 = vsel %vm1790, %v1983, 0
        %v2004 = vsel %vm1790, %v1985, 0
        %2006 = vmatpush.xpose.msra.mxu0 0.0
        %2007 = vmatpush.xpose.msra.mxu0 0.0
        %2008 = vmatpush.xpose.msra.mxu0 0.0
        %2009 = vmatpush.xpose.msra.mxu0 0.0
        %2010 = vmatpush.xpose.msra.mxu0 0.0
        %2011 = vmatpush.xpose.msra.mxu0 0.0
        %2012 = vmatpush.xpose.msra.mxu0 0.0
        %2013 = vmatpush.xpose.msra.mxu0 0.0
        %2014 = vmatpush.xpose.msra.mxu0 0.0
        %2015 = vmatpush.xpose.msra.mxu0 0.0
        %2016 = vmatpush.xpose.msra.mxu0 0.0
        %2017 = vmatpush.xpose.msra.mxu0 %v2004
        %2018 = vmatpush.xpose.msra.mxu0 %v2002
        %2019 = vmatpush.xpose.msra.mxu0 %v2000
        %2020 = vmatpush.xpose.msra.mxu0 %v1998
        %2021 = vmatpush.xpose.msra.mxu0 %v1996
        %2022 = vmatmul.f32.gmra.mxu0 %v1986
        %v2023 = vpop.f32.mrf.mxu0
        %v2024 = vadd.f32 %v1580, %v2023
        %2025 = vmatmul.f32.gmra.mxu0 %v1988
        %v2026 = vpop.f32.mrf.mxu0
        %v2027 = vadd.f32 %v1581, %v2026
        %2028 = vmatmul.f32.gmra.mxu0 %v1990
        %v2029 = vpop.f32.mrf.mxu0
        %v2030 = vadd.f32 %v1582, %v2029
        %2031 = vmatmul.f32.gmra.mxu0 %v1992
        %v2032 = vpop.f32.mrf.mxu0
        %v2033 = vadd.f32 %v1583, %v2032
        %2034 = vmatmul.f32.gmra.mxu0 %v1994
        %v2035 = vpop.f32.mrf.mxu0
        %v2036 = vadd.f32 %v1584, %v2035
        %2037 = vdwg.mxu0
        %v2038 = vsel %vm1848, %v2024, -inf
        %2039 = vmax.xlane.f32.xlu0 %v2038
        %v2040 = vpop.xlane.xlu0 %2039
        %v2041 = vsel %vm1848, %v2027, -inf
        %2042 = vmax.xlane.f32.xlu0 %v2041
        %v2043 = vpop.xlane.xlu0 %2042
        %v2044 = vsel %vm1848, %v2030, -inf
        %2045 = vmax.xlane.f32.xlu0 %v2044
        %v2046 = vpop.xlane.xlu0 %2045
        %v2047 = vsel %vm1848, %v2033, -inf
        %2048 = vmax.xlane.f32.xlu0 %v2047
        %v2049 = vpop.xlane.xlu0 %2048
        %v2050 = vsel %vm1848, %v2036, -inf
        %2051 = vmax.xlane.f32.xlu0 %v2050
        %v2052 = vpop.xlane.xlu0 %2051
        %v2053 = vsub.f32 %v2024, %v2040
        %v2054 = vsub.f32 %v2027, %v2043
        %v2055 = vsub.f32 %v2030, %v2046
        %v2056 = vsub.f32 %v2033, %v2049
        %v2057 = vsub.f32 %v2036, %v2052
        %v2058 = vmul.f32 %v2053, 1.442695
        %v2059 = vpow.pop %v2058
        %v2060 = vmul.f32 %v2054, 1.442695
        %v2061 = vpow.pop %v2060
        %v2062 = vmul.f32 %v2055, 1.442695
        %v2063 = vpow.pop %v2062
        %v2064 = vmul.f32 %v2056, 1.442695
        %v2065 = vpow.pop %v2064
        %v2066 = vmul.f32 %v2057, 1.442695
        %v2067 = vpow.pop %v2066
        %v2068 = vsel %vm1848, %v2059, 0.0
        %2069 = vadd.xlane.f32.xlu0 %v2068
        %v2070 = vpop.xlane.xlu0 %2069
        %v2071 = vsel %vm1848, %v2061, 0.0
        %2072 = vadd.xlane.f32.xlu0 %v2071
        %v2073 = vpop.xlane.xlu0 %2072
        %v2074 = vsel %vm1848, %v2063, 0.0
        %2075 = vadd.xlane.f32.xlu0 %v2074
        %v2076 = vpop.xlane.xlu0 %2075
        %v2077 = vsel %vm1848, %v2065, 0.0
        %2078 = vadd.xlane.f32.xlu0 %v2077
        %v2079 = vpop.xlane.xlu0 %2078
        %v2080 = vsel %vm1848, %v2067, 0.0
        %2081 = vadd.xlane.f32.xlu0 %v2080
        %v2082 = vpop.xlane.xlu0 %2081
        %v2083 = vrcp.pop %v2070
        %v2084 = vrcp.pop %v2073
        %v2085 = vrcp.pop %v2076
        %v2086 = vrcp.pop %v2079
        %v2087 = vrcp.pop %v2082
        %v2088 = vmul.f32 %v2059, %v2083
        %v2089 = vmul.f32 %v2061, %v2084
        %v2090 = vmul.f32 %v2063, %v2085
        %v2091 = vmul.f32 %v2065, %v2086
        %v2092 = vmul.f32 %v2067, %v2087
        %2093 = vrot.lane.b32.xlu0 %v1756, 56
        %v2094 = vpop.permute.xlu0 %2093
        %2095 = vrot.lane.b32.xlu0 %v1759, 56
        %v2096 = vpop.permute.xlu0 %2095
        %2097 = vrot.lane.b32.xlu0 %v1762, 56
        %v2098 = vpop.permute.xlu0 %2097
        %2099 = vrot.lane.b32.xlu0 %v1765, 56
        %v2100 = vpop.permute.xlu0 %2099
        %2101 = vrot.lane.b32.xlu0 %v1768, 56
        %v2102 = vpop.permute.xlu0 %2101
        %v2109 = vsel %vm1848, %v2088, 0
        %v2112 = vsel %vm1848, %v2089, 0
        %v2115 = vsel %vm1848, %v2090, 0
        %v2118 = vsel %vm1848, %v2091, 0
        %v2121 = vsel %vm1848, %v2092, 0
        %2123 = vmatpush.msra.mxu0 0.0
        %2124 = vmatpush.msra.mxu0 0.0
        %2125 = vmatpush.msra.mxu0 0.0
        %2126 = vmatpush.msra.mxu0 0.0
        %2127 = vmatpush.msra.mxu0 0.0
        %2128 = vmatpush.msra.mxu0 0.0
        %2129 = vmatpush.msra.mxu0 0.0
        %2130 = vmatpush.msra.mxu0 0.0
        %2131 = vmatpush.msra.mxu0 0.0
        %2132 = vmatpush.msra.mxu0 0.0
        %2133 = vmatpush.msra.mxu0 0.0
        %2134 = vmatpush.msra.mxu0 %v2102
        %2135 = vmatpush.msra.mxu0 %v2100
        %2136 = vmatpush.msra.mxu0 %v2098
        %2137 = vmatpush.msra.mxu0 %v2096
        %2138 = vmatpush.msra.mxu0 %v2094
        %2139 = vmatmul.f32.gmra.mxu0 %v2109
        %v2140 = vpop.f32.mrf.mxu0
        %v2141 = vadd.f32 0.0, %v2140
        %2142 = vmatmul.f32.gmra.mxu0 %v2112
        %v2143 = vpop.f32.mrf.mxu0
        %v2144 = vadd.f32 0.0, %v2143
        %2145 = vmatmul.f32.gmra.mxu0 %v2115
        %v2146 = vpop.f32.mrf.mxu0
        %v2147 = vadd.f32 0.0, %v2146
        %2148 = vmatmul.f32.gmra.mxu0 %v2118
        %v2149 = vpop.f32.mrf.mxu0
        %v2150 = vadd.f32 0.0, %v2149
        %2151 = vmatmul.f32.gmra.mxu0 %v2121
        %v2152 = vpop.f32.mrf.mxu0
        %v2153 = vadd.f32 0.0, %v2152
        %2154 = vdwg.mxu0
        %2155 = vrot.lane.b32.xlu0 %v1770, 112
        %v2156 = vpop.permute.xlu0 %2155
        %2157 = vrot.lane.b32.xlu0 %v1771, 112
        %v2158 = vpop.permute.xlu0 %2157
        %2159 = vrot.lane.b32.xlu0 %v1772, 112
        %v2160 = vpop.permute.xlu0 %2159
        %2161 = vrot.lane.b32.xlu0 %v1773, 112
        %v2162 = vpop.permute.xlu0 %2161
        %2163 = vrot.lane.b32.xlu0 %v1774, 112
        %v2164 = vpop.permute.xlu0 %2163
        %2165 = vrot.lane.b32.xlu0 %v1756, 80
        %v2166 = vpop.permute.xlu0 %2165
        %2167 = vrot.lane.b32.xlu0 %v1759, 80
        %v2168 = vpop.permute.xlu0 %2167
        %2169 = vrot.lane.b32.xlu0 %v1762, 80
        %v2170 = vpop.permute.xlu0 %2169
        %2171 = vrot.lane.b32.xlu0 %v1765, 80
        %v2172 = vpop.permute.xlu0 %2171
        %2173 = vrot.lane.b32.xlu0 %v1768, 80
        %v2174 = vpop.permute.xlu0 %2173
        %v2175 = vsel %vm1790, %v2156, 0
        %v2177 = vsel %vm1790, %v2158, 0
        %v2179 = vsel %vm1790, %v2160, 0
        %v2181 = vsel %vm1790, %v2162, 0
        %v2183 = vsel %vm1790, %v2164, 0
        %v2185 = vsel %vm1790, %v2166, 0
        %v2187 = vsel %vm1790, %v2168, 0
        %v2189 = vsel %vm1790, %v2170, 0
        %v2191 = vsel %vm1790, %v2172, 0
        %v2193 = vsel %vm1790, %v2174, 0
        %2195 = vmatpush.xpose.msra.mxu0 0.0
        %2196 = vmatpush.xpose.msra.mxu0 0.0
        %2197 = vmatpush.xpose.msra.mxu0 0.0
        %2198 = vmatpush.xpose.msra.mxu0 0.0
        %2199 = vmatpush.xpose.msra.mxu0 0.0
        %2200 = vmatpush.xpose.msra.mxu0 0.0
        %2201 = vmatpush.xpose.msra.mxu0 0.0
        %2202 = vmatpush.xpose.msra.mxu0 0.0
        %2203 = vmatpush.xpose.msra.mxu0 0.0
        %2204 = vmatpush.xpose.msra.mxu0 0.0
        %2205 = vmatpush.xpose.msra.mxu0 0.0
        %2206 = vmatpush.xpose.msra.mxu0 %v2193
        %2207 = vmatpush.xpose.msra.mxu0 %v2191
        %2208 = vmatpush.xpose.msra.mxu0 %v2189
        %2209 = vmatpush.xpose.msra.mxu0 %v2187
        %2210 = vmatpush.xpose.msra.mxu0 %v2185
        %2211 = vmatmul.f32.gmra.mxu0 %v2175
        %v2212 = vpop.f32.mrf.mxu0
        %v2213 = vadd.f32 %v1580, %v2212
        %2214 = vmatmul.f32.gmra.mxu0 %v2177
        %v2215 = vpop.f32.mrf.mxu0
        %v2216 = vadd.f32 %v1581, %v2215
        %2217 = vmatmul.f32.gmra.mxu0 %v2179
        %v2218 = vpop.f32.mrf.mxu0
        %v2219 = vadd.f32 %v1582, %v2218
        %2220 = vmatmul.f32.gmra.mxu0 %v2181
        %v2221 = vpop.f32.mrf.mxu0
        %v2222 = vadd.f32 %v1583, %v2221
        %2223 = vmatmul.f32.gmra.mxu0 %v2183
        %v2224 = vpop.f32.mrf.mxu0
        %v2225 = vadd.f32 %v1584, %v2224
        %2226 = vdwg.mxu0
        %v2227 = vsel %vm1848, %v2213, -inf
        %2228 = vmax.xlane.f32.xlu0 %v2227
        %v2229 = vpop.xlane.xlu0 %2228
        %v2230 = vsel %vm1848, %v2216, -inf
        %2231 = vmax.xlane.f32.xlu0 %v2230
        %v2232 = vpop.xlane.xlu0 %2231
        %v2233 = vsel %vm1848, %v2219, -inf
        %2234 = vmax.xlane.f32.xlu0 %v2233
        %v2235 = vpop.xlane.xlu0 %2234
        %v2236 = vsel %vm1848, %v2222, -inf
        %2237 = vmax.xlane.f32.xlu0 %v2236
        %v2238 = vpop.xlane.xlu0 %2237
        %v2239 = vsel %vm1848, %v2225, -inf
        %2240 = vmax.xlane.f32.xlu0 %v2239
        %v2241 = vpop.xlane.xlu0 %2240
        %v2242 = vsub.f32 %v2213, %v2229
        %v2243 = vsub.f32 %v2216, %v2232
        %v2244 = vsub.f32 %v2219, %v2235
        %v2245 = vsub.f32 %v2222, %v2238
        %v2246 = vsub.f32 %v2225, %v2241
        %v2247 = vmul.f32 %v2242, 1.442695
        %v2248 = vpow.pop %v2247
        %v2249 = vmul.f32 %v2243, 1.442695
        %v2250 = vpow.pop %v2249
        %v2251 = vmul.f32 %v2244, 1.442695
        %v2252 = vpow.pop %v2251
        %v2253 = vmul.f32 %v2245, 1.442695
        %v2254 = vpow.pop %v2253
        %v2255 = vmul.f32 %v2246, 1.442695
        %v2256 = vpow.pop %v2255
        %v2257 = vsel %vm1848, %v2248, 0.0
        %2258 = vadd.xlane.f32.xlu0 %v2257
        %v2259 = vpop.xlane.xlu0 %2258
        %v2260 = vsel %vm1848, %v2250, 0.0
        %2261 = vadd.xlane.f32.xlu0 %v2260
        %v2262 = vpop.xlane.xlu0 %2261
        %v2263 = vsel %vm1848, %v2252, 0.0
        %2264 = vadd.xlane.f32.xlu0 %v2263
        %v2265 = vpop.xlane.xlu0 %2264
        %v2266 = vsel %vm1848, %v2254, 0.0
        %2267 = vadd.xlane.f32.xlu0 %v2266
        %v2268 = vpop.xlane.xlu0 %2267
        %v2269 = vsel %vm1848, %v2256, 0.0
        %2270 = vadd.xlane.f32.xlu0 %v2269
        %v2271 = vpop.xlane.xlu0 %2270
        %v2272 = vrcp.pop %v2259
        %v2273 = vrcp.pop %v2262
        %v2274 = vrcp.pop %v2265
        %v2275 = vrcp.pop %v2268
        %v2276 = vrcp.pop %v2271
        %v2277 = vmul.f32 %v2248, %v2272
        %v2278 = vmul.f32 %v2250, %v2273
        %v2279 = vmul.f32 %v2252, %v2274
        %v2280 = vmul.f32 %v2254, %v2275
        %v2281 = vmul.f32 %v2256, %v2276
        %2282 = vrot.lane.b32.xlu0 %v1756, 48
        %v2283 = vpop.permute.xlu0 %2282
        %2284 = vrot.lane.b32.xlu0 %v1759, 48
        %v2285 = vpop.permute.xlu0 %2284
        %2286 = vrot.lane.b32.xlu0 %v1762, 48
        %v2287 = vpop.permute.xlu0 %2286
        %2288 = vrot.lane.b32.xlu0 %v1765, 48
        %v2289 = vpop.permute.xlu0 %2288
        %2290 = vrot.lane.b32.xlu0 %v1768, 48
        %v2291 = vpop.permute.xlu0 %2290
        %v2298 = vsel %vm1848, %v2277, 0
        %v2301 = vsel %vm1848, %v2278, 0
        %v2304 = vsel %vm1848, %v2279, 0
        %v2307 = vsel %vm1848, %v2280, 0
        %v2310 = vsel %vm1848, %v2281, 0
        %2312 = vmatpush.msra.mxu0 0.0
        %2313 = vmatpush.msra.mxu0 0.0
        %2314 = vmatpush.msra.mxu0 0.0
        %2315 = vmatpush.msra.mxu0 0.0
        %2316 = vmatpush.msra.mxu0 0.0
        %2317 = vmatpush.msra.mxu0 0.0
        %2318 = vmatpush.msra.mxu0 0.0
        %2319 = vmatpush.msra.mxu0 0.0
        %2320 = vmatpush.msra.mxu0 0.0
        %2321 = vmatpush.msra.mxu0 0.0
        %2322 = vmatpush.msra.mxu0 0.0
        %2323 = vmatpush.msra.mxu0 %v2291
        %2324 = vmatpush.msra.mxu0 %v2289
        %2325 = vmatpush.msra.mxu0 %v2287
        %2326 = vmatpush.msra.mxu0 %v2285
        %2327 = vmatpush.msra.mxu0 %v2283
        %2328 = vmatmul.f32.gmra.mxu0 %v2298
        %v2329 = vpop.f32.mrf.mxu0
        %v2330 = vadd.f32 0.0, %v2329
        %2331 = vmatmul.f32.gmra.mxu0 %v2301
        %v2332 = vpop.f32.mrf.mxu0
        %v2333 = vadd.f32 0.0, %v2332
        %2334 = vmatmul.f32.gmra.mxu0 %v2304
        %v2335 = vpop.f32.mrf.mxu0
        %v2336 = vadd.f32 0.0, %v2335
        %2337 = vmatmul.f32.gmra.mxu0 %v2307
        %v2338 = vpop.f32.mrf.mxu0
        %v2339 = vadd.f32 0.0, %v2338
        %2340 = vmatmul.f32.gmra.mxu0 %v2310
        %v2341 = vpop.f32.mrf.mxu0
        %v2342 = vadd.f32 0.0, %v2341
        %2343 = vdwg.mxu0
        %2344 = vrot.lane.b32.xlu0 %v1770, 104
        %v2345 = vpop.permute.xlu0 %2344
        %2346 = vrot.lane.b32.xlu0 %v1771, 104
        %v2347 = vpop.permute.xlu0 %2346
        %2348 = vrot.lane.b32.xlu0 %v1772, 104
        %v2349 = vpop.permute.xlu0 %2348
        %2350 = vrot.lane.b32.xlu0 %v1773, 104
        %v2351 = vpop.permute.xlu0 %2350
        %2352 = vrot.lane.b32.xlu0 %v1774, 104
        %v2353 = vpop.permute.xlu0 %2352
        %2354 = vrot.lane.b32.xlu0 %v1756, 72
        %v2355 = vpop.permute.xlu0 %2354
        %2356 = vrot.lane.b32.xlu0 %v1759, 72
        %v2357 = vpop.permute.xlu0 %2356
        %2358 = vrot.lane.b32.xlu0 %v1762, 72
        %v2359 = vpop.permute.xlu0 %2358
        %2360 = vrot.lane.b32.xlu0 %v1765, 72
        %v2361 = vpop.permute.xlu0 %2360
        %2362 = vrot.lane.b32.xlu0 %v1768, 72
        %v2363 = vpop.permute.xlu0 %2362
        %v2364 = vsel %vm1790, %v2345, 0
        %v2366 = vsel %vm1790, %v2347, 0
        %v2368 = vsel %vm1790, %v2349, 0
        %v2370 = vsel %vm1790, %v2351, 0
        %v2372 = vsel %vm1790, %v2353, 0
        %v2374 = vsel %vm1790, %v2355, 0
        %v2376 = vsel %vm1790, %v2357, 0
        %v2378 = vsel %vm1790, %v2359, 0
        %v2380 = vsel %vm1790, %v2361, 0
        %v2382 = vsel %vm1790, %v2363, 0
        %2384 = vmatpush.xpose.msra.mxu0 0.0
        %2385 = vmatpush.xpose.msra.mxu0 0.0
        %2386 = vmatpush.xpose.msra.mxu0 0.0
        %2387 = vmatpush.xpose.msra.mxu0 0.0
        %2388 = vmatpush.xpose.msra.mxu0 0.0
        %2389 = vmatpush.xpose.msra.mxu0 0.0
        %2390 = vmatpush.xpose.msra.mxu0 0.0
        %2391 = vmatpush.xpose.msra.mxu0 0.0
        %2392 = vmatpush.xpose.msra.mxu0 0.0
        %2393 = vmatpush.xpose.msra.mxu0 0.0
        %2394 = vmatpush.xpose.msra.mxu0 0.0
        %2395 = vmatpush.xpose.msra.mxu0 %v2382
        %2396 = vmatpush.xpose.msra.mxu0 %v2380
        %2397 = vmatpush.xpose.msra.mxu0 %v2378
        %2398 = vmatpush.xpose.msra.mxu0 %v2376
        %2399 = vmatpush.xpose.msra.mxu0 %v2374
        %2400 = vmatmul.f32.gmra.mxu0 %v2364
        %v2401 = vpop.f32.mrf.mxu0
        %v2402 = vadd.f32 %v1580, %v2401
        %2403 = vmatmul.f32.gmra.mxu0 %v2366
        %v2404 = vpop.f32.mrf.mxu0
        %v2405 = vadd.f32 %v1581, %v2404
        %2406 = vmatmul.f32.gmra.mxu0 %v2368
        %v2407 = vpop.f32.mrf.mxu0
        %v2408 = vadd.f32 %v1582, %v2407
        %2409 = vmatmul.f32.gmra.mxu0 %v2370
        %v2410 = vpop.f32.mrf.mxu0
        %v2411 = vadd.f32 %v1583, %v2410
        %2412 = vmatmul.f32.gmra.mxu0 %v2372
        %v2413 = vpop.f32.mrf.mxu0
        %v2414 = vadd.f32 %v1584, %v2413
        %2415 = vdwg.mxu0
        %v2416 = vsel %vm1848, %v2402, -inf
        %2417 = vmax.xlane.f32.xlu0 %v2416
        %v2418 = vpop.xlane.xlu0 %2417
        %v2419 = vsel %vm1848, %v2405, -inf
        %2420 = vmax.xlane.f32.xlu0 %v2419
        %v2421 = vpop.xlane.xlu0 %2420
        %v2422 = vsel %vm1848, %v2408, -inf
        %2423 = vmax.xlane.f32.xlu0 %v2422
        %v2424 = vpop.xlane.xlu0 %2423
        %v2425 = vsel %vm1848, %v2411, -inf
        %2426 = vmax.xlane.f32.xlu0 %v2425
        %v2427 = vpop.xlane.xlu0 %2426
        %v2428 = vsel %vm1848, %v2414, -inf
        %2429 = vmax.xlane.f32.xlu0 %v2428
        %v2430 = vpop.xlane.xlu0 %2429
        %v2431 = vsub.f32 %v2402, %v2418
        %v2432 = vsub.f32 %v2405, %v2421
        %v2433 = vsub.f32 %v2408, %v2424
        %v2434 = vsub.f32 %v2411, %v2427
        %v2435 = vsub.f32 %v2414, %v2430
        %v2436 = vmul.f32 %v2431, 1.442695
        %v2437 = vpow.pop %v2436
        %v2438 = vmul.f32 %v2432, 1.442695
        %v2439 = vpow.pop %v2438
        %v2440 = vmul.f32 %v2433, 1.442695
        %v2441 = vpow.pop %v2440
        %v2442 = vmul.f32 %v2434, 1.442695
        %v2443 = vpow.pop %v2442
        %v2444 = vmul.f32 %v2435, 1.442695
        %v2445 = vpow.pop %v2444
        %v2446 = vsel %vm1848, %v2437, 0.0
        %2447 = vadd.xlane.f32.xlu0 %v2446
        %v2448 = vpop.xlane.xlu0 %2447
        %v2449 = vsel %vm1848, %v2439, 0.0
        %2450 = vadd.xlane.f32.xlu0 %v2449
        %v2451 = vpop.xlane.xlu0 %2450
        %v2452 = vsel %vm1848, %v2441, 0.0
        %2453 = vadd.xlane.f32.xlu0 %v2452
        %v2454 = vpop.xlane.xlu0 %2453
        %v2455 = vsel %vm1848, %v2443, 0.0
        %2456 = vadd.xlane.f32.xlu0 %v2455
        %v2457 = vpop.xlane.xlu0 %2456
        %v2458 = vsel %vm1848, %v2445, 0.0
        %2459 = vadd.xlane.f32.xlu0 %v2458
        %v2460 = vpop.xlane.xlu0 %2459
        %v2461 = vrcp.pop %v2448
        %v2462 = vrcp.pop %v2451
        %v2463 = vrcp.pop %v2454
        %v2464 = vrcp.pop %v2457
        %v2465 = vrcp.pop %v2460
        %v2466 = vmul.f32 %v2437, %v2461
        %v2467 = vmul.f32 %v2439, %v2462
        %v2468 = vmul.f32 %v2441, %v2463
        %v2469 = vmul.f32 %v2443, %v2464
        %v2470 = vmul.f32 %v2445, %v2465
        %2471 = vrot.lane.b32.xlu0 %v1756, 40
        %v2472 = vpop.permute.xlu0 %2471
        %2473 = vrot.lane.b32.xlu0 %v1759, 40
        %v2474 = vpop.permute.xlu0 %2473
        %2475 = vrot.lane.b32.xlu0 %v1762, 40
        %v2476 = vpop.permute.xlu0 %2475
        %2477 = vrot.lane.b32.xlu0 %v1765, 40
        %v2478 = vpop.permute.xlu0 %2477
        %2479 = vrot.lane.b32.xlu0 %v1768, 40
        %v2480 = vpop.permute.xlu0 %2479
        %v2487 = vsel %vm1848, %v2466, 0
        %v2490 = vsel %vm1848, %v2467, 0
        %v2493 = vsel %vm1848, %v2468, 0
        %v2496 = vsel %vm1848, %v2469, 0
        %v2499 = vsel %vm1848, %v2470, 0
        %2501 = vmatpush.msra.mxu0 0.0
        %2502 = vmatpush.msra.mxu0 0.0
        %2503 = vmatpush.msra.mxu0 0.0
        %2504 = vmatpush.msra.mxu0 0.0
        %2505 = vmatpush.msra.mxu0 0.0
        %2506 = vmatpush.msra.mxu0 0.0
        %2507 = vmatpush.msra.mxu0 0.0
        %2508 = vmatpush.msra.mxu0 0.0
        %2509 = vmatpush.msra.mxu0 0.0
        %2510 = vmatpush.msra.mxu0 0.0
        %2511 = vmatpush.msra.mxu0 0.0
        %2512 = vmatpush.msra.mxu0 %v2480
        %2513 = vmatpush.msra.mxu0 %v2478
        %2514 = vmatpush.msra.mxu0 %v2476
        %2515 = vmatpush.msra.mxu0 %v2474
        %2516 = vmatpush.msra.mxu0 %v2472
        %2517 = vmatmul.f32.gmra.mxu0 %v2487
        %v2518 = vpop.f32.mrf.mxu0
        %v2519 = vadd.f32 0.0, %v2518
        %2520 = vmatmul.f32.gmra.mxu0 %v2490
        %v2521 = vpop.f32.mrf.mxu0
        %v2522 = vadd.f32 0.0, %v2521
        %2523 = vmatmul.f32.gmra.mxu0 %v2493
        %v2524 = vpop.f32.mrf.mxu0
        %v2525 = vadd.f32 0.0, %v2524
        %2526 = vmatmul.f32.gmra.mxu0 %v2496
        %v2527 = vpop.f32.mrf.mxu0
        %v2528 = vadd.f32 0.0, %v2527
        %2529 = vmatmul.f32.gmra.mxu0 %v2499
        %v2530 = vpop.f32.mrf.mxu0
        %v2531 = vadd.f32 0.0, %v2530
        %2532 = vdwg.mxu0
        %2538 = vrot.lane.b32.xlu0 %v2141, 8
        %v2539 = vpop.permute.xlu0 %2538
        %2540 = vrot.lane.b32.xlu0 %v2144, 8
        %v2541 = vpop.permute.xlu0 %2540
        %2542 = vrot.lane.b32.xlu0 %v2147, 8
        %v2543 = vpop.permute.xlu0 %2542
        %2544 = vrot.lane.b32.xlu0 %v2150, 8
        %v2545 = vpop.permute.xlu0 %2544
        %2546 = vrot.lane.b32.xlu0 %v2153, 8
        %v2547 = vpop.permute.xlu0 %2546
        %2558 = vrot.lane.b32.xlu0 %v2330, 16
        %v2559 = vpop.permute.xlu0 %2558
        %2560 = vrot.lane.b32.xlu0 %v2333, 16
        %v2561 = vpop.permute.xlu0 %2560
        %2562 = vrot.lane.b32.xlu0 %v2336, 16
        %v2563 = vpop.permute.xlu0 %2562
        %2564 = vrot.lane.b32.xlu0 %v2339, 16
        %v2565 = vpop.permute.xlu0 %2564
        %2566 = vrot.lane.b32.xlu0 %v2342, 16
        %v2567 = vpop.permute.xlu0 %2566
        %2578 = vrot.lane.b32.xlu0 %v2519, 24
        %v2579 = vpop.permute.xlu0 %2578
        %2580 = vrot.lane.b32.xlu0 %v2522, 24
        %v2581 = vpop.permute.xlu0 %2580
        %2582 = vrot.lane.b32.xlu0 %v2525, 24
        %v2583 = vpop.permute.xlu0 %2582
        %2584 = vrot.lane.b32.xlu0 %v2528, 24
        %v2585 = vpop.permute.xlu0 %2584
        %2586 = vrot.lane.b32.xlu0 %v2531, 24
        %v2587 = vpop.permute.xlu0 %2586
        %v2593 = vsel %vm1790, %v1952, %v2539
        %v2594 = vsel %vm1790, %v1955, %v2541
        %v2595 = vsel %vm1790, %v1958, %v2543
        %v2596 = vsel %vm1790, %v1961, %v2545
        %v2597 = vsel %vm1790, %v1964, %v2547
        %vm2598 = vcmask 130048
        %v2599 = vsel %vm2598, %v2593, %v2559
        %v2600 = vsel %vm2598, %v2594, %v2561
        %v2601 = vsel %vm2598, %v2595, %v2563
        %v2602 = vsel %vm2598, %v2596, %v2565
        %v2603 = vsel %vm2598, %v2597, %v2567
        %vm2604 = vcmask 195584
        %v2605 = vsel %vm2604, %v2599, %v2579
        %v2606 = vsel %vm2604, %v2600, %v2581
        %v2607 = vsel %vm2604, %v2601, %v2583
        %v2608 = vsel %vm2604, %v2602, %v2585
        %v2609 = vsel %vm2604, %v2603, %v2587
        %v2610 = vld [vmem:[%s3] sm:$0xff]
        %v2611 = vld [vmem:[%s3 + $0x8] sm:$0xff]
        %v2612 = vld [vmem:[%s3 + $0x10] sm:$0xff]
        %v2613 = vld [vmem:[%s3 + $0x18] sm:$0xff]
        %v2614 = vld [vmem:[%s7 + $0x3] sm:$0x1]
        %v2615 = vperm.slane %v2614, 0
        %v2617 = vsel %vm1587, %v2605, 0
        %v2620 = vsel %vm1587, %v2606, 0
        %v2623 = vsel %vm1587, %v2607, 0
        %v2626 = vsel %vm1587, %v2608, 0
        %v2629 = vsel %vm1587, %v2609, 0
        %2631 = vmatpush.msra.mxu0 0.0
        %2632 = vmatpush.msra.mxu0 0.0
        %2633 = vmatpush.msra.mxu0 0.0
        %2634 = vmatpush.msra.mxu0 0.0
        %2635 = vmatpush.msra.mxu0 0.0
        %2636 = vmatpush.msra.mxu0 0.0
        %2637 = vmatpush.msra.mxu0 0.0
        %2638 = vmatpush.msra.mxu0 0.0
        %2639 = vmatpush.msra.mxu0 0.0
        %2640 = vmatpush.msra.mxu0 0.0
        %2641 = vmatpush.msra.mxu0 0.0
        %2642 = vmatpush.msra.mxu0 0.0
        %2643 = vmatpush.msra.mxu0 %v2613
        %2644 = vmatpush.msra.mxu0 %v2612
        %2645 = vmatpush.msra.mxu0 %v2611
        %2646 = vmatpush.msra.mxu0 %v2610
        %2647 = vmatmul.f32.gmra.mxu0 %v2617
        %v2648 = vpop.f32.mrf.mxu0
        %v2649 = vadd.f32 %v2615, %v2648
        %2650 = vmatmul.f32.gmra.mxu0 %v2620
        %v2651 = vpop.f32.mrf.mxu0
        %v2652 = vadd.f32 %v2615, %v2651
        %2653 = vmatmul.f32.gmra.mxu0 %v2623
        %v2654 = vpop.f32.mrf.mxu0
        %v2655 = vadd.f32 %v2615, %v2654
        %2656 = vmatmul.f32.gmra.mxu0 %v2626
        %v2657 = vpop.f32.mrf.mxu0
        %v2658 = vadd.f32 %v2615, %v2657
        %2659 = vmatmul.f32.gmra.mxu0 %v2629
        %v2660 = vpop.f32.mrf.mxu0
        %v2661 = vadd.f32 %v2615, %v2660
        %2662 = vdwg.mxu0
        %v2663 = vadd.f32 %v1564, %v2649
        %v2664 = vadd.f32 %v1570, %v2652
        %v2665 = vadd.f32 %v1573, %v2655
        %v2666 = vadd.f32 %v1577, %v2658
        %v2667 = vadd.f32 %v1579, %v2661
        %v2668 = vld [vmem:[%s7 + $0x4] sm:$0x1]
        %v2669 = vld [vmem:[%s7 + $0x5] sm:$0x1]
        %v2670 = vsel %vm1587, %v2663, 0.0
        %2671 = vadd.xlane.f32.xlu0 %v2670
        %v2672 = vpop.xlane.xlu0 %2671
        %v2673 = vsel %vm1587, %v2664, 0.0
        %2674 = vadd.xlane.f32.xlu0 %v2673
        %v2675 = vpop.xlane.xlu0 %2674
        %v2676 = vsel %vm1587, %v2665, 0.0
        %2677 = vadd.xlane.f32.xlu0 %v2676
        %v2678 = vpop.xlane.xlu0 %2677
        %v2679 = vsel %vm1587, %v2666, 0.0
        %2680 = vadd.xlane.f32.xlu0 %v2679
        %v2681 = vpop.xlane.xlu0 %2680
        %v2682 = vsel %vm1587, %v2667, 0.0
        %2683 = vadd.xlane.f32.xlu0 %v2682
        %v2684 = vpop.xlane.xlu0 %2683
        %v2685 = vmul.f32 %v2672, %v1609
        %v2686 = vmul.f32 %v2675, %v1609
        %v2687 = vmul.f32 %v2678, %v1609
        %v2688 = vmul.f32 %v2681, %v1609
        %v2689 = vmul.f32 %v2684, %v1609
        %v2690 = vsub.f32 %v2663, %v2685
        %v2691 = vsub.f32 %v2664, %v2686
        %v2692 = vsub.f32 %v2665, %v2687
        %v2693 = vsub.f32 %v2666, %v2688
        %v2694 = vsub.f32 %v2667, %v2689
        %v2695 = vmul.f32 %v2690, %v2690
        %v2696 = vmul.f32 %v2691, %v2691
        %v2697 = vmul.f32 %v2692, %v2692
        %v2698 = vmul.f32 %v2693, %v2693
        %v2699 = vmul.f32 %v2694, %v2694
        %v2700 = vsel %vm1587, %v2695, 0.0
        %2701 = vadd.xlane.f32.xlu0 %v2700
        %v2702 = vpop.xlane.xlu0 %2701
        %v2703 = vsel %vm1587, %v2696, 0.0
        %2704 = vadd.xlane.f32.xlu0 %v2703
        %v2705 = vpop.xlane.xlu0 %2704
        %v2706 = vsel %vm1587, %v2697, 0.0
        %2707 = vadd.xlane.f32.xlu0 %v2706
        %v2708 = vpop.xlane.xlu0 %2707
        %v2709 = vsel %vm1587, %v2698, 0.0
        %2710 = vadd.xlane.f32.xlu0 %v2709
        %v2711 = vpop.xlane.xlu0 %2710
        %v2712 = vsel %vm1587, %v2699, 0.0
        %2713 = vadd.xlane.f32.xlu0 %v2712
        %v2714 = vpop.xlane.xlu0 %2713
        %v2715 = vmul.f32 %v2702, %v1609
        %v2716 = vmul.f32 %v2705, %v1609
        %v2717 = vmul.f32 %v2708, %v1609
        %v2718 = vmul.f32 %v2711, %v1609
        %v2719 = vmul.f32 %v2714, %v1609
        %v2720 = vadd.f32 %v2715, 1e-06
        %v2721 = vadd.f32 %v2716, 1e-06
        %v2722 = vadd.f32 %v2717, 1e-06
        %v2723 = vadd.f32 %v2718, 1e-06
        %v2724 = vadd.f32 %v2719, 1e-06
        %v2725 = vrsqrt.pop %v2720
        %v2726 = vmul.f32 %v2725, %v2720
        %v2727 = vmul.f32 %v2726, %v2725
        %v2728 = vmul.f32 0.5, %v2727
        %v2729 = vsub.f32 1.5, %v2728
        %v2730 = vmul.f32 %v2725, %v2729
        %vm2731 = vweird.f32 %v2720
        %vm2732 = vweird.f32 %v2725
        %vm2733 = vmor %vm2731, %vm2732
        %v2734 = vsel %vm2733, %v2725, %v2730
        %v2735 = vrsqrt.pop %v2721
        %v2736 = vmul.f32 %v2735, %v2721
        %v2737 = vmul.f32 %v2736, %v2735
        %v2738 = vmul.f32 0.5, %v2737
        %v2739 = vsub.f32 1.5, %v2738
        %v2740 = vmul.f32 %v2735, %v2739
        %vm2741 = vweird.f32 %v2721
        %vm2742 = vweird.f32 %v2735
        %vm2743 = vmor %vm2741, %vm2742
        %v2744 = vsel %vm2743, %v2735, %v2740
        %v2745 = vrsqrt.pop %v2722
        %v2746 = vmul.f32 %v2745, %v2722
        %v2747 = vmul.f32 %v2746, %v2745
        %v2748 = vmul.f32 0.5, %v2747
        %v2749 = vsub.f32 1.5, %v2748
        %v2750 = vmul.f32 %v2745, %v2749
        %vm2751 = vweird.f32 %v2722
        %vm2752 = vweird.f32 %v2745
        %vm2753 = vmor %vm2751, %vm2752
        %v2754 = vsel %vm2753, %v2745, %v2750
        %v2755 = vrsqrt.pop %v2723
        %v2756 = vmul.f32 %v2755, %v2723
        %v2757 = vmul.f32 %v2756, %v2755
        %v2758 = vmul.f32 0.5, %v2757
        %v2759 = vsub.f32 1.5, %v2758
        %v2760 = vmul.f32 %v2755, %v2759
        %vm2761 = vweird.f32 %v2723
        %vm2762 = vweird.f32 %v2755
        %vm2763 = vmor %vm2761, %vm2762
        %v2764 = vsel %vm2763, %v2755, %v2760
        %v2765 = vrsqrt.pop %v2724
        %v2766 = vmul.f32 %v2765, %v2724
        %v2767 = vmul.f32 %v2766, %v2765
        %v2768 = vmul.f32 0.5, %v2767
        %v2769 = vsub.f32 1.5, %v2768
        %v2770 = vmul.f32 %v2765, %v2769
        %vm2771 = vweird.f32 %v2724
        %vm2772 = vweird.f32 %v2765
        %vm2773 = vmor %vm2771, %vm2772
        %v2774 = vsel %vm2773, %v2765, %v2770
        %v2775 = vmul.f32 %v2690, %v2734
        %v2776 = vmul.f32 %v2691, %v2744
        %v2777 = vmul.f32 %v2692, %v2754
        %v2778 = vmul.f32 %v2693, %v2764
        %v2779 = vmul.f32 %v2694, %v2774
        %v2780 = vperm.slane %v2668, 0
        %v2781 = vmul.f32 %v2775, %v2780
        %v2782 = vmul.f32 %v2776, %v2780
        %v2783 = vmul.f32 %v2777, %v2780
        %v2784 = vmul.f32 %v2778, %v2780
        %v2785 = vmul.f32 %v2779, %v2780
        %v2786 = vperm.slane %v2669, 0
        %v2787 = vadd.f32 %v2781, %v2786
        %v2788 = vadd.f32 %v2782, %v2786
        %v2789 = vadd.f32 %v2783, %v2786
        %v2790 = vadd.f32 %v2784, %v2786
        %v2791 = vadd.f32 %v2785, %v2786
        %v2792 = vld [vmem:[%s4] sm:$0xff]
        %v2793 = vld [vmem:[%s4 + $0x8] sm:$0xff]
        %v2794 = vld [vmem:[%s4 + $0x10] sm:$0xff]
        %v2795 = vld [vmem:[%s4 + $0x18] sm:$0xff]
        %v2796 = vld [vmem:[%s7 + $0x6] sm:$0x1]
        %v2797 = vperm.slane %v2796, 0
        %v2799 = vsel %vm1587, %v2787, 0
        %v2802 = vsel %vm1587, %v2788, 0
        %v2805 = vsel %vm1587, %v2789, 0
        %v2808 = vsel %vm1587, %v2790, 0
        %v2811 = vsel %vm1587, %v2791, 0
        %2813 = vmatpush.msra.mxu0 0.0
        %2814 = vmatpush.msra.mxu0 0.0
        %2815 = vmatpush.msra.mxu0 0.0
        %2816 = vmatpush.msra.mxu0 0.0
        %2817 = vmatpush.msra.mxu0 0.0
        %2818 = vmatpush.msra.mxu0 0.0
        %2819 = vmatpush.msra.mxu0 0.0
        %2820 = vmatpush.msra.mxu0 0.0
        %2821 = vmatpush.msra.mxu0 0.0
        %2822 = vmatpush.msra.mxu0 0.0
        %2823 = vmatpush.msra.mxu0 0.0
        %2824 = vmatpush.msra.mxu0 0.0
        %2825 = vmatpush.msra.mxu0 %v2795
        %2826 = vmatpush.msra.mxu0 %v2794
        %2827 = vmatpush.msra.mxu0 %v2793
        %2828 = vmatpush.msra.mxu0 %v2792
        %2829 = vmatmul.f32.gmra.mxu0 %v2799
        %v2830 = vpop.f32.mrf.mxu0
        %v2831 = vadd.f32 %v2797, %v2830
        %2832 = vmatmul.f32.gmra.mxu0 %v2802
        %v2833 = vpop.f32.mrf.mxu0
        %v2834 = vadd.f32 %v2797, %v2833
        %2835 = vmatmul.f32.gmra.mxu0 %v2805
        %v2836 = vpop.f32.mrf.mxu0
        %v2837 = vadd.f32 %v2797, %v2836
        %2838 = vmatmul.f32.gmra.mxu0 %v2808
        %v2839 = vpop.f32.mrf.mxu0
        %v2840 = vadd.f32 %v2797, %v2839
        %2841 = vmatmul.f32.gmra.mxu0 %v2811
        %v2842 = vpop.f32.mrf.mxu0
        %v2843 = vadd.f32 %v2797, %v2842
        %2844 = vdwg.mxu0
        %v2845 = vmul.f32 %v2831, 0.5
        %v2846 = vmul.f32 %v2834, 0.5
        %v2847 = vmul.f32 %v2837, 0.5
        %v2848 = vmul.f32 %v2840, 0.5
        %v2849 = vmul.f32 %v2843, 0.5
        %v2850 = vmul.f32 %v2831, 0.70710677
        %v2851 = vmul.f32 %v2834, 0.70710677
        %v2852 = vmul.f32 %v2837, 0.70710677
        %v2853 = vmul.f32 %v2840, 0.70710677
        %v2854 = vmul.f32 %v2843, 0.70710677
        %vm2855 = vcmp.ge.f32.partialorder %v2850, 0.0
        %vm2856 = vcmp.ge.f32.partialorder %v2851, 0.0
        %vm2857 = vcmp.ge.f32.partialorder %v2852, 0.0
        %vm2858 = vcmp.ge.f32.partialorder %v2853, 0.0
        %vm2859 = vcmp.ge.f32.partialorder %v2854, 0.0
        %v2860 = vsel %vm2855, 1.0, -1.0
        %v2861 = vsel %vm2856, 1.0, -1.0
        %v2862 = vsel %vm2857, 1.0, -1.0
        %v2863 = vsel %vm2858, 1.0, -1.0
        %v2864 = vsel %vm2859, 1.0, -1.0
        %v2865 = vand.u32 2147483647, %v2850
        %v2866 = vand.u32 2147483647, %v2851
        %v2867 = vand.u32 2147483647, %v2852
        %v2868 = vand.u32 2147483647, %v2853
        %v2869 = vand.u32 2147483647, %v2854
        %v2870 = vmul.f32 %v2865, 0.3275911
        %v2871 = vmul.f32 %v2866, 0.3275911
        %v2872 = vmul.f32 %v2867, 0.3275911
        %v2873 = vmul.f32 %v2868, 0.3275911
        %v2874 = vmul.f32 %v2869, 0.3275911
        %v2875 = vadd.f32 %v2870, 1.0
        %v2876 = vadd.f32 %v2871, 1.0
        %v2877 = vadd.f32 %v2872, 1.0
        %v2878 = vadd.f32 %v2873, 1.0
        %v2879 = vadd.f32 %v2874, 1.0
        %v2880 = vrcp.pop %v2875
        %v2881 = vmul.f32 %v2875, %v2880
        %v2882 = vsub.f32 1.0, %v2881
        %v2883 = vmul.f32 %v2880, %v2882
        %v2884 = vadd.f32 %v2880, %v2883
        %vm2885 = vweird.f32 %v2875
        %vm2886 = vweird.f32 %v2880
        %vm2887 = vmor %vm2885, %vm2886
        %v2888 = vsel %vm2887, %v2880, %v2884
        %v2889 = vand.u32 2147483647, %v2875
        %vm2890 = vcmp.eq.f32.partialorder %v2889, 8.507059e+37
        %v2891 = vand.u32 %v2875, 2147483648
        %v2892 = vor.u32 1.1754944e-38, %v2891
        %v2893 = vsel %vm2890, %v2892, %v2888
        %v2894 = vmul.f32 1.0, %v2893
        %v2895 = vrcp.pop %v2876
        %v2896 = vmul.f32 %v2876, %v2895
        %v2897 = vsub.f32 1.0, %v2896
        %v2898 = vmul.f32 %v2895, %v2897
        %v2899 = vadd.f32 %v2895, %v2898
        %vm2900 = vweird.f32 %v2876
        %vm2901 = vweird.f32 %v2895
        %vm2902 = vmor %vm2900, %vm2901
        %v2903 = vsel %vm2902, %v2895, %v2899
        %v2904 = vand.u32 2147483647, %v2876
        %vm2905 = vcmp.eq.f32.partialorder %v2904, 8.507059e+37
        %v2906 = vand.u32 %v2876, 2147483648
        %v2907 = vor.u32 1.1754944e-38, %v2906
        %v2908 = vsel %vm2905, %v2907, %v2903
        %v2909 = vmul.f32 1.0, %v2908
        %v2910 = vrcp.pop %v2877
        %v2911 = vmul.f32 %v2877, %v2910
        %v2912 = vsub.f32 1.0, %v2911
        %v2913 = vmul.f32 %v2910, %v2912
        %v2914 = vadd.f32 %v2910, %v2913
        %vm2915 = vweird.f32 %v2877
        %vm2916 = vweird.f32 %v2910
        %vm2917 = vmor %vm2915, %vm2916
        %v2918 = vsel %vm2917, %v2910, %v2914
        %v2919 = vand.u32 2147483647, %v2877
        %vm2920 = vcmp.eq.f32.partialorder %v2919, 8.507059e+37
        %v2921 = vand.u32 %v2877, 2147483648
        %v2922 = vor.u32 1.1754944e-38, %v2921
        %v2923 = vsel %vm2920, %v2922, %v2918
        %v2924 = vmul.f32 1.0, %v2923
        %v2925 = vrcp.pop %v2878
        %v2926 = vmul.f32 %v2878, %v2925
        %v2927 = vsub.f32 1.0, %v2926
        %v2928 = vmul.f32 %v2925, %v2927
        %v2929 = vadd.f32 %v2925, %v2928
        %vm2930 = vweird.f32 %v2878
        %vm2931 = vweird.f32 %v2925
        %vm2932 = vmor %vm2930, %vm2931
        %v2933 = vsel %vm2932, %v2925, %v2929
        %v2934 = vand.u32 2147483647, %v2878
        %vm2935 = vcmp.eq.f32.partialorder %v2934, 8.507059e+37
        %v2936 = vand.u32 %v2878, 2147483648
        %v2937 = vor.u32 1.1754944e-38, %v2936
        %v2938 = vsel %vm2935, %v2937, %v2933
        %v2939 = vmul.f32 1.0, %v2938
        %v2940 = vrcp.pop %v2879
        %v2941 = vmul.f32 %v2879, %v2940
        %v2942 = vsub.f32 1.0, %v2941
        %v2943 = vmul.f32 %v2940, %v2942
        %v2944 = vadd.f32 %v2940, %v2943
        %vm2945 = vweird.f32 %v2879
        %vm2946 = vweird.f32 %v2940
        %vm2947 = vmor %vm2945, %vm2946
        %v2948 = vsel %vm2947, %v2940, %v2944
        %v2949 = vand.u32 2147483647, %v2879
        %vm2950 = vcmp.eq.f32.partialorder %v2949, 8.507059e+37
        %v2951 = vand.u32 %v2879, 2147483648
        %v2952 = vor.u32 1.1754944e-38, %v2951
        %v2953 = vsel %vm2950, %v2952, %v2948
        %v2954 = vmul.f32 1.0, %v2953
        %v2955 = vmul.f32 %v2894, 1.0614054
        %v2956 = vmul.f32 %v2909, 1.0614054
        %v2957 = vmul.f32 %v2924, 1.0614054
        %v2958 = vmul.f32 %v2939, 1.0614054
        %v2959 = vmul.f32 %v2954, 1.0614054
        %v2960 = vadd.f32 %v2955, -1.4531521
        %v2961 = vadd.f32 %v2956, -1.4531521
        %v2962 = vadd.f32 %v2957, -1.4531521
        %v2963 = vadd.f32 %v2958, -1.4531521
        %v2964 = vadd.f32 %v2959, -1.4531521
        %v2965 = vmul.f32 %v2960, %v2894
        %v2966 = vmul.f32 %v2961, %v2909
        %v2967 = vmul.f32 %v2962, %v2924
        %v2968 = vmul.f32 %v2963, %v2939
        %v2969 = vmul.f32 %v2964, %v2954
        %v2970 = vadd.f32 %v2965, 1.4214138
        %v2971 = vadd.f32 %v2966, 1.4214138
        %v2972 = vadd.f32 %v2967, 1.4214138
        %v2973 = vadd.f32 %v2968, 1.4214138
        %v2974 = vadd.f32 %v2969, 1.4214138
        %v2975 = vmul.f32 %v2970, %v2894
        %v2976 = vmul.f32 %v2971, %v2909
        %v2977 = vmul.f32 %v2972, %v2924
        %v2978 = vmul.f32 %v2973, %v2939
        %v2979 = vmul.f32 %v2974, %v2954
        %v2980 = vadd.f32 %v2975, -0.28449672
        %v2981 = vadd.f32 %v2976, -0.28449672
        %v2982 = vadd.f32 %v2977, -0.28449672
        %v2983 = vadd.f32 %v2978, -0.28449672
        %v2984 = vadd.f32 %v2979, -0.28449672
        %v2985 = vmul.f32 %v2980, %v2894
        %v2986 = vmul.f32 %v2981, %v2909
        %v2987 = vmul.f32 %v2982, %v2924
        %v2988 = vmul.f32 %v2983, %v2939
        %v2989 = vmul.f32 %v2984, %v2954
        %v2990 = vadd.f32 %v2985, 0.2548296
        %v2991 = vadd.f32 %v2986, 0.2548296
        %v2992 = vadd.f32 %v2987, 0.2548296
        %v2993 = vadd.f32 %v2988, 0.2548296
        %v2994 = vadd.f32 %v2989, 0.2548296
        %v2995 = vmul.f32 %v2990, %v2894
        %v2996 = vmul.f32 %v2991, %v2909
        %v2997 = vmul.f32 %v2992, %v2924
        %v2998 = vmul.f32 %v2993, %v2939
        %v2999 = vmul.f32 %v2994, %v2954
        %v3000 = vsub.f32 0.0, %v2865
        %v3001 = vsub.f32 0.0, %v2866
        %v3002 = vsub.f32 0.0, %v2867
        %v3003 = vsub.f32 0.0, %v2868
        %v3004 = vsub.f32 0.0, %v2869
        %v3005 = vmul.f32 %v3000, %v2865
        %v3006 = vmul.f32 %v3001, %v2866
        %v3007 = vmul.f32 %v3002, %v2867
        %v3008 = vmul.f32 %v3003, %v2868
        %v3009 = vmul.f32 %v3004, %v2869
        %v3010 = vmul.f32 %v3005, 1.442695
        %v3011 = vpow.pop %v3010
        %v3012 = vmul.f32 %v3006, 1.442695
        %v3013 = vpow.pop %v3012
        %v3014 = vmul.f32 %v3007, 1.442695
        %v3015 = vpow.pop %v3014
        %v3016 = vmul.f32 %v3008, 1.442695
        %v3017 = vpow.pop %v3016
        %v3018 = vmul.f32 %v3009, 1.442695
        %v3019 = vpow.pop %v3018
        %v3020 = vmul.f32 %v2995, %v3011
        %v3021 = vmul.f32 %v2996, %v3013
        %v3022 = vmul.f32 %v2997, %v3015
        %v3023 = vmul.f32 %v2998, %v3017
        %v3024 = vmul.f32 %v2999, %v3019
        %v3025 = vsub.f32 1.0, %v3020
        %v3026 = vsub.f32 1.0, %v3021
        %v3027 = vsub.f32 1.0, %v3022
        %v3028 = vsub.f32 1.0, %v3023
        %v3029 = vsub.f32 1.0, %v3024
        %v3030 = vmul.f32 %v2860, %v3025
        %v3031 = vmul.f32 %v2861, %v3026
        %v3032 = vmul.f32 %v2862, %v3027
        %v3033 = vmul.f32 %v2863, %v3028
        %v3034 = vmul.f32 %v2864, %v3029
        %v3035 = vadd.f32 %v3030, 1.0
        %v3036 = vadd.f32 %v3031, 1.0
        %v3037 = vadd.f32 %v3032, 1.0
        %v3038 = vadd.f32 %v3033, 1.0
        %v3039 = vadd.f32 %v3034, 1.0
        %v3040 = vmul.f32 %v2845, %v3035
        %v3041 = vmul.f32 %v2846, %v3036
        %v3042 = vmul.f32 %v2847, %v3037
        %v3043 = vmul.f32 %v2848, %v3038
        %v3044 = vmul.f32 %v2849, %v3039
        %v3045 = vld [vmem:[%s5] sm:$0xff]
        %v3046 = vld [vmem:[%s5 + $0x8] sm:$0xff]
        %v3047 = vld [vmem:[%s5 + $0x10] sm:$0xff]
        %v3048 = vld [vmem:[%s5 + $0x18] sm:$0xff]
        %v3049 = vld [vmem:[%s5 + $0x20] sm:$0xff]
        %v3050 = vld [vmem:[%s5 + $0x28] sm:$0xff]
        %v3051 = vld [vmem:[%s5 + $0x30] sm:$0xff]
        %v3052 = vld [vmem:[%s5 + $0x38] sm:$0xff]
        %v3053 = vld [vmem:[%s7 + $0x7] sm:$0x1]
        %v3054 = vperm.slane %v3053, 0
        %vm3055 = vcmask 523264
        %v3057 = vsel %vm3055, %v3040, 0
        %v3060 = vsel %vm3055, %v3041, 0
        %v3063 = vsel %vm3055, %v3042, 0
        %v3066 = vsel %vm3055, %v3043, 0
        %v3069 = vsel %vm3055, %v3044, 0
        %3071 = vmatpush.msra.mxu0 0.0
        %3072 = vmatpush.msra.mxu0 0.0
        %3073 = vmatpush.msra.mxu0 0.0
        %3074 = vmatpush.msra.mxu0 0.0
        %3075 = vmatpush.msra.mxu0 0.0
        %3076 = vmatpush.msra.mxu0 0.0
        %3077 = vmatpush.msra.mxu0 0.0
        %3078 = vmatpush.msra.mxu0 0.0
        %3079 = vmatpush.msra.mxu0 %v3052
        %3080 = vmatpush.msra.mxu0 %v3051
        %3081 = vmatpush.msra.mxu0 %v3050
        %3082 = vmatpush.msra.mxu0 %v3049
        %3083 = vmatpush.msra.mxu0 %v3048
        %3084 = vmatpush.msra.mxu0 %v3047
        %3085 = vmatpush.msra.mxu0 %v3046
        %3086 = vmatpush.msra.mxu0 %v3045
        %3087 = vmatmul.f32.gmra.mxu0 %v3057
        %v3088 = vpop.f32.mrf.mxu0
        %v3089 = vadd.f32 %v3054, %v3088
        %3090 = vmatmul.f32.gmra.mxu0 %v3060
        %v3091 = vpop.f32.mrf.mxu0
        %v3092 = vadd.f32 %v3054, %v3091
        %3093 = vmatmul.f32.gmra.mxu0 %v3063
        %v3094 = vpop.f32.mrf.mxu0
        %v3095 = vadd.f32 %v3054, %v3094
        %3096 = vmatmul.f32.gmra.mxu0 %v3066
        %v3097 = vpop.f32.mrf.mxu0
        %v3098 = vadd.f32 %v3054, %v3097
        %3099 = vmatmul.f32.gmra.mxu0 %v3069
        %v3100 = vpop.f32.mrf.mxu0
        %v3101 = vadd.f32 %v3054, %v3100
        %3102 = vdwg.mxu0
        %v3103 = vadd.f32 %v2663, %v3089
        %v3104 = vadd.f32 %v2664, %v3092
        %v3105 = vadd.f32 %v2665, %v3095
        %v3106 = vadd.f32 %v2666, %v3098
        %v3107 = vadd.f32 %v2667, %v3101
        %v3108 = vld [vmem:[%s7 + $0x8] sm:$0x1]
        %v3109 = vld [vmem:[%s7 + $0x9] sm:$0x1]
        %v3110 = vsel %vm1587, %v3103, 0.0
        %3111 = vadd.xlane.f32.xlu0 %v3110
        %v3112 = vpop.xlane.xlu0 %3111
        %v3113 = vsel %vm1587, %v3104, 0.0
        %3114 = vadd.xlane.f32.xlu0 %v3113
        %v3115 = vpop.xlane.xlu0 %3114
        %v3116 = vsel %vm1587, %v3105, 0.0
        %3117 = vadd.xlane.f32.xlu0 %v3116
        %v3118 = vpop.xlane.xlu0 %3117
        %v3119 = vsel %vm1587, %v3106, 0.0
        %3120 = vadd.xlane.f32.xlu0 %v3119
        %v3121 = vpop.xlane.xlu0 %3120
        %v3122 = vsel %vm1587, %v3107, 0.0
        %3123 = vadd.xlane.f32.xlu0 %v3122
        %v3124 = vpop.xlane.xlu0 %3123
        %v3125 = vmul.f32 %v3112, %v1609
        %v3126 = vmul.f32 %v3115, %v1609
        %v3127 = vmul.f32 %v3118, %v1609
        %v3128 = vmul.f32 %v3121, %v1609
        %v3129 = vmul.f32 %v3124, %v1609
        %v3130 = vsub.f32 %v3103, %v3125
        %v3131 = vsub.f32 %v3104, %v3126
        %v3132 = vsub.f32 %v3105, %v3127
        %v3133 = vsub.f32 %v3106, %v3128
        %v3134 = vsub.f32 %v3107, %v3129
        %v3135 = vmul.f32 %v3130, %v3130
        %v3136 = vmul.f32 %v3131, %v3131
        %v3137 = vmul.f32 %v3132, %v3132
        %v3138 = vmul.f32 %v3133, %v3133
        %v3139 = vmul.f32 %v3134, %v3134
        %v3140 = vsel %vm1587, %v3135, 0.0
        %3141 = vadd.xlane.f32.xlu0 %v3140
        %v3142 = vpop.xlane.xlu0 %3141
        %v3143 = vsel %vm1587, %v3136, 0.0
        %3144 = vadd.xlane.f32.xlu0 %v3143
        %v3145 = vpop.xlane.xlu0 %3144
        %v3146 = vsel %vm1587, %v3137, 0.0
        %3147 = vadd.xlane.f32.xlu0 %v3146
        %v3148 = vpop.xlane.xlu0 %3147
        %v3149 = vsel %vm1587, %v3138, 0.0
        %3150 = vadd.xlane.f32.xlu0 %v3149
        %v3151 = vpop.xlane.xlu0 %3150
        %v3152 = vsel %vm1587, %v3139, 0.0
        %3153 = vadd.xlane.f32.xlu0 %v3152
        %v3154 = vpop.xlane.xlu0 %3153
        %v3155 = vmul.f32 %v3142, %v1609
        %v3156 = vmul.f32 %v3145, %v1609
        %v3157 = vmul.f32 %v3148, %v1609
        %v3158 = vmul.f32 %v3151, %v1609
        %v3159 = vmul.f32 %v3154, %v1609
        %v3160 = vadd.f32 %v3155, 1e-06
        %v3161 = vadd.f32 %v3156, 1e-06
        %v3162 = vadd.f32 %v3157, 1e-06
        %v3163 = vadd.f32 %v3158, 1e-06
        %v3164 = vadd.f32 %v3159, 1e-06
        %v3165 = vrsqrt.pop %v3160
        %v3166 = vmul.f32 %v3165, %v3160
        %v3167 = vmul.f32 %v3166, %v3165
        %v3168 = vmul.f32 0.5, %v3167
        %v3169 = vsub.f32 1.5, %v3168
        %v3170 = vmul.f32 %v3165, %v3169
        %vm3171 = vweird.f32 %v3160
        %vm3172 = vweird.f32 %v3165
        %vm3173 = vmor %vm3171, %vm3172
        %v3174 = vsel %vm3173, %v3165, %v3170
        %v3175 = vrsqrt.pop %v3161
        %v3176 = vmul.f32 %v3175, %v3161
        %v3177 = vmul.f32 %v3176, %v3175
        %v3178 = vmul.f32 0.5, %v3177
        %v3179 = vsub.f32 1.5, %v3178
        %v3180 = vmul.f32 %v3175, %v3179
        %vm3181 = vweird.f32 %v3161
        %vm3182 = vweird.f32 %v3175
        %vm3183 = vmor %vm3181, %vm3182
        %v3184 = vsel %vm3183, %v3175, %v3180
        %v3185 = vrsqrt.pop %v3162
        %v3186 = vmul.f32 %v3185, %v3162
        %v3187 = vmul.f32 %v3186, %v3185
        %v3188 = vmul.f32 0.5, %v3187
        %v3189 = vsub.f32 1.5, %v3188
        %v3190 = vmul.f32 %v3185, %v3189
        %vm3191 = vweird.f32 %v3162
        %vm3192 = vweird.f32 %v3185
        %vm3193 = vmor %vm3191, %vm3192
        %v3194 = vsel %vm3193, %v3185, %v3190
        %v3195 = vrsqrt.pop %v3163
        %v3196 = vmul.f32 %v3195, %v3163
        %v3197 = vmul.f32 %v3196, %v3195
        %v3198 = vmul.f32 0.5, %v3197
        %v3199 = vsub.f32 1.5, %v3198
        %v3200 = vmul.f32 %v3195, %v3199
        %vm3201 = vweird.f32 %v3163
        %vm3202 = vweird.f32 %v3195
        %vm3203 = vmor %vm3201, %vm3202
        %v3204 = vsel %vm3203, %v3195, %v3200
        %v3205 = vrsqrt.pop %v3164
        %v3206 = vmul.f32 %v3205, %v3164
        %v3207 = vmul.f32 %v3206, %v3205
        %v3208 = vmul.f32 0.5, %v3207
        %v3209 = vsub.f32 1.5, %v3208
        %v3210 = vmul.f32 %v3205, %v3209
        %vm3211 = vweird.f32 %v3164
        %vm3212 = vweird.f32 %v3205
        %vm3213 = vmor %vm3211, %vm3212
        %v3214 = vsel %vm3213, %v3205, %v3210
        %v3215 = vmul.f32 %v3130, %v3174
        %v3216 = vmul.f32 %v3131, %v3184
        %v3217 = vmul.f32 %v3132, %v3194
        %v3218 = vmul.f32 %v3133, %v3204
        %v3219 = vmul.f32 %v3134, %v3214
        %v3220 = vperm.slane %v3108, 0
        %v3221 = vmul.f32 %v3215, %v3220
        %v3222 = vmul.f32 %v3216, %v3220
        %v3223 = vmul.f32 %v3217, %v3220
        %v3224 = vmul.f32 %v3218, %v3220
        %v3225 = vmul.f32 %v3219, %v3220
        %v3226 = vperm.slane %v3109, 0
        %v3227 = vadd.f32 %v3221, %v3226
        %v3228 = vadd.f32 %v3222, %v3226
        %v3229 = vadd.f32 %v3223, %v3226
        %v3230 = vadd.f32 %v3224, %v3226
        %v3231 = vadd.f32 %v3225, %v3226
        %s3232 = scalar_lea.vmem %s2, 32
        %v3233 = vld [vmem:[%s3232] sm:$0xff]
        %v3234 = vld [vmem:[%s3232 + $0x8] sm:$0xff]
        %v3235 = vld [vmem:[%s3232 + $0x10] sm:$0xff]
        %v3236 = vld [vmem:[%s3232 + $0x18] sm:$0xff]
        %v3237 = vld [vmem:[%s7 + $0xa] sm:$0x1]
        %v3238 = vperm.slane %v3237, 0
        %v3240 = vsel %vm1587, %v3227, 0
        %v3243 = vsel %vm1587, %v3228, 0
        %v3246 = vsel %vm1587, %v3229, 0
        %v3249 = vsel %vm1587, %v3230, 0
        %v3252 = vsel %vm1587, %v3231, 0
        %3254 = vmatpush.msra.mxu0 0.0
        %3255 = vmatpush.msra.mxu0 0.0
        %3256 = vmatpush.msra.mxu0 0.0
        %3257 = vmatpush.msra.mxu0 0.0
        %3258 = vmatpush.msra.mxu0 0.0
        %3259 = vmatpush.msra.mxu0 0.0
        %3260 = vmatpush.msra.mxu0 0.0
        %3261 = vmatpush.msra.mxu0 0.0
        %3262 = vmatpush.msra.mxu0 0.0
        %3263 = vmatpush.msra.mxu0 0.0
        %3264 = vmatpush.msra.mxu0 0.0
        %3265 = vmatpush.msra.mxu0 0.0
        %3266 = vmatpush.msra.mxu0 %v3236
        %3267 = vmatpush.msra.mxu0 %v3235
        %3268 = vmatpush.msra.mxu0 %v3234
        %3269 = vmatpush.msra.mxu0 %v3233
        %3270 = vmatmul.f32.gmra.mxu0 %v3240
        %v3271 = vpop.f32.mrf.mxu0
        %v3272 = vadd.f32 %v3238, %v3271
        %3273 = vmatmul.f32.gmra.mxu0 %v3243
        %v3274 = vpop.f32.mrf.mxu0
        %v3275 = vadd.f32 %v3238, %v3274
        %3276 = vmatmul.f32.gmra.mxu0 %v3246
        %v3277 = vpop.f32.mrf.mxu0
        %v3278 = vadd.f32 %v3238, %v3277
        %3279 = vmatmul.f32.gmra.mxu0 %v3249
        %v3280 = vpop.f32.mrf.mxu0
        %v3281 = vadd.f32 %v3238, %v3280
        %3282 = vmatmul.f32.gmra.mxu0 %v3252
        %v3283 = vpop.f32.mrf.mxu0
        %v3284 = vadd.f32 %v3238, %v3283
        %3285 = vdwg.mxu0
        %v3286 = vmul.f32 %v3272, 0.35355338
        %v3287 = vmul.f32 %v3275, 0.35355338
        %v3288 = vmul.f32 %v3278, 0.35355338
        %v3289 = vmul.f32 %v3281, 0.35355338
        %v3290 = vmul.f32 %v3284, 0.35355338
        %3296 = vrot.lane.b32.xlu0 %v3272, 96
        %v3297 = vpop.permute.xlu0 %3296
        %3298 = vrot.lane.b32.xlu0 %v3275, 96
        %v3299 = vpop.permute.xlu0 %3298
        %3300 = vrot.lane.b32.xlu0 %v3278, 96
        %v3301 = vpop.permute.xlu0 %3300
        %3302 = vrot.lane.b32.xlu0 %v3281, 96
        %v3303 = vpop.permute.xlu0 %3302
        %3304 = vrot.lane.b32.xlu0 %v3284, 96
        %v3305 = vpop.permute.xlu0 %3304
        %v3307 = vsel %vm1790, %v3286, 0
        %v3310 = vsel %vm1790, %v3287, 0
        %v3313 = vsel %vm1790, %v3288, 0
        %v3316 = vsel %vm1790, %v3289, 0
        %v3319 = vsel %vm1790, %v3290, 0
        %v3321 = vsel %vm1790, %v3297, 0
        %v3323 = vsel %vm1790, %v3299, 0
        %v3325 = vsel %vm1790, %v3301, 0
        %v3327 = vsel %vm1790, %v3303, 0
        %v3329 = vsel %vm1790, %v3305, 0
        %3331 = vmatpush.xpose.msra.mxu0 0.0
        %3332 = vmatpush.xpose.msra.mxu0 0.0
        %3333 = vmatpush.xpose.msra.mxu0 0.0
        %3334 = vmatpush.xpose.msra.mxu0 0.0
        %3335 = vmatpush.xpose.msra.mxu0 0.0
        %3336 = vmatpush.xpose.msra.mxu0 0.0
        %3337 = vmatpush.xpose.msra.mxu0 0.0
        %3338 = vmatpush.xpose.msra.mxu0 0.0
        %3339 = vmatpush.xpose.msra.mxu0 0.0
        %3340 = vmatpush.xpose.msra.mxu0 0.0
        %3341 = vmatpush.xpose.msra.mxu0 0.0
        %3342 = vmatpush.xpose.msra.mxu0 %v3329
        %3343 = vmatpush.xpose.msra.mxu0 %v3327
        %3344 = vmatpush.xpose.msra.mxu0 %v3325
        %3345 = vmatpush.xpose.msra.mxu0 %v3323
        %3346 = vmatpush.xpose.msra.mxu0 %v3321
        %3347 = vmatmul.f32.gmra.mxu0 %v3307
        %v3348 = vpop.f32.mrf.mxu0
        %v3349 = vadd.f32 %v1580, %v3348
        %3350 = vmatmul.f32.gmra.mxu0 %v3310
        %v3351 = vpop.f32.mrf.mxu0
        %v3352 = vadd.f32 %v1581, %v3351
        %3353 = vmatmul.f32.gmra.mxu0 %v3313
        %v3354 = vpop.f32.mrf.mxu0
        %v3355 = vadd.f32 %v1582, %v3354
        %3356 = vmatmul.f32.gmra.mxu0 %v3316
        %v3357 = vpop.f32.mrf.mxu0
        %v3358 = vadd.f32 %v1583, %v3357
        %3359 = vmatmul.f32.gmra.mxu0 %v3319
        %v3360 = vpop.f32.mrf.mxu0
        %v3361 = vadd.f32 %v1584, %v3360
        %3362 = vdwg.mxu0
        %v3363 = vsel %vm1848, %v3349, -inf
        %3364 = vmax.xlane.f32.xlu0 %v3363
        %v3365 = vpop.xlane.xlu0 %3364
        %v3366 = vsel %vm1848, %v3352, -inf
        %3367 = vmax.xlane.f32.xlu0 %v3366
        %v3368 = vpop.xlane.xlu0 %3367
        %v3369 = vsel %vm1848, %v3355, -inf
        %3370 = vmax.xlane.f32.xlu0 %v3369
        %v3371 = vpop.xlane.xlu0 %3370
        %v3372 = vsel %vm1848, %v3358, -inf
        %3373 = vmax.xlane.f32.xlu0 %v3372
        %v3374 = vpop.xlane.xlu0 %3373
        %v3375 = vsel %vm1848, %v3361, -inf
        %3376 = vmax.xlane.f32.xlu0 %v3375
        %v3377 = vpop.xlane.xlu0 %3376
        %v3378 = vsub.f32 %v3349, %v3365
        %v3379 = vsub.f32 %v3352, %v3368
        %v3380 = vsub.f32 %v3355, %v3371
        %v3381 = vsub.f32 %v3358, %v3374
        %v3382 = vsub.f32 %v3361, %v3377
        %v3383 = vmul.f32 %v3378, 1.442695
        %v3384 = vpow.pop %v3383
        %v3385 = vmul.f32 %v3379, 1.442695
        %v3386 = vpow.pop %v3385
        %v3387 = vmul.f32 %v3380, 1.442695
        %v3388 = vpow.pop %v3387
        %v3389 = vmul.f32 %v3381, 1.442695
        %v3390 = vpow.pop %v3389
        %v3391 = vmul.f32 %v3382, 1.442695
        %v3392 = vpow.pop %v3391
        %v3393 = vsel %vm1848, %v3384, 0.0
        %3394 = vadd.xlane.f32.xlu0 %v3393
        %v3395 = vpop.xlane.xlu0 %3394
        %v3396 = vsel %vm1848, %v3386, 0.0
        %3397 = vadd.xlane.f32.xlu0 %v3396
        %v3398 = vpop.xlane.xlu0 %3397
        %v3399 = vsel %vm1848, %v3388, 0.0
        %3400 = vadd.xlane.f32.xlu0 %v3399
        %v3401 = vpop.xlane.xlu0 %3400
        %v3402 = vsel %vm1848, %v3390, 0.0
        %3403 = vadd.xlane.f32.xlu0 %v3402
        %v3404 = vpop.xlane.xlu0 %3403
        %v3405 = vsel %vm1848, %v3392, 0.0
        %3406 = vadd.xlane.f32.xlu0 %v3405
        %v3407 = vpop.xlane.xlu0 %3406
        %v3408 = vrcp.pop %v3395
        %v3409 = vrcp.pop %v3398
        %v3410 = vrcp.pop %v3401
        %v3411 = vrcp.pop %v3404
        %v3412 = vrcp.pop %v3407
        %v3413 = vmul.f32 %v3384, %v3408
        %v3414 = vmul.f32 %v3386, %v3409
        %v3415 = vmul.f32 %v3388, %v3410
        %v3416 = vmul.f32 %v3390, %v3411
        %v3417 = vmul.f32 %v3392, %v3412
        %3418 = vrot.lane.b32.xlu0 %v3272, 64
        %v3419 = vpop.permute.xlu0 %3418
        %3420 = vrot.lane.b32.xlu0 %v3275, 64
        %v3421 = vpop.permute.xlu0 %3420
        %3422 = vrot.lane.b32.xlu0 %v3278, 64
        %v3423 = vpop.permute.xlu0 %3422
        %3424 = vrot.lane.b32.xlu0 %v3281, 64
        %v3425 = vpop.permute.xlu0 %3424
        %3426 = vrot.lane.b32.xlu0 %v3284, 64
        %v3427 = vpop.permute.xlu0 %3426
        %v3434 = vsel %vm1848, %v3413, 0
        %v3437 = vsel %vm1848, %v3414, 0
        %v3440 = vsel %vm1848, %v3415, 0
        %v3443 = vsel %vm1848, %v3416, 0
        %v3446 = vsel %vm1848, %v3417, 0
        %3448 = vmatpush.msra.mxu0 0.0
        %3449 = vmatpush.msra.mxu0 0.0
        %3450 = vmatpush.msra.mxu0 0.0
        %3451 = vmatpush.msra.mxu0 0.0
        %3452 = vmatpush.msra.mxu0 0.0
        %3453 = vmatpush.msra.mxu0 0.0
        %3454 = vmatpush.msra.mxu0 0.0
        %3455 = vmatpush.msra.mxu0 0.0
        %3456 = vmatpush.msra.mxu0 0.0
        %3457 = vmatpush.msra.mxu0 0.0
        %3458 = vmatpush.msra.mxu0 0.0
        %3459 = vmatpush.msra.mxu0 %v3427
        %3460 = vmatpush.msra.mxu0 %v3425
        %3461 = vmatpush.msra.mxu0 %v3423
        %3462 = vmatpush.msra.mxu0 %v3421
        %3463 = vmatpush.msra.mxu0 %v3419
        %3464 = vmatmul.f32.gmra.mxu0 %v3434
        %v3465 = vpop.f32.mrf.mxu0
        %v3466 = vadd.f32 0.0, %v3465
        %3467 = vmatmul.f32.gmra.mxu0 %v3437
        %v3468 = vpop.f32.mrf.mxu0
        %v3469 = vadd.f32 0.0, %v3468
        %3470 = vmatmul.f32.gmra.mxu0 %v3440
        %v3471 = vpop.f32.mrf.mxu0
        %v3472 = vadd.f32 0.0, %v3471
        %3473 = vmatmul.f32.gmra.mxu0 %v3443
        %v3474 = vpop.f32.mrf.mxu0
        %v3475 = vadd.f32 0.0, %v3474
        %3476 = vmatmul.f32.gmra.mxu0 %v3446
        %v3477 = vpop.f32.mrf.mxu0
        %v3478 = vadd.f32 0.0, %v3477
        %3479 = vdwg.mxu0
        %3480 = vrot.lane.b32.xlu0 %v3286, 120
        %v3481 = vpop.permute.xlu0 %3480
        %3482 = vrot.lane.b32.xlu0 %v3287, 120
        %v3483 = vpop.permute.xlu0 %3482
        %3484 = vrot.lane.b32.xlu0 %v3288, 120
        %v3485 = vpop.permute.xlu0 %3484
        %3486 = vrot.lane.b32.xlu0 %v3289, 120
        %v3487 = vpop.permute.xlu0 %3486
        %3488 = vrot.lane.b32.xlu0 %v3290, 120
        %v3489 = vpop.permute.xlu0 %3488
        %3490 = vrot.lane.b32.xlu0 %v3272, 88
        %v3491 = vpop.permute.xlu0 %3490
        %3492 = vrot.lane.b32.xlu0 %v3275, 88
        %v3493 = vpop.permute.xlu0 %3492
        %3494 = vrot.lane.b32.xlu0 %v3278, 88
        %v3495 = vpop.permute.xlu0 %3494
        %3496 = vrot.lane.b32.xlu0 %v3281, 88
        %v3497 = vpop.permute.xlu0 %3496
        %3498 = vrot.lane.b32.xlu0 %v3284, 88
        %v3499 = vpop.permute.xlu0 %3498
        %v3500 = vsel %vm1790, %v3481, 0
        %v3502 = vsel %vm1790, %v3483, 0
        %v3504 = vsel %vm1790, %v3485, 0
        %v3506 = vsel %vm1790, %v3487, 0
        %v3508 = vsel %vm1790, %v3489, 0
        %v3510 = vsel %vm1790, %v3491, 0
        %v3512 = vsel %vm1790, %v3493, 0
        %v3514 = vsel %vm1790, %v3495, 0
        %v3516 = vsel %vm1790, %v3497, 0
        %v3518 = vsel %vm1790, %v3499, 0
        %3520 = vmatpush.xpose.msra.mxu0 0.0
        %3521 = vmatpush.xpose.msra.mxu0 0.0
        %3522 = vmatpush.xpose.msra.mxu0 0.0
        %3523 = vmatpush.xpose.msra.mxu0 0.0
        %3524 = vmatpush.xpose.msra.mxu0 0.0
        %3525 = vmatpush.xpose.msra.mxu0 0.0
        %3526 = vmatpush.xpose.msra.mxu0 0.0
        %3527 = vmatpush.xpose.msra.mxu0 0.0
        %3528 = vmatpush.xpose.msra.mxu0 0.0
        %3529 = vmatpush.xpose.msra.mxu0 0.0
        %3530 = vmatpush.xpose.msra.mxu0 0.0
        %3531 = vmatpush.xpose.msra.mxu0 %v3518
        %3532 = vmatpush.xpose.msra.mxu0 %v3516
        %3533 = vmatpush.xpose.msra.mxu0 %v3514
        %3534 = vmatpush.xpose.msra.mxu0 %v3512
        %3535 = vmatpush.xpose.msra.mxu0 %v3510
        %3536 = vmatmul.f32.gmra.mxu0 %v3500
        %v3537 = vpop.f32.mrf.mxu0
        %v3538 = vadd.f32 %v1580, %v3537
        %3539 = vmatmul.f32.gmra.mxu0 %v3502
        %v3540 = vpop.f32.mrf.mxu0
        %v3541 = vadd.f32 %v1581, %v3540
        %3542 = vmatmul.f32.gmra.mxu0 %v3504
        %v3543 = vpop.f32.mrf.mxu0
        %v3544 = vadd.f32 %v1582, %v3543
        %3545 = vmatmul.f32.gmra.mxu0 %v3506
        %v3546 = vpop.f32.mrf.mxu0
        %v3547 = vadd.f32 %v1583, %v3546
        %3548 = vmatmul.f32.gmra.mxu0 %v3508
        %v3549 = vpop.f32.mrf.mxu0
        %v3550 = vadd.f32 %v1584, %v3549
        %3551 = vdwg.mxu0
        %v3552 = vsel %vm1848, %v3538, -inf
        %3553 = vmax.xlane.f32.xlu0 %v3552
        %v3554 = vpop.xlane.xlu0 %3553
        %v3555 = vsel %vm1848, %v3541, -inf
        %3556 = vmax.xlane.f32.xlu0 %v3555
        %v3557 = vpop.xlane.xlu0 %3556
        %v3558 = vsel %vm1848, %v3544, -inf
        %3559 = vmax.xlane.f32.xlu0 %v3558
        %v3560 = vpop.xlane.xlu0 %3559
        %v3561 = vsel %vm1848, %v3547, -inf
        %3562 = vmax.xlane.f32.xlu0 %v3561
        %v3563 = vpop.xlane.xlu0 %3562
        %v3564 = vsel %vm1848, %v3550, -inf
        %3565 = vmax.xlane.f32.xlu0 %v3564
        %v3566 = vpop.xlane.xlu0 %3565
        %v3567 = vsub.f32 %v3538, %v3554
        %v3568 = vsub.f32 %v3541, %v3557
        %v3569 = vsub.f32 %v3544, %v3560
        %v3570 = vsub.f32 %v3547, %v3563
        %v3571 = vsub.f32 %v3550, %v3566
        %v3572 = vmul.f32 %v3567, 1.442695
        %v3573 = vpow.pop %v3572
        %v3574 = vmul.f32 %v3568, 1.442695
        %v3575 = vpow.pop %v3574
        %v3576 = vmul.f32 %v3569, 1.442695
        %v3577 = vpow.pop %v3576
        %v3578 = vmul.f32 %v3570, 1.442695
        %v3579 = vpow.pop %v3578
        %v3580 = vmul.f32 %v3571, 1.442695
        %v3581 = vpow.pop %v3580
        %v3582 = vsel %vm1848, %v3573, 0.0
        %3583 = vadd.xlane.f32.xlu0 %v3582
        %v3584 = vpop.xlane.xlu0 %3583
        %v3585 = vsel %vm1848, %v3575, 0.0
        %3586 = vadd.xlane.f32.xlu0 %v3585
        %v3587 = vpop.xlane.xlu0 %3586
        %v3588 = vsel %vm1848, %v3577, 0.0
        %3589 = vadd.xlane.f32.xlu0 %v3588
        %v3590 = vpop.xlane.xlu0 %3589
        %v3591 = vsel %vm1848, %v3579, 0.0
        %3592 = vadd.xlane.f32.xlu0 %v3591
        %v3593 = vpop.xlane.xlu0 %3592
        %v3594 = vsel %vm1848, %v3581, 0.0
        %3595 = vadd.xlane.f32.xlu0 %v3594
        %v3596 = vpop.xlane.xlu0 %3595
        %v3597 = vrcp.pop %v3584
        %v3598 = vrcp.pop %v3587
        %v3599 = vrcp.pop %v3590
        %v3600 = vrcp.pop %v3593
        %v3601 = vrcp.pop %v3596
        %v3602 = vmul.f32 %v3573, %v3597
        %v3603 = vmul.f32 %v3575, %v3598
        %v3604 = vmul.f32 %v3577, %v3599
        %v3605 = vmul.f32 %v3579, %v3600
        %v3606 = vmul.f32 %v3581, %v3601
        %3607 = vrot.lane.b32.xlu0 %v3272, 56
        %v3608 = vpop.permute.xlu0 %3607
        %3609 = vrot.lane.b32.xlu0 %v3275, 56
        %v3610 = vpop.permute.xlu0 %3609
        %3611 = vrot.lane.b32.xlu0 %v3278, 56
        %v3612 = vpop.permute.xlu0 %3611
        %3613 = vrot.lane.b32.xlu0 %v3281, 56
        %v3614 = vpop.permute.xlu0 %3613
        %3615 = vrot.lane.b32.xlu0 %v3284, 56
        %v3616 = vpop.permute.xlu0 %3615
        %v3623 = vsel %vm1848, %v3602, 0
        %v3626 = vsel %vm1848, %v3603, 0
        %v3629 = vsel %vm1848, %v3604, 0
        %v3632 = vsel %vm1848, %v3605, 0
        %v3635 = vsel %vm1848, %v3606, 0
        %3637 = vmatpush.msra.mxu0 0.0
        %3638 = vmatpush.msra.mxu0 0.0
        %3639 = vmatpush.msra.mxu0 0.0
        %3640 = vmatpush.msra.mxu0 0.0
        %3641 = vmatpush.msra.mxu0 0.0
        %3642 = vmatpush.msra.mxu0 0.0
        %3643 = vmatpush.msra.mxu0 0.0
        %3644 = vmatpush.msra.mxu0 0.0
        %3645 = vmatpush.msra.mxu0 0.0
        %3646 = vmatpush.msra.mxu0 0.0
        %3647 = vmatpush.msra.mxu0 0.0
        %3648 = vmatpush.msra.mxu0 %v3616
        %3649 = vmatpush.msra.mxu0 %v3614
        %3650 = vmatpush.msra.mxu0 %v3612
        %3651 = vmatpush.msra.mxu0 %v3610
        %3652 = vmatpush.msra.mxu0 %v3608
        %3653 = vmatmul.f32.gmra.mxu0 %v3623
        %v3654 = vpop.f32.mrf.mxu0
        %v3655 = vadd.f32 0.0, %v3654
        %3656 = vmatmul.f32.gmra.mxu0 %v3626
        %v3657 = vpop.f32.mrf.mxu0
        %v3658 = vadd.f32 0.0, %v3657
        %3659 = vmatmul.f32.gmra.mxu0 %v3629
        %v3660 = vpop.f32.mrf.mxu0
        %v3661 = vadd.f32 0.0, %v3660
        %3662 = vmatmul.f32.gmra.mxu0 %v3632
        %v3663 = vpop.f32.mrf.mxu0
        %v3664 = vadd.f32 0.0, %v3663
        %3665 = vmatmul.f32.gmra.mxu0 %v3635
        %v3666 = vpop.f32.mrf.mxu0
        %v3667 = vadd.f32 0.0, %v3666
        %3668 = vdwg.mxu0
        %3669 = vrot.lane.b32.xlu0 %v3286, 112
        %v3670 = vpop.permute.xlu0 %3669
        %3671 = vrot.lane.b32.xlu0 %v3287, 112
        %v3672 = vpop.permute.xlu0 %3671
        %3673 = vrot.lane.b32.xlu0 %v3288, 112
        %v3674 = vpop.permute.xlu0 %3673
        %3675 = vrot.lane.b32.xlu0 %v3289, 112
        %v3676 = vpop.permute.xlu0 %3675
        %3677 = vrot.lane.b32.xlu0 %v3290, 112
        %v3678 = vpop.permute.xlu0 %3677
        %3679 = vrot.lane.b32.xlu0 %v3272, 80
        %v3680 = vpop.permute.xlu0 %3679
        %3681 = vrot.lane.b32.xlu0 %v3275, 80
        %v3682 = vpop.permute.xlu0 %3681
        %3683 = vrot.lane.b32.xlu0 %v3278, 80
        %v3684 = vpop.permute.xlu0 %3683
        %3685 = vrot.lane.b32.xlu0 %v3281, 80
        %v3686 = vpop.permute.xlu0 %3685
        %3687 = vrot.lane.b32.xlu0 %v3284, 80
        %v3688 = vpop.permute.xlu0 %3687
        %v3689 = vsel %vm1790, %v3670, 0
        %v3691 = vsel %vm1790, %v3672, 0
        %v3693 = vsel %vm1790, %v3674, 0
        %v3695 = vsel %vm1790, %v3676, 0
        %v3697 = vsel %vm1790, %v3678, 0
        %v3699 = vsel %vm1790, %v3680, 0
        %v3701 = vsel %vm1790, %v3682, 0
        %v3703 = vsel %vm1790, %v3684, 0
        %v3705 = vsel %vm1790, %v3686, 0
        %v3707 = vsel %vm1790, %v3688, 0
        %3709 = vmatpush.xpose.msra.mxu0 0.0
        %3710 = vmatpush.xpose.msra.mxu0 0.0
        %3711 = vmatpush.xpose.msra.mxu0 0.0
        %3712 = vmatpush.xpose.msra.mxu0 0.0
        %3713 = vmatpush.xpose.msra.mxu0 0.0
        %3714 = vmatpush.xpose.msra.mxu0 0.0
        %3715 = vmatpush.xpose.msra.mxu0 0.0
        %3716 = vmatpush.xpose.msra.mxu0 0.0
        %3717 = vmatpush.xpose.msra.mxu0 0.0
        %3718 = vmatpush.xpose.msra.mxu0 0.0
        %3719 = vmatpush.xpose.msra.mxu0 0.0
        %3720 = vmatpush.xpose.msra.mxu0 %v3707
        %3721 = vmatpush.xpose.msra.mxu0 %v3705
        %3722 = vmatpush.xpose.msra.mxu0 %v3703
        %3723 = vmatpush.xpose.msra.mxu0 %v3701
        %3724 = vmatpush.xpose.msra.mxu0 %v3699
        %3725 = vmatmul.f32.gmra.mxu0 %v3689
        %v3726 = vpop.f32.mrf.mxu0
        %v3727 = vadd.f32 %v1580, %v3726
        %3728 = vmatmul.f32.gmra.mxu0 %v3691
        %v3729 = vpop.f32.mrf.mxu0
        %v3730 = vadd.f32 %v1581, %v3729
        %3731 = vmatmul.f32.gmra.mxu0 %v3693
        %v3732 = vpop.f32.mrf.mxu0
        %v3733 = vadd.f32 %v1582, %v3732
        %3734 = vmatmul.f32.gmra.mxu0 %v3695
        %v3735 = vpop.f32.mrf.mxu0
        %v3736 = vadd.f32 %v1583, %v3735
        %3737 = vmatmul.f32.gmra.mxu0 %v3697
        %v3738 = vpop.f32.mrf.mxu0
        %v3739 = vadd.f32 %v1584, %v3738
        %3740 = vdwg.mxu0
        %v3741 = vsel %vm1848, %v3727, -inf
        %3742 = vmax.xlane.f32.xlu0 %v3741
        %v3743 = vpop.xlane.xlu0 %3742
        %v3744 = vsel %vm1848, %v3730, -inf
        %3745 = vmax.xlane.f32.xlu0 %v3744
        %v3746 = vpop.xlane.xlu0 %3745
        %v3747 = vsel %vm1848, %v3733, -inf
        %3748 = vmax.xlane.f32.xlu0 %v3747
        %v3749 = vpop.xlane.xlu0 %3748
        %v3750 = vsel %vm1848, %v3736, -inf
        %3751 = vmax.xlane.f32.xlu0 %v3750
        %v3752 = vpop.xlane.xlu0 %3751
        %v3753 = vsel %vm1848, %v3739, -inf
        %3754 = vmax.xlane.f32.xlu0 %v3753
        %v3755 = vpop.xlane.xlu0 %3754
        %v3756 = vsub.f32 %v3727, %v3743
        %v3757 = vsub.f32 %v3730, %v3746
        %v3758 = vsub.f32 %v3733, %v3749
        %v3759 = vsub.f32 %v3736, %v3752
        %v3760 = vsub.f32 %v3739, %v3755
        %v3761 = vmul.f32 %v3756, 1.442695
        %v3762 = vpow.pop %v3761
        %v3763 = vmul.f32 %v3757, 1.442695
        %v3764 = vpow.pop %v3763
        %v3765 = vmul.f32 %v3758, 1.442695
        %v3766 = vpow.pop %v3765
        %v3767 = vmul.f32 %v3759, 1.442695
        %v3768 = vpow.pop %v3767
        %v3769 = vmul.f32 %v3760, 1.442695
        %v3770 = vpow.pop %v3769
        %v3771 = vsel %vm1848, %v3762, 0.0
        %3772 = vadd.xlane.f32.xlu0 %v3771
        %v3773 = vpop.xlane.xlu0 %3772
        %v3774 = vsel %vm1848, %v3764, 0.0
        %3775 = vadd.xlane.f32.xlu0 %v3774
        %v3776 = vpop.xlane.xlu0 %3775
        %v3777 = vsel %vm1848, %v3766, 0.0
        %3778 = vadd.xlane.f32.xlu0 %v3777
        %v3779 = vpop.xlane.xlu0 %3778
        %v3780 = vsel %vm1848, %v3768, 0.0
        %3781 = vadd.xlane.f32.xlu0 %v3780
        %v3782 = vpop.xlane.xlu0 %3781
        %v3783 = vsel %vm1848, %v3770, 0.0
        %3784 = vadd.xlane.f32.xlu0 %v3783
        %v3785 = vpop.xlane.xlu0 %3784
        %v3786 = vrcp.pop %v3773
        %v3787 = vrcp.pop %v3776
        %v3788 = vrcp.pop %v3779
        %v3789 = vrcp.pop %v3782
        %v3790 = vrcp.pop %v3785
        %v3791 = vmul.f32 %v3762, %v3786
        %v3792 = vmul.f32 %v3764, %v3787
        %v3793 = vmul.f32 %v3766, %v3788
        %v3794 = vmul.f32 %v3768, %v3789
        %v3795 = vmul.f32 %v3770, %v3790
        %3796 = vrot.lane.b32.xlu0 %v3272, 48
        %v3797 = vpop.permute.xlu0 %3796
        %3798 = vrot.lane.b32.xlu0 %v3275, 48
        %v3799 = vpop.permute.xlu0 %3798
        %3800 = vrot.lane.b32.xlu0 %v3278, 48
        %v3801 = vpop.permute.xlu0 %3800
        %3802 = vrot.lane.b32.xlu0 %v3281, 48
        %v3803 = vpop.permute.xlu0 %3802
        %3804 = vrot.lane.b32.xlu0 %v3284, 48
        %v3805 = vpop.permute.xlu0 %3804
        %v3812 = vsel %vm1848, %v3791, 0
        %v3815 = vsel %vm1848, %v3792, 0
        %v3818 = vsel %vm1848, %v3793, 0
        %v3821 = vsel %vm1848, %v3794, 0
        %v3824 = vsel %vm1848, %v3795, 0
        %3826 = vmatpush.msra.mxu0 0.0
        %3827 = vmatpush.msra.mxu0 0.0
        %3828 = vmatpush.msra.mxu0 0.0
        %3829 = vmatpush.msra.mxu0 0.0
        %3830 = vmatpush.msra.mxu0 0.0
        %3831 = vmatpush.msra.mxu0 0.0
        %3832 = vmatpush.msra.mxu0 0.0
        %3833 = vmatpush.msra.mxu0 0.0
        %3834 = vmatpush.msra.mxu0 0.0
        %3835 = vmatpush.msra.mxu0 0.0
        %3836 = vmatpush.msra.mxu0 0.0
        %3837 = vmatpush.msra.mxu0 %v3805
        %3838 = vmatpush.msra.mxu0 %v3803
        %3839 = vmatpush.msra.mxu0 %v3801
        %3840 = vmatpush.msra.mxu0 %v3799
        %3841 = vmatpush.msra.mxu0 %v3797
        %3842 = vmatmul.f32.gmra.mxu0 %v3812
        %v3843 = vpop.f32.mrf.mxu0
        %v3844 = vadd.f32 0.0, %v3843
        %3845 = vmatmul.f32.gmra.mxu0 %v3815
        %v3846 = vpop.f32.mrf.mxu0
        %v3847 = vadd.f32 0.0, %v3846
        %3848 = vmatmul.f32.gmra.mxu0 %v3818
        %v3849 = vpop.f32.mrf.mxu0
        %v3850 = vadd.f32 0.0, %v3849
        %3851 = vmatmul.f32.gmra.mxu0 %v3821
        %v3852 = vpop.f32.mrf.mxu0
        %v3853 = vadd.f32 0.0, %v3852
        %3854 = vmatmul.f32.gmra.mxu0 %v3824
        %v3855 = vpop.f32.mrf.mxu0
        %v3856 = vadd.f32 0.0, %v3855
        %3857 = vdwg.mxu0
        %3858 = vrot.lane.b32.xlu0 %v3286, 104
        %v3859 = vpop.permute.xlu0 %3858
        %3860 = vrot.lane.b32.xlu0 %v3287, 104
        %v3861 = vpop.permute.xlu0 %3860
        %3862 = vrot.lane.b32.xlu0 %v3288, 104
        %v3863 = vpop.permute.xlu0 %3862
        %3864 = vrot.lane.b32.xlu0 %v3289, 104
        %v3865 = vpop.permute.xlu0 %3864
        %3866 = vrot.lane.b32.xlu0 %v3290, 104
        %v3867 = vpop.permute.xlu0 %3866
        %3868 = vrot.lane.b32.xlu0 %v3272, 72
        %v3869 = vpop.permute.xlu0 %3868
        %3870 = vrot.lane.b32.xlu0 %v3275, 72
        %v3871 = vpop.permute.xlu0 %3870
        %3872 = vrot.lane.b32.xlu0 %v3278, 72
        %v3873 = vpop.permute.xlu0 %3872
        %3874 = vrot.lane.b32.xlu0 %v3281, 72
        %v3875 = vpop.permute.xlu0 %3874
        %3876 = vrot.lane.b32.xlu0 %v3284, 72
        %v3877 = vpop.permute.xlu0 %3876
        %v3878 = vsel %vm1790, %v3859, 0
        %v3880 = vsel %vm1790, %v3861, 0
        %v3882 = vsel %vm1790, %v3863, 0
        %v3884 = vsel %vm1790, %v3865, 0
        %v3886 = vsel %vm1790, %v3867, 0
        %v3888 = vsel %vm1790, %v3869, 0
        %v3890 = vsel %vm1790, %v3871, 0
        %v3892 = vsel %vm1790, %v3873, 0
        %v3894 = vsel %vm1790, %v3875, 0
        %v3896 = vsel %vm1790, %v3877, 0
        %3898 = vmatpush.xpose.msra.mxu0 0.0
        %3899 = vmatpush.xpose.msra.mxu0 0.0
        %3900 = vmatpush.xpose.msra.mxu0 0.0
        %3901 = vmatpush.xpose.msra.mxu0 0.0
        %3902 = vmatpush.xpose.msra.mxu0 0.0
        %3903 = vmatpush.xpose.msra.mxu0 0.0
        %3904 = vmatpush.xpose.msra.mxu0 0.0
        %3905 = vmatpush.xpose.msra.mxu0 0.0
        %3906 = vmatpush.xpose.msra.mxu0 0.0
        %3907 = vmatpush.xpose.msra.mxu0 0.0
        %3908 = vmatpush.xpose.msra.mxu0 0.0
        %3909 = vmatpush.xpose.msra.mxu0 %v3896
        %3910 = vmatpush.xpose.msra.mxu0 %v3894
        %3911 = vmatpush.xpose.msra.mxu0 %v3892
        %3912 = vmatpush.xpose.msra.mxu0 %v3890
        %3913 = vmatpush.xpose.msra.mxu0 %v3888
        %3914 = vmatmul.f32.gmra.mxu0 %v3878
        %v3915 = vpop.f32.mrf.mxu0
        %v3916 = vadd.f32 %v1580, %v3915
        %3917 = vmatmul.f32.gmra.mxu0 %v3880
        %v3918 = vpop.f32.mrf.mxu0
        %v3919 = vadd.f32 %v1581, %v3918
        %3920 = vmatmul.f32.gmra.mxu0 %v3882
        %v3921 = vpop.f32.mrf.mxu0
        %v3922 = vadd.f32 %v1582, %v3921
        %3923 = vmatmul.f32.gmra.mxu0 %v3884
        %v3924 = vpop.f32.mrf.mxu0
        %v3925 = vadd.f32 %v1583, %v3924
        %3926 = vmatmul.f32.gmra.mxu0 %v3886
        %v3927 = vpop.f32.mrf.mxu0
        %v3928 = vadd.f32 %v1584, %v3927
        %3929 = vdwg.mxu0
        %v3930 = vsel %vm1848, %v3916, -inf
        %3931 = vmax.xlane.f32.xlu0 %v3930
        %v3932 = vpop.xlane.xlu0 %3931
        %v3933 = vsel %vm1848, %v3919, -inf
        %3934 = vmax.xlane.f32.xlu0 %v3933
        %v3935 = vpop.xlane.xlu0 %3934
        %v3936 = vsel %vm1848, %v3922, -inf
        %3937 = vmax.xlane.f32.xlu0 %v3936
        %v3938 = vpop.xlane.xlu0 %3937
        %v3939 = vsel %vm1848, %v3925, -inf
        %3940 = vmax.xlane.f32.xlu0 %v3939
        %v3941 = vpop.xlane.xlu0 %3940
        %v3942 = vsel %vm1848, %v3928, -inf
        %3943 = vmax.xlane.f32.xlu0 %v3942
        %v3944 = vpop.xlane.xlu0 %3943
        %v3945 = vsub.f32 %v3916, %v3932
        %v3946 = vsub.f32 %v3919, %v3935
        %v3947 = vsub.f32 %v3922, %v3938
        %v3948 = vsub.f32 %v3925, %v3941
        %v3949 = vsub.f32 %v3928, %v3944
        %v3950 = vmul.f32 %v3945, 1.442695
        %v3951 = vpow.pop %v3950
        %v3952 = vmul.f32 %v3946, 1.442695
        %v3953 = vpow.pop %v3952
        %v3954 = vmul.f32 %v3947, 1.442695
        %v3955 = vpow.pop %v3954
        %v3956 = vmul.f32 %v3948, 1.442695
        %v3957 = vpow.pop %v3956
        %v3958 = vmul.f32 %v3949, 1.442695
        %v3959 = vpow.pop %v3958
        %v3960 = vsel %vm1848, %v3951, 0.0
        %3961 = vadd.xlane.f32.xlu0 %v3960
        %v3962 = vpop.xlane.xlu0 %3961
        %v3963 = vsel %vm1848, %v3953, 0.0
        %3964 = vadd.xlane.f32.xlu0 %v3963
        %v3965 = vpop.xlane.xlu0 %3964
        %v3966 = vsel %vm1848, %v3955, 0.0
        %3967 = vadd.xlane.f32.xlu0 %v3966
        %v3968 = vpop.xlane.xlu0 %3967
        %v3969 = vsel %vm1848, %v3957, 0.0
        %3970 = vadd.xlane.f32.xlu0 %v3969
        %v3971 = vpop.xlane.xlu0 %3970
        %v3972 = vsel %vm1848, %v3959, 0.0
        %3973 = vadd.xlane.f32.xlu0 %v3972
        %v3974 = vpop.xlane.xlu0 %3973
        %v3975 = vrcp.pop %v3962
        %v3976 = vrcp.pop %v3965
        %v3977 = vrcp.pop %v3968
        %v3978 = vrcp.pop %v3971
        %v3979 = vrcp.pop %v3974
        %v3980 = vmul.f32 %v3951, %v3975
        %v3981 = vmul.f32 %v3953, %v3976
        %v3982 = vmul.f32 %v3955, %v3977
        %v3983 = vmul.f32 %v3957, %v3978
        %v3984 = vmul.f32 %v3959, %v3979
        %3985 = vrot.lane.b32.xlu0 %v3272, 40
        %v3986 = vpop.permute.xlu0 %3985
        %3987 = vrot.lane.b32.xlu0 %v3275, 40
        %v3988 = vpop.permute.xlu0 %3987
        %3989 = vrot.lane.b32.xlu0 %v3278, 40
        %v3990 = vpop.permute.xlu0 %3989
        %3991 = vrot.lane.b32.xlu0 %v3281, 40
        %v3992 = vpop.permute.xlu0 %3991
        %3993 = vrot.lane.b32.xlu0 %v3284, 40
        %v3994 = vpop.permute.xlu0 %3993
        %v4001 = vsel %vm1848, %v3980, 0
        %v4004 = vsel %vm1848, %v3981, 0
        %v4007 = vsel %vm1848, %v3982, 0
        %v4010 = vsel %vm1848, %v3983, 0
        %v4013 = vsel %vm1848, %v3984, 0
        %4015 = vmatpush.msra.mxu0 0.0
        %4016 = vmatpush.msra.mxu0 0.0
        %4017 = vmatpush.msra.mxu0 0.0
        %4018 = vmatpush.msra.mxu0 0.0
        %4019 = vmatpush.msra.mxu0 0.0
        %4020 = vmatpush.msra.mxu0 0.0
        %4021 = vmatpush.msra.mxu0 0.0
        %4022 = vmatpush.msra.mxu0 0.0
        %4023 = vmatpush.msra.mxu0 0.0
        %4024 = vmatpush.msra.mxu0 0.0
        %4025 = vmatpush.msra.mxu0 0.0
        %4026 = vmatpush.msra.mxu0 %v3994
        %4027 = vmatpush.msra.mxu0 %v3992
        %4028 = vmatpush.msra.mxu0 %v3990
        %4029 = vmatpush.msra.mxu0 %v3988
        %4030 = vmatpush.msra.mxu0 %v3986
        %4031 = vmatmul.f32.gmra.mxu0 %v4001
        %v4032 = vpop.f32.mrf.mxu0
        %v4033 = vadd.f32 0.0, %v4032
        %4034 = vmatmul.f32.gmra.mxu0 %v4004
        %v4035 = vpop.f32.mrf.mxu0
        %v4036 = vadd.f32 0.0, %v4035
        %4037 = vmatmul.f32.gmra.mxu0 %v4007
        %v4038 = vpop.f32.mrf.mxu0
        %v4039 = vadd.f32 0.0, %v4038
        %4040 = vmatmul.f32.gmra.mxu0 %v4010
        %v4041 = vpop.f32.mrf.mxu0
        %v4042 = vadd.f32 0.0, %v4041
        %4043 = vmatmul.f32.gmra.mxu0 %v4013
        %v4044 = vpop.f32.mrf.mxu0
        %v4045 = vadd.f32 0.0, %v4044
        %4046 = vdwg.mxu0
        %4052 = vrot.lane.b32.xlu0 %v3655, 8
        %v4053 = vpop.permute.xlu0 %4052
        %4054 = vrot.lane.b32.xlu0 %v3658, 8
        %v4055 = vpop.permute.xlu0 %4054
        %4056 = vrot.lane.b32.xlu0 %v3661, 8
        %v4057 = vpop.permute.xlu0 %4056
        %4058 = vrot.lane.b32.xlu0 %v3664, 8
        %v4059 = vpop.permute.xlu0 %4058
        %4060 = vrot.lane.b32.xlu0 %v3667, 8
        %v4061 = vpop.permute.xlu0 %4060
        %4072 = vrot.lane.b32.xlu0 %v3844, 16
        %v4073 = vpop.permute.xlu0 %4072
        %4074 = vrot.lane.b32.xlu0 %v3847, 16
        %v4075 = vpop.permute.xlu0 %4074
        %4076 = vrot.lane.b32.xlu0 %v3850, 16
        %v4077 = vpop.permute.xlu0 %4076
        %4078 = vrot.lane.b32.xlu0 %v3853, 16
        %v4079 = vpop.permute.xlu0 %4078
        %4080 = vrot.lane.b32.xlu0 %v3856, 16
        %v4081 = vpop.permute.xlu0 %4080
        %4092 = vrot.lane.b32.xlu0 %v4033, 24
        %v4093 = vpop.permute.xlu0 %4092
        %4094 = vrot.lane.b32.xlu0 %v4036, 24
        %v4095 = vpop.permute.xlu0 %4094
        %4096 = vrot.lane.b32.xlu0 %v4039, 24
        %v4097 = vpop.permute.xlu0 %4096
        %4098 = vrot.lane.b32.xlu0 %v4042, 24
        %v4099 = vpop.permute.xlu0 %4098
        %4100 = vrot.lane.b32.xlu0 %v4045, 24
        %v4101 = vpop.permute.xlu0 %4100
        %v4107 = vsel %vm1790, %v3466, %v4053
        %v4108 = vsel %vm1790, %v3469, %v4055
        %v4109 = vsel %vm1790, %v3472, %v4057
        %v4110 = vsel %vm1790, %v3475, %v4059
        %v4111 = vsel %vm1790, %v3478, %v4061
        %v4112 = vsel %vm2598, %v4107, %v4073
        %v4113 = vsel %vm2598, %v4108, %v4075
        %v4114 = vsel %vm2598, %v4109, %v4077
        %v4115 = vsel %vm2598, %v4110, %v4079
        %v4116 = vsel %vm2598, %v4111, %v4081
        %v4117 = vsel %vm2604, %v4112, %v4093
        %v4118 = vsel %vm2604, %v4113, %v4095
        %v4119 = vsel %vm2604, %v4114, %v4097
        %v4120 = vsel %vm2604, %v4115, %v4099
        %v4121 = vsel %vm2604, %v4116, %v4101
        %s4122 = scalar_lea.vmem %s3, 32
        %v4123 = vld [vmem:[%s4122] sm:$0xff]
        %v4124 = vld [vmem:[%s4122 + $0x8] sm:$0xff]
        %v4125 = vld [vmem:[%s4122 + $0x10] sm:$0xff]
        %v4126 = vld [vmem:[%s4122 + $0x18] sm:$0xff]
        %v4127 = vld [vmem:[%s7 + $0xb] sm:$0x1]
        %v4128 = vperm.slane %v4127, 0
        %v4130 = vsel %vm1587, %v4117, 0
        %v4133 = vsel %vm1587, %v4118, 0
        %v4136 = vsel %vm1587, %v4119, 0
        %v4139 = vsel %vm1587, %v4120, 0
        %v4142 = vsel %vm1587, %v4121, 0
        %4144 = vmatpush.msra.mxu0 0.0
        %4145 = vmatpush.msra.mxu0 0.0
        %4146 = vmatpush.msra.mxu0 0.0
        %4147 = vmatpush.msra.mxu0 0.0
        %4148 = vmatpush.msra.mxu0 0.0
        %4149 = vmatpush.msra.mxu0 0.0
        %4150 = vmatpush.msra.mxu0 0.0
        %4151 = vmatpush.msra.mxu0 0.0
        %4152 = vmatpush.msra.mxu0 0.0
        %4153 = vmatpush.msra.mxu0 0.0
        %4154 = vmatpush.msra.mxu0 0.0
        %4155 = vmatpush.msra.mxu0 0.0
        %4156 = vmatpush.msra.mxu0 %v4126
        %4157 = vmatpush.msra.mxu0 %v4125
        %4158 = vmatpush.msra.mxu0 %v4124
        %4159 = vmatpush.msra.mxu0 %v4123
        %4160 = vmatmul.f32.gmra.mxu0 %v4130
        %v4161 = vpop.f32.mrf.mxu0
        %v4162 = vadd.f32 %v4128, %v4161
        %4163 = vmatmul.f32.gmra.mxu0 %v4133
        %v4164 = vpop.f32.mrf.mxu0
        %v4165 = vadd.f32 %v4128, %v4164
        %4166 = vmatmul.f32.gmra.mxu0 %v4136
        %v4167 = vpop.f32.mrf.mxu0
        %v4168 = vadd.f32 %v4128, %v4167
        %4169 = vmatmul.f32.gmra.mxu0 %v4139
        %v4170 = vpop.f32.mrf.mxu0
        %v4171 = vadd.f32 %v4128, %v4170
        %4172 = vmatmul.f32.gmra.mxu0 %v4142
        %v4173 = vpop.f32.mrf.mxu0
        %v4174 = vadd.f32 %v4128, %v4173
        %4175 = vdwg.mxu0
        %v4176 = vadd.f32 %v3103, %v4162
        %v4177 = vadd.f32 %v3104, %v4165
        %v4178 = vadd.f32 %v3105, %v4168
        %v4179 = vadd.f32 %v3106, %v4171
        %v4180 = vadd.f32 %v3107, %v4174
        %v4181 = vld [vmem:[%s7 + $0xc] sm:$0x1]
        %v4182 = vld [vmem:[%s7 + $0xd] sm:$0x1]
        %v4183 = vsel %vm1587, %v4176, 0.0
        %4184 = vadd.xlane.f32.xlu0 %v4183
        %v4185 = vpop.xlane.xlu0 %4184
        %v4186 = vsel %vm1587, %v4177, 0.0
        %4187 = vadd.xlane.f32.xlu0 %v4186
        %v4188 = vpop.xlane.xlu0 %4187
        %v4189 = vsel %vm1587, %v4178, 0.0
        %4190 = vadd.xlane.f32.xlu0 %v4189
        %v4191 = vpop.xlane.xlu0 %4190
        %v4192 = vsel %vm1587, %v4179, 0.0
        %4193 = vadd.xlane.f32.xlu0 %v4192
        %v4194 = vpop.xlane.xlu0 %4193
        %v4195 = vsel %vm1587, %v4180, 0.0
        %4196 = vadd.xlane.f32.xlu0 %v4195
        %v4197 = vpop.xlane.xlu0 %4196
        %v4198 = vmul.f32 %v4185, %v1609
        %v4199 = vmul.f32 %v4188, %v1609
        %v4200 = vmul.f32 %v4191, %v1609
        %v4201 = vmul.f32 %v4194, %v1609
        %v4202 = vmul.f32 %v4197, %v1609
        %v4203 = vsub.f32 %v4176, %v4198
        %v4204 = vsub.f32 %v4177, %v4199
        %v4205 = vsub.f32 %v4178, %v4200
        %v4206 = vsub.f32 %v4179, %v4201
        %v4207 = vsub.f32 %v4180, %v4202
        %v4208 = vmul.f32 %v4203, %v4203
        %v4209 = vmul.f32 %v4204, %v4204
        %v4210 = vmul.f32 %v4205, %v4205
        %v4211 = vmul.f32 %v4206, %v4206
        %v4212 = vmul.f32 %v4207, %v4207
        %v4213 = vsel %vm1587, %v4208, 0.0
        %4214 = vadd.xlane.f32.xlu0 %v4213
        %v4215 = vpop.xlane.xlu0 %4214
        %v4216 = vsel %vm1587, %v4209, 0.0
        %4217 = vadd.xlane.f32.xlu0 %v4216
        %v4218 = vpop.xlane.xlu0 %4217
        %v4219 = vsel %vm1587, %v4210, 0.0
        %4220 = vadd.xlane.f32.xlu0 %v4219
        %v4221 = vpop.xlane.xlu0 %4220
        %v4222 = vsel %vm1587, %v4211, 0.0
        %4223 = vadd.xlane.f32.xlu0 %v4222
        %v4224 = vpop.xlane.xlu0 %4223
        %v4225 = vsel %vm1587, %v4212, 0.0
        %4226 = vadd.xlane.f32.xlu0 %v4225
        %v4227 = vpop.xlane.xlu0 %4226
        %v4228 = vmul.f32 %v4215, %v1609
        %v4229 = vmul.f32 %v4218, %v1609
        %v4230 = vmul.f32 %v4221, %v1609
        %v4231 = vmul.f32 %v4224, %v1609
        %v4232 = vmul.f32 %v4227, %v1609
        %v4233 = vadd.f32 %v4228, 1e-06
        %v4234 = vadd.f32 %v4229, 1e-06
        %v4235 = vadd.f32 %v4230, 1e-06
        %v4236 = vadd.f32 %v4231, 1e-06
        %v4237 = vadd.f32 %v4232, 1e-06
        %v4238 = vrsqrt.pop %v4233
        %v4239 = vmul.f32 %v4238, %v4233
        %v4240 = vmul.f32 %v4239, %v4238
        %v4241 = vmul.f32 0.5, %v4240
        %v4242 = vsub.f32 1.5, %v4241
        %v4243 = vmul.f32 %v4238, %v4242
        %vm4244 = vweird.f32 %v4233
        %vm4245 = vweird.f32 %v4238
        %vm4246 = vmor %vm4244, %vm4245
        %v4247 = vsel %vm4246, %v4238, %v4243
        %v4248 = vrsqrt.pop %v4234
        %v4249 = vmul.f32 %v4248, %v4234
        %v4250 = vmul.f32 %v4249, %v4248
        %v4251 = vmul.f32 0.5, %v4250
        %v4252 = vsub.f32 1.5, %v4251
        %v4253 = vmul.f32 %v4248, %v4252
        %vm4254 = vweird.f32 %v4234
        %vm4255 = vweird.f32 %v4248
        %vm4256 = vmor %vm4254, %vm4255
        %v4257 = vsel %vm4256, %v4248, %v4253
        %v4258 = vrsqrt.pop %v4235
        %v4259 = vmul.f32 %v4258, %v4235
        %v4260 = vmul.f32 %v4259, %v4258
        %v4261 = vmul.f32 0.5, %v4260
        %v4262 = vsub.f32 1.5, %v4261
        %v4263 = vmul.f32 %v4258, %v4262
        %vm4264 = vweird.f32 %v4235
        %vm4265 = vweird.f32 %v4258
        %vm4266 = vmor %vm4264, %vm4265
        %v4267 = vsel %vm4266, %v4258, %v4263
        %v4268 = vrsqrt.pop %v4236
        %v4269 = vmul.f32 %v4268, %v4236
        %v4270 = vmul.f32 %v4269, %v4268
        %v4271 = vmul.f32 0.5, %v4270
        %v4272 = vsub.f32 1.5, %v4271
        %v4273 = vmul.f32 %v4268, %v4272
        %vm4274 = vweird.f32 %v4236
        %vm4275 = vweird.f32 %v4268
        %vm4276 = vmor %vm4274, %vm4275
        %v4277 = vsel %vm4276, %v4268, %v4273
        %v4278 = vrsqrt.pop %v4237
        %v4279 = vmul.f32 %v4278, %v4237
        %v4280 = vmul.f32 %v4279, %v4278
        %v4281 = vmul.f32 0.5, %v4280
        %v4282 = vsub.f32 1.5, %v4281
        %v4283 = vmul.f32 %v4278, %v4282
        %vm4284 = vweird.f32 %v4237
        %vm4285 = vweird.f32 %v4278
        %vm4286 = vmor %vm4284, %vm4285
        %v4287 = vsel %vm4286, %v4278, %v4283
        %v4288 = vmul.f32 %v4203, %v4247
        %v4289 = vmul.f32 %v4204, %v4257
        %v4290 = vmul.f32 %v4205, %v4267
        %v4291 = vmul.f32 %v4206, %v4277
        %v4292 = vmul.f32 %v4207, %v4287
        %v4293 = vperm.slane %v4181, 0
        %v4294 = vmul.f32 %v4288, %v4293
        %v4295 = vmul.f32 %v4289, %v4293
        %v4296 = vmul.f32 %v4290, %v4293
        %v4297 = vmul.f32 %v4291, %v4293
        %v4298 = vmul.f32 %v4292, %v4293
        %v4299 = vperm.slane %v4182, 0
        %v4300 = vadd.f32 %v4294, %v4299
        %v4301 = vadd.f32 %v4295, %v4299
        %v4302 = vadd.f32 %v4296, %v4299
        %v4303 = vadd.f32 %v4297, %v4299
        %v4304 = vadd.f32 %v4298, %v4299
        %s4305 = scalar_lea.vmem %s4, 32
        %v4306 = vld [vmem:[%s4305] sm:$0xff]
        %v4307 = vld [vmem:[%s4305 + $0x8] sm:$0xff]
        %v4308 = vld [vmem:[%s4305 + $0x10] sm:$0xff]
        %v4309 = vld [vmem:[%s4305 + $0x18] sm:$0xff]
        %v4310 = vld [vmem:[%s7 + $0xe] sm:$0x1]
        %v4311 = vperm.slane %v4310, 0
        %v4313 = vsel %vm1587, %v4300, 0
        %v4316 = vsel %vm1587, %v4301, 0
        %v4319 = vsel %vm1587, %v4302, 0
        %v4322 = vsel %vm1587, %v4303, 0
        %v4325 = vsel %vm1587, %v4304, 0
        %4327 = vmatpush.msra.mxu0 0.0
        %4328 = vmatpush.msra.mxu0 0.0
        %4329 = vmatpush.msra.mxu0 0.0
        %4330 = vmatpush.msra.mxu0 0.0
        %4331 = vmatpush.msra.mxu0 0.0
        %4332 = vmatpush.msra.mxu0 0.0
        %4333 = vmatpush.msra.mxu0 0.0
        %4334 = vmatpush.msra.mxu0 0.0
        %4335 = vmatpush.msra.mxu0 0.0
        %4336 = vmatpush.msra.mxu0 0.0
        %4337 = vmatpush.msra.mxu0 0.0
        %4338 = vmatpush.msra.mxu0 0.0
        %4339 = vmatpush.msra.mxu0 %v4309
        %4340 = vmatpush.msra.mxu0 %v4308
        %4341 = vmatpush.msra.mxu0 %v4307
        %4342 = vmatpush.msra.mxu0 %v4306
        %4343 = vmatmul.f32.gmra.mxu0 %v4313
        %v4344 = vpop.f32.mrf.mxu0
        %v4345 = vadd.f32 %v4311, %v4344
        %4346 = vmatmul.f32.gmra.mxu0 %v4316
        %v4347 = vpop.f32.mrf.mxu0
        %v4348 = vadd.f32 %v4311, %v4347
        %4349 = vmatmul.f32.gmra.mxu0 %v4319
        %v4350 = vpop.f32.mrf.mxu0
        %v4351 = vadd.f32 %v4311, %v4350
        %4352 = vmatmul.f32.gmra.mxu0 %v4322
        %v4353 = vpop.f32.mrf.mxu0
        %v4354 = vadd.f32 %v4311, %v4353
        %4355 = vmatmul.f32.gmra.mxu0 %v4325
        %v4356 = vpop.f32.mrf.mxu0
        %v4357 = vadd.f32 %v4311, %v4356
        %4358 = vdwg.mxu0
        %v4359 = vmul.f32 %v4345, 0.5
        %v4360 = vmul.f32 %v4348, 0.5
        %v4361 = vmul.f32 %v4351, 0.5
        %v4362 = vmul.f32 %v4354, 0.5
        %v4363 = vmul.f32 %v4357, 0.5
        %v4364 = vmul.f32 %v4345, 0.70710677
        %v4365 = vmul.f32 %v4348, 0.70710677
        %v4366 = vmul.f32 %v4351, 0.70710677
        %v4367 = vmul.f32 %v4354, 0.70710677
        %v4368 = vmul.f32 %v4357, 0.70710677
        %vm4369 = vcmp.ge.f32.partialorder %v4364, 0.0
        %vm4370 = vcmp.ge.f32.partialorder %v4365, 0.0
        %vm4371 = vcmp.ge.f32.partialorder %v4366, 0.0
        %vm4372 = vcmp.ge.f32.partialorder %v4367, 0.0
        %vm4373 = vcmp.ge.f32.partialorder %v4368, 0.0
        %v4374 = vsel %vm4369, 1.0, -1.0
        %v4375 = vsel %vm4370, 1.0, -1.0
        %v4376 = vsel %vm4371, 1.0, -1.0
        %v4377 = vsel %vm4372, 1.0, -1.0
        %v4378 = vsel %vm4373, 1.0, -1.0
        %v4379 = vand.u32 2147483647, %v4364
        %v4380 = vand.u32 2147483647, %v4365
        %v4381 = vand.u32 2147483647, %v4366
        %v4382 = vand.u32 2147483647, %v4367
        %v4383 = vand.u32 2147483647, %v4368
        %v4384 = vmul.f32 %v4379, 0.3275911
        %v4385 = vmul.f32 %v4380, 0.3275911
        %v4386 = vmul.f32 %v4381, 0.3275911
        %v4387 = vmul.f32 %v4382, 0.3275911
        %v4388 = vmul.f32 %v4383, 0.3275911
        %v4389 = vadd.f32 %v4384, 1.0
        %v4390 = vadd.f32 %v4385, 1.0
        %v4391 = vadd.f32 %v4386, 1.0
        %v4392 = vadd.f32 %v4387, 1.0
        %v4393 = vadd.f32 %v4388, 1.0
        %v4394 = vrcp.pop %v4389
        %v4395 = vmul.f32 %v4389, %v4394
        %v4396 = vsub.f32 1.0, %v4395
        %v4397 = vmul.f32 %v4394, %v4396
        %v4398 = vadd.f32 %v4394, %v4397
        %vm4399 = vweird.f32 %v4389
        %vm4400 = vweird.f32 %v4394
        %vm4401 = vmor %vm4399, %vm4400
        %v4402 = vsel %vm4401, %v4394, %v4398
        %v4403 = vand.u32 2147483647, %v4389
        %vm4404 = vcmp.eq.f32.partialorder %v4403, 8.507059e+37
        %v4405 = vand.u32 %v4389, 2147483648
        %v4406 = vor.u32 1.1754944e-38, %v4405
        %v4407 = vsel %vm4404, %v4406, %v4402
        %v4408 = vmul.f32 1.0, %v4407
        %v4409 = vrcp.pop %v4390
        %v4410 = vmul.f32 %v4390, %v4409
        %v4411 = vsub.f32 1.0, %v4410
        %v4412 = vmul.f32 %v4409, %v4411
        %v4413 = vadd.f32 %v4409, %v4412
        %vm4414 = vweird.f32 %v4390
        %vm4415 = vweird.f32 %v4409
        %vm4416 = vmor %vm4414, %vm4415
        %v4417 = vsel %vm4416, %v4409, %v4413
        %v4418 = vand.u32 2147483647, %v4390
        %vm4419 = vcmp.eq.f32.partialorder %v4418, 8.507059e+37
        %v4420 = vand.u32 %v4390, 2147483648
        %v4421 = vor.u32 1.1754944e-38, %v4420
        %v4422 = vsel %vm4419, %v4421, %v4417
        %v4423 = vmul.f32 1.0, %v4422
        %v4424 = vrcp.pop %v4391
        %v4425 = vmul.f32 %v4391, %v4424
        %v4426 = vsub.f32 1.0, %v4425
        %v4427 = vmul.f32 %v4424, %v4426
        %v4428 = vadd.f32 %v4424, %v4427
        %vm4429 = vweird.f32 %v4391
        %vm4430 = vweird.f32 %v4424
        %vm4431 = vmor %vm4429, %vm4430
        %v4432 = vsel %vm4431, %v4424, %v4428
        %v4433 = vand.u32 2147483647, %v4391
        %vm4434 = vcmp.eq.f32.partialorder %v4433, 8.507059e+37
        %v4435 = vand.u32 %v4391, 2147483648
        %v4436 = vor.u32 1.1754944e-38, %v4435
        %v4437 = vsel %vm4434, %v4436, %v4432
        %v4438 = vmul.f32 1.0, %v4437
        %v4439 = vrcp.pop %v4392
        %v4440 = vmul.f32 %v4392, %v4439
        %v4441 = vsub.f32 1.0, %v4440
        %v4442 = vmul.f32 %v4439, %v4441
        %v4443 = vadd.f32 %v4439, %v4442
        %vm4444 = vweird.f32 %v4392
        %vm4445 = vweird.f32 %v4439
        %vm4446 = vmor %vm4444, %vm4445
        %v4447 = vsel %vm4446, %v4439, %v4443
        %v4448 = vand.u32 2147483647, %v4392
        %vm4449 = vcmp.eq.f32.partialorder %v4448, 8.507059e+37
        %v4450 = vand.u32 %v4392, 2147483648
        %v4451 = vor.u32 1.1754944e-38, %v4450
        %v4452 = vsel %vm4449, %v4451, %v4447
        %v4453 = vmul.f32 1.0, %v4452
        %v4454 = vrcp.pop %v4393
        %v4455 = vmul.f32 %v4393, %v4454
        %v4456 = vsub.f32 1.0, %v4455
        %v4457 = vmul.f32 %v4454, %v4456
        %v4458 = vadd.f32 %v4454, %v4457
        %vm4459 = vweird.f32 %v4393
        %vm4460 = vweird.f32 %v4454
        %vm4461 = vmor %vm4459, %vm4460
        %v4462 = vsel %vm4461, %v4454, %v4458
        %v4463 = vand.u32 2147483647, %v4393
        %vm4464 = vcmp.eq.f32.partialorder %v4463, 8.507059e+37
        %v4465 = vand.u32 %v4393, 2147483648
        %v4466 = vor.u32 1.1754944e-38, %v4465
        %v4467 = vsel %vm4464, %v4466, %v4462
        %v4468 = vmul.f32 1.0, %v4467
        %v4469 = vmul.f32 %v4408, 1.0614054
        %v4470 = vmul.f32 %v4423, 1.0614054
        %v4471 = vmul.f32 %v4438, 1.0614054
        %v4472 = vmul.f32 %v4453, 1.0614054
        %v4473 = vmul.f32 %v4468, 1.0614054
        %v4474 = vadd.f32 %v4469, -1.4531521
        %v4475 = vadd.f32 %v4470, -1.4531521
        %v4476 = vadd.f32 %v4471, -1.4531521
        %v4477 = vadd.f32 %v4472, -1.4531521
        %v4478 = vadd.f32 %v4473, -1.4531521
        %v4479 = vmul.f32 %v4474, %v4408
        %v4480 = vmul.f32 %v4475, %v4423
        %v4481 = vmul.f32 %v4476, %v4438
        %v4482 = vmul.f32 %v4477, %v4453
        %v4483 = vmul.f32 %v4478, %v4468
        %v4484 = vadd.f32 %v4479, 1.4214138
        %v4485 = vadd.f32 %v4480, 1.4214138
        %v4486 = vadd.f32 %v4481, 1.4214138
        %v4487 = vadd.f32 %v4482, 1.4214138
        %v4488 = vadd.f32 %v4483, 1.4214138
        %v4489 = vmul.f32 %v4484, %v4408
        %v4490 = vmul.f32 %v4485, %v4423
        %v4491 = vmul.f32 %v4486, %v4438
        %v4492 = vmul.f32 %v4487, %v4453
        %v4493 = vmul.f32 %v4488, %v4468
        %v4494 = vadd.f32 %v4489, -0.28449672
        %v4495 = vadd.f32 %v4490, -0.28449672
        %v4496 = vadd.f32 %v4491, -0.28449672
        %v4497 = vadd.f32 %v4492, -0.28449672
        %v4498 = vadd.f32 %v4493, -0.28449672
        %v4499 = vmul.f32 %v4494, %v4408
        %v4500 = vmul.f32 %v4495, %v4423
        %v4501 = vmul.f32 %v4496, %v4438
        %v4502 = vmul.f32 %v4497, %v4453
        %v4503 = vmul.f32 %v4498, %v4468
        %v4504 = vadd.f32 %v4499, 0.2548296
        %v4505 = vadd.f32 %v4500, 0.2548296
        %v4506 = vadd.f32 %v4501, 0.2548296
        %v4507 = vadd.f32 %v4502, 0.2548296
        %v4508 = vadd.f32 %v4503, 0.2548296
        %v4509 = vmul.f32 %v4504, %v4408
        %v4510 = vmul.f32 %v4505, %v4423
        %v4511 = vmul.f32 %v4506, %v4438
        %v4512 = vmul.f32 %v4507, %v4453
        %v4513 = vmul.f32 %v4508, %v4468
        %v4514 = vsub.f32 0.0, %v4379
        %v4515 = vsub.f32 0.0, %v4380
        %v4516 = vsub.f32 0.0, %v4381
        %v4517 = vsub.f32 0.0, %v4382
        %v4518 = vsub.f32 0.0, %v4383
        %v4519 = vmul.f32 %v4514, %v4379
        %v4520 = vmul.f32 %v4515, %v4380
        %v4521 = vmul.f32 %v4516, %v4381
        %v4522 = vmul.f32 %v4517, %v4382
        %v4523 = vmul.f32 %v4518, %v4383
        %v4524 = vmul.f32 %v4519, 1.442695
        %v4525 = vpow.pop %v4524
        %v4526 = vmul.f32 %v4520, 1.442695
        %v4527 = vpow.pop %v4526
        %v4528 = vmul.f32 %v4521, 1.442695
        %v4529 = vpow.pop %v4528
        %v4530 = vmul.f32 %v4522, 1.442695
        %v4531 = vpow.pop %v4530
        %v4532 = vmul.f32 %v4523, 1.442695
        %v4533 = vpow.pop %v4532
        %v4534 = vmul.f32 %v4509, %v4525
        %v4535 = vmul.f32 %v4510, %v4527
        %v4536 = vmul.f32 %v4511, %v4529
        %v4537 = vmul.f32 %v4512, %v4531
        %v4538 = vmul.f32 %v4513, %v4533
        %v4539 = vsub.f32 1.0, %v4534
        %v4540 = vsub.f32 1.0, %v4535
        %v4541 = vsub.f32 1.0, %v4536
        %v4542 = vsub.f32 1.0, %v4537
        %v4543 = vsub.f32 1.0, %v4538
        %v4544 = vmul.f32 %v4374, %v4539
        %v4545 = vmul.f32 %v4375, %v4540
        %v4546 = vmul.f32 %v4376, %v4541
        %v4547 = vmul.f32 %v4377, %v4542
        %v4548 = vmul.f32 %v4378, %v4543
        %v4549 = vadd.f32 %v4544, 1.0
        %v4550 = vadd.f32 %v4545, 1.0
        %v4551 = vadd.f32 %v4546, 1.0
        %v4552 = vadd.f32 %v4547, 1.0
        %v4553 = vadd.f32 %v4548, 1.0
        %v4554 = vmul.f32 %v4359, %v4549
        %v4555 = vmul.f32 %v4360, %v4550
        %v4556 = vmul.f32 %v4361, %v4551
        %v4557 = vmul.f32 %v4362, %v4552
        %v4558 = vmul.f32 %v4363, %v4553
        %s4559 = scalar_lea.vmem %s5, 64
        %v4560 = vld [vmem:[%s4559] sm:$0xff]
        %v4561 = vld [vmem:[%s4559 + $0x8] sm:$0xff]
        %v4562 = vld [vmem:[%s4559 + $0x10] sm:$0xff]
        %v4563 = vld [vmem:[%s4559 + $0x18] sm:$0xff]
        %v4564 = vld [vmem:[%s4559 + $0x20] sm:$0xff]
        %v4565 = vld [vmem:[%s4559 + $0x28] sm:$0xff]
        %v4566 = vld [vmem:[%s4559 + $0x30] sm:$0xff]
        %v4567 = vld [vmem:[%s4559 + $0x38] sm:$0xff]
        %v4568 = vld [vmem:[%s7 + $0xf] sm:$0x1]
        %v4569 = vperm.slane %v4568, 0
        %v4571 = vsel %vm3055, %v4554, 0
        %v4574 = vsel %vm3055, %v4555, 0
        %v4577 = vsel %vm3055, %v4556, 0
        %v4580 = vsel %vm3055, %v4557, 0
        %v4583 = vsel %vm3055, %v4558, 0
        %4585 = vmatpush.msra.mxu0 0.0
        %4586 = vmatpush.msra.mxu0 0.0
        %4587 = vmatpush.msra.mxu0 0.0
        %4588 = vmatpush.msra.mxu0 0.0
        %4589 = vmatpush.msra.mxu0 0.0
        %4590 = vmatpush.msra.mxu0 0.0
        %4591 = vmatpush.msra.mxu0 0.0
        %4592 = vmatpush.msra.mxu0 0.0
        %4593 = vmatpush.msra.mxu0 %v4567
        %4594 = vmatpush.msra.mxu0 %v4566
        %4595 = vmatpush.msra.mxu0 %v4565
        %4596 = vmatpush.msra.mxu0 %v4564
        %4597 = vmatpush.msra.mxu0 %v4563
        %4598 = vmatpush.msra.mxu0 %v4562
        %4599 = vmatpush.msra.mxu0 %v4561
        %4600 = vmatpush.msra.mxu0 %v4560
        %4601 = vmatmul.f32.gmra.mxu0 %v4571
        %v4602 = vpop.f32.mrf.mxu0
        %v4603 = vadd.f32 %v4569, %v4602
        %4604 = vmatmul.f32.gmra.mxu0 %v4574
        %v4605 = vpop.f32.mrf.mxu0
        %v4606 = vadd.f32 %v4569, %v4605
        %4607 = vmatmul.f32.gmra.mxu0 %v4577
        %v4608 = vpop.f32.mrf.mxu0
        %v4609 = vadd.f32 %v4569, %v4608
        %4610 = vmatmul.f32.gmra.mxu0 %v4580
        %v4611 = vpop.f32.mrf.mxu0
        %v4612 = vadd.f32 %v4569, %v4611
        %4613 = vmatmul.f32.gmra.mxu0 %v4583
        %v4614 = vpop.f32.mrf.mxu0
        %v4615 = vadd.f32 %v4569, %v4614
        %4616 = vdwg.mxu0
        %v4617 = vadd.f32 %v4176, %v4603
        %v4618 = vadd.f32 %v4177, %v4606
        %v4619 = vadd.f32 %v4178, %v4609
        %v4620 = vadd.f32 %v4179, %v4612
        %v4621 = vadd.f32 %v4180, %v4615
        %v4623 = vrot.slane %v4617, 4
        %v4626 = vrot.slane %v4618, 4
        %v4629 = vrot.slane %v4620, 4
        %v4632 = vrot.slane %v4621, 4
        %v4634 = vsel %vm1559, %v4617, %v4623
        %v4635 = vsel %vm1565, %v4634, %v4618
        %v4636 = vsel %vm1567, %v4635, %v4626
        %v4637 = vsel %vm1571, %v4636, %v4619
        %v4638 = vsel %vm1561, %v4637, %v4629
        %v4639 = vsel %vm1563, %v4638, %v4620
        %v4640 = vsel %vm1569, %v4639, %v4632
        %v4641 = vld [vmem:[%s7 + $0x11] sm:$0x1]
        %v4642 = vld [vmem:[%s7 + $0x12] sm:$0x1]
        %v4643 = vsel %vm1587, %v4640, 0.0
        %4644 = vadd.xlane.f32.xlu0 %v4643
        %v4645 = vpop.xlane.xlu0 %4644
        %v4646 = vmul.f32 %v4645, %v1609
        %v4647 = vsub.f32 %v4640, %v4646
        %v4648 = vmul.f32 %v4647, %v4647
        %v4649 = vsel %vm1587, %v4648, 0.0
        %4650 = vadd.xlane.f32.xlu0 %v4649
        %v4651 = vpop.xlane.xlu0 %4650
        %v4652 = vmul.f32 %v4651, %v1609
        %v4653 = vadd.f32 %v4652, 1e-06
        %v4654 = vrsqrt.pop %v4653
        %v4655 = vmul.f32 %v4654, %v4653
        %v4656 = vmul.f32 %v4655, %v4654
        %v4657 = vmul.f32 0.5, %v4656
        %v4658 = vsub.f32 1.5, %v4657
        %v4659 = vmul.f32 %v4654, %v4658
        %vm4660 = vweird.f32 %v4653
        %vm4661 = vweird.f32 %v4654
        %vm4662 = vmor %vm4660, %vm4661
        %v4663 = vsel %vm4662, %v4654, %v4659
        %v4664 = vmul.f32 %v4647, %v4663
        %v4665 = vperm.slane %v4641, 0
        %v4666 = vmul.f32 %v4664, %v4665
        %v4667 = vperm.slane %v4642, 0
        %v4668 = vadd.f32 %v4666, %v4667
        %v4669 = vld [vmem:[%s6] sm:$0xff]
        %v4670 = vld [vmem:[%s6 + $0x8] sm:$0xff]
        %v4671 = vld [vmem:[%s6 + $0x10] sm:$0xff]
        %v4672 = vld [vmem:[%s6 + $0x18] sm:$0xff]
        %v4673 = vld [vmem:[%s7 + $0x13] sm:$0x1]
        %v4674 = vperm.slane %v4673, 0
        %v4676 = vsel %vm1587, %v4668, 0
        %4678 = vmatpush.msra.mxu0 0.0
        %4679 = vmatpush.msra.mxu0 0.0
        %4680 = vmatpush.msra.mxu0 0.0
        %4681 = vmatpush.msra.mxu0 0.0
        %4682 = vmatpush.msra.mxu0 0.0
        %4683 = vmatpush.msra.mxu0 0.0
        %4684 = vmatpush.msra.mxu0 0.0
        %4685 = vmatpush.msra.mxu0 0.0
        %4686 = vmatpush.msra.mxu0 0.0
        %4687 = vmatpush.msra.mxu0 0.0
        %4688 = vmatpush.msra.mxu0 0.0
        %4689 = vmatpush.msra.mxu0 0.0
        %4690 = vmatpush.msra.mxu0 %v4672
        %4691 = vmatpush.msra.mxu0 %v4671
        %4692 = vmatpush.msra.mxu0 %v4670
        %4693 = vmatpush.msra.mxu0 %v4669
        %4694 = vmatmul.f32.gmra.mxu0 %v4676
        %v4695 = vpop.f32.mrf.mxu0
        %v4696 = vadd.f32 %v4674, %v4695
        %4697 = vdwg.mxu0
        %4698 = vst [vmem:[%s328] sm:$0xff] %v4696
        %s4699 = sand.u32 %s225, 1
        %s4700 = scalar_lea.sflag [#allocation3], %s4699
        %s4701 = sand.u32 %s225, 1
        %s4702 = smul.addr %s4701, 8
        %s4703 = scalar_lea.vmem [#allocation2], %s4702
        // Predicated region
        $region57: #{vit_forward.1} parent=55 // pred_check
          %p4704 = pneg %p235
        $region58: #{vit_forward.1} parent=55 // pred_check_branch
          %4706 = sbr.rel (%p4704) target = $region60
        $region59: #{vit_forward.1} parent=55 // pred_region
          %4708 = vsyncadd %s4700, 0
          %s4709 = smul.addr %s23, 8
          %s4710 = scalar_lea.hbm %s9, %s4709
          %s4712 = sshll.u32 %s4703, 4
          %s4713 = int_to_ptr.vmem [resolvable:$true] %s4712
          %s4714 = sshll.u32 %s4710, 4
          %s4715 = int_to_ptr.hbm [resolvable:$true] %s4714
          %4717 = dma.vmem_to_hbm [thread:$0]  %s4713, 128, %s4715, %s4700
        $region60: #{vit_forward.1} parent=55 // pred_fallthru
          _
      $region56: #{vit_forward.1} parent=5 // pred_fallthru
        _
      %p4718 = scmp.le.s32.totalorder 2, %s18
      // Predicated region
      $region61: #{vit_forward.1} parent=5 // pred_check
        %p4719 = pneg %p4718
      $region62: #{vit_forward.1} parent=5 // pred_check_branch
        %4721 = sbr.rel (%p4719) target = $region64
      $region63: #{vit_forward.1} parent=5 // pred_region
        %s4722 = ssub.s32 %s18, 2
        // Predicated region
        $region65: #{vit_forward.1} parent=63 // pred_check
          %p4723 = pneg %p241
        $region66: #{vit_forward.1} parent=63 // pred_check_branch
          %4725 = sbr.rel (%p4723) target = $region68
        $region67: #{vit_forward.1} parent=63 // pred_region
          %s4726 = sand.u32 %s226, 1
          %s4727 = scalar_lea.sflag [#allocation3], %s4726
          %s4728 = sand.u32 %s226, 1
          %s4729 = smul.addr %s4728, 8
          %s4730 = scalar_lea.vmem [#allocation2], %s4729
          %4732 = dma.done %s4727, 128
        $region68: #{vit_forward.1} parent=63 // pred_fallthru
          _
      $region64: #{vit_forward.1} parent=5 // pred_fallthru
        _
    $region6: #{vit_forward.1} parent=1 // loop_footer
      %s22 = sadd.s32 1, %s18
    $region7: #{vit_forward.1} parent=1 // loop_footer_branch
      %17 = sbr.rel target = $region3
    $region8: #{vit_forward.1} parent=1 // loop_exit
      _
    %4733 = vsyncpa [#allocation3], 1
    %s4734 = scalar_lea.sflag [#allocation3], 1
    %4735 = vsyncpa %s4734, 1

</llo_original>
